<compile_context>
chip_gen: v6e
topology: v6e:2x2x1
jax: 0.10.0
libtpu: 0.0.40
codegen_flags: <defaults>
</compile_context>

<pallas_src>
import functools
import math

import jax
import jax.numpy as jnp
from jax import lax
from jax.experimental import pallas as pl
from jax.experimental.pallas import tpu as pltpu

# ------------------------- configuration ----------------------------------
HIDDEN_DIM = 32
NUM_HEADS = 4
DEPTH = 2
BATCH = 2
SEQ = 8
INNER = HIDDEN_DIM * 2
LN_EPS = 1e-5

# rows of the packed per-layer bias/scale tensor (depth, 8, D)
_LN1W, _LN1B, _LN2W, _LN2B, _BO, _B2 = 0, 1, 2, 3, 4, 5


# ------------------------- parameter / signal setup (plain JAX glue) -------
def positional_embedding(hidden_dim, length=10000, min_timescale=1.0,
                         max_timescale=10000.0):
    assert hidden_dim % 2 == 0
    num_timescales = hidden_dim // 2
    log_inc = math.log(float(max_timescale) / float(min_timescale)) / (
        float(num_timescales) - 1.0)
    position = jnp.arange(0, length, dtype=jnp.float32)
    inv_timescales = jnp.exp(
        jnp.arange(0, num_timescales, dtype=jnp.float32) * (-log_inc)) * min_timescale
    scaled = position[:, None] * inv_timescales[None, :]
    return jnp.concatenate([jnp.sin(scaled), jnp.cos(scaled)], axis=1)


def init_params(key, depth, d, inner):
    """Deterministic synthetic parameters (logical, torch-like), stacked on depth."""
    def lin(k, fan_in, fan_out):
        bound = 1.0 / math.sqrt(fan_in)
        return jax.random.uniform(k, (fan_in, fan_out), jnp.float32, -bound, bound)

    names = ('wq', 'wk', 'wv', 'wo', 'bo', 'w1', 'b1', 'w2', 'b2',
             'ln1_w', 'ln1_b', 'ln2_w', 'ln2_b')
    acc = {n: [] for n in names}
    for i in range(depth):
        keys = jax.random.split(jax.random.fold_in(key, i), 6)
        acc['wq'].append(lin(keys[0], d, d))
        acc['wk'].append(lin(keys[1], d, d))
        acc['wv'].append(lin(keys[2], d, d))
        acc['wo'].append(lin(keys[3], d, d))
        acc['bo'].append(jnp.zeros((d,), jnp.float32))
        acc['w1'].append(lin(keys[4], d, inner))
        acc['b1'].append(jnp.zeros((inner,), jnp.float32))
        acc['w2'].append(lin(keys[5], inner, d))
        acc['b2'].append(jnp.zeros((d,), jnp.float32))
        acc['ln1_w'].append(jnp.ones((d,), jnp.float32))
        acc['ln1_b'].append(jnp.zeros((d,), jnp.float32))
        acc['ln2_w'].append(jnp.ones((d,), jnp.float32))
        acc['ln2_b'].append(jnp.zeros((d,), jnp.float32))
    return {k: jnp.stack(v, axis=0) for k, v in acc.items()}


def pack_params(params):
    """One-time (outside jit) weight transform into the kernel operand layout.

    * Q/K/V weights are split per head (leading-axis indexed in the kernel, so
      no sub-128 lane slicing ever happens in VMEM) and the 1/sqrt(dh)
      attention scale is folded into the Q columns.
    * Wo is split into per-head row blocks so each head accumulates directly
      into the (BT, D) attention output (no lane concat).
    * All (D,)-wide scales/biases are packed into one (depth, 8, D) tensor.
    """
    d, h = HIDDEN_DIM, NUM_HEADS
    dh = d // h
    scale = float(dh) ** (-0.5)

    def col_heads(w):                      # (depth, d, d) -> (depth, h, d, dh)
        return w.reshape(DEPTH, d, h, dh).transpose(0, 2, 1, 3)

    wq = col_heads(params['wq'] * scale)   # fold 1/sqrt(dh) into Q weights
    wk = col_heads(params['wk'])
    wv = col_heads(params['wv'])
    wqkv = jnp.stack([wq, wk, wv], axis=1)            # (depth, 3, h, d, dh)
    wqkv = wqkv.reshape(DEPTH * 3 * h, d, dh)         # flat leading axis

    wo = params['wo'].reshape(DEPTH, h, dh, d).reshape(DEPTH * h, dh, d)

    zeros = jnp.zeros_like(params['bo'])
    bias = jnp.stack([params['ln1_w'], params['ln1_b'],
                      params['ln2_w'], params['ln2_b'],
                      params['bo'], params['b2'],
                      zeros, zeros], axis=1)          # (depth, 8, d), 8-sublane aligned

    return {
        'wqkv_h': wqkv,                               # (depth*3*h, d, dh)
        'wo_h': wo,                                   # (depth*h, dh, d)
        'w1': params['w1'],                           # (depth, d, inner)
        'b1': params['b1'].reshape(DEPTH, 1, INNER),  # (depth, 1, inner)
        'w2': params['w2'],                           # (depth, inner, d)
        'bias': bias,                                 # (depth, 8, d)
    }


# ------------------------- fused Pallas kernel ------------------------------
def _transformer_kernel(x_ref, sig_ref, wqkv_ref, wo_ref, w1_ref, b1_ref,
                        w2_ref, bias_ref, o_ref, *, depth, num_heads, seq):
    BT, D = x_ref.shape
    H = num_heads

    # positional embedding add (first op, fused)
    x = x_ref[...] + sig_ref[...]                     # (BT, D)

    # block-diagonal(batch) + causal additive mask, built in-kernel (no DMA)
    row = lax.broadcasted_iota(jnp.int32, (BT, BT), 0)
    col = lax.broadcasted_iota(jnp.int32, (BT, BT), 1)
    if (seq & (seq - 1)) == 0:                        # power-of-two: pure shifts
        shift = seq.bit_length() - 1
        same_batch = (row >> shift) == (col >> shift)
    else:
        same_batch = (row // seq) == (col // seq)
    visible = same_batch & (col <= row)
    mask = jnp.where(visible, jnp.float32(0.0), jnp.float32(-1e9))

    for l in range(depth):                            # static, fully unrolled
        bp = bias_ref[l]                              # (8, D)
        ln1w, ln1b = bp[_LN1W:_LN1W + 1, :], bp[_LN1B:_LN1B + 1, :]
        ln2w, ln2b = bp[_LN2W:_LN2W + 1, :], bp[_LN2B:_LN2B + 1, :]
        bo, b2 = bp[_BO:_BO + 1, :], bp[_B2:_B2 + 1, :]

        # ---- LayerNorm 1 ----
        mu = jnp.mean(x, axis=-1, keepdims=True)
        var = jnp.mean((x - mu) ** 2, axis=-1, keepdims=True)
        h = (x - mu) * lax.rsqrt(var + LN_EPS) * ln1w + ln1b

        # ---- multi-head masked self-attention, per-head weights -------------
        # (no lane slicing of activations, no concat; accumulate through Wo)
        attn = None
        for hh in range(num_heads):                   # static, fully unrolled
            wq = wqkv_ref[(l * 3 + 0) * H + hh]       # (D, dh), scale pre-folded
            wk = wqkv_ref[(l * 3 + 1) * H + hh]
            wv = wqkv_ref[(l * 3 + 2) * H + hh]
            qh = jnp.dot(h, wq, preferred_element_type=jnp.float32)   # (BT, dh)
            kh = jnp.dot(h, wk, preferred_element_type=jnp.float32)
            vh = jnp.dot(h, wv, preferred_element_type=jnp.float32)
            # q @ k^T without materializing a transpose
            s = lax.dot_general(qh, kh, (((1,), (1,)), ((), ())),
                                preferred_element_type=jnp.float32) + mask
            s = s - jnp.max(s, axis=-1, keepdims=True)
            p = jnp.exp(s)
            p = p * pl.reciprocal(jnp.sum(p, axis=-1, keepdims=True), approx=True)
            oh = jnp.dot(p, vh, preferred_element_type=jnp.float32)   # (BT, dh)
            contrib = jnp.dot(oh, wo_ref[l * H + hh],
                              preferred_element_type=jnp.float32)     # (BT, D)
            attn = contrib if attn is None else attn + contrib
        x = x + attn + bo                             # residual 1 (+ out bias)

        # ---- LayerNorm 2 + feed-forward ----
        mu2 = jnp.mean(x, axis=-1, keepdims=True)
        var2 = jnp.mean((x - mu2) ** 2, axis=-1, keepdims=True)
        h2 = (x - mu2) * lax.rsqrt(var2 + LN_EPS) * ln2w + ln2b

        f = jnp.dot(h2, w1_ref[l], preferred_element_type=jnp.float32) + b1_ref[l]
        f = jnp.maximum(f, 0.0)
        f = jnp.dot(f, w2_ref[l], preferred_element_type=jnp.float32) + b2
        x = x + f                                     # residual 2

    # TODO(synk): lane-dense (4,128) store skipped - in-kernel (16,32)->(4,128)
    # reshape is itself a relayout + lowering risk for a ~2 KiB masked-store win.
    o_ref[...] = x


# ------------------------- wrapper -------------------------------------------
@jax.jit
def transformer_forward(x, packed, signal):
    """Equivalent of Transformer.forward(x) in eval mode (decoding=False)."""
    B, T, D = x.shape
    BT = B * T

    x2d = x.reshape(BT, D)
    sig2d = jnp.tile(signal[:T], (B, 1))              # (BT, D)

    inputs = [x2d, sig2d, packed['wqkv_h'], packed['wo_h'],
              packed['w1'], packed['b1'], packed['w2'], packed['bias']]

    vmem_spec = pl.BlockSpec(memory_space=pltpu.MemorySpace.VMEM)

    out2d = pl.pallas_call(
        functools.partial(_transformer_kernel, depth=DEPTH,
                          num_heads=NUM_HEADS, seq=T),
        out_shape=jax.ShapeDtypeStruct((BT, D), x.dtype),
        in_specs=[vmem_spec] * len(inputs),
        out_specs=vmem_spec,
    )(*inputs)

    # config.encoder=False, not decoding, not retain_cache -> cache stays
    # [None, None] per layer; mirror that structure.
    cache = [[None, None] for _ in range(DEPTH)]
    return out2d.reshape(B, T, D), cache


# ------------------------- pure-JAX reference (for sanity check) -------------
def reference_forward(x, params, signal):
    B, T, D = x.shape
    dh = D // NUM_HEADS
    x = x + signal[:T][None]

    def ln(z, w, b):
        mu = z.mean(-1, keepdims=True)
        var = ((z - mu) ** 2).mean(-1, keepdims=True)
        return (z - mu) / jnp.sqrt(var + LN_EPS) * w + b

    for l in range(DEPTH):
        h = ln(x, params['ln1_w'][l], params['ln1_b'][l])
        q = h @ params['wq'][l]
        k = h @ params['wk'][l]
        v = h @ params['wv'][l]

        def split(z):
            return z.reshape(B, T, NUM_HEADS, dh).transpose(0, 2, 1, 3)

        qh, kh, vh = split(q), split(k), split(v)
        s = jnp.einsum('bhqd,bhkd->bhqk', qh, kh) * (dh ** -0.5)
        s = s + jnp.triu(jnp.ones((T, T), jnp.float32), 1) * -1e9
        p = jax.nn.softmax(s, axis=-1)
        o = jnp.einsum('bhqk,bhkd->bhqd', p, vh)
        o = o.transpose(0, 2, 1, 3).reshape(B, T, D)
        x = x + o @ params['wo'][l] + params['bo'][l]

        h2 = ln(x, params['ln2_w'][l], params['ln2_b'][l])
        f = jnp.maximum(h2 @ params['w1'][l] + params['b1'][l], 0.0)
        x = x + f @ params['w2'][l] + params['b2'][l]
    return x


# ------------------------- main ----------------------------------------------
if __name__ == "__main__":
    key = jax.random.PRNGKey(0)
    x = jax.random.normal(jax.random.fold_in(key, 1234),
                          (BATCH, SEQ, HIDDEN_DIM), jnp.float32)
    params = init_params(key, DEPTH, HIDDEN_DIM, INNER)
    packed = jax.tree_util.tree_map(jax.block_until_ready, pack_params(params))
    signal = positional_embedding(HIDDEN_DIM)

    out, cache = transformer_forward(x, packed, signal)
    jax.block_until_ready(out)
    assert out.shape == (BATCH, SEQ, HIDDEN_DIM)

    ref = reference_forward(x, params, signal)
    jax.block_until_ready(ref)
    assert jnp.allclose(out, ref, atol=2e-2, rtol=2e-2), (
        float(jnp.max(jnp.abs(out - ref))))

    print("KERNEL_OK")
</pallas_src>

<mosaic_0001>
module attributes {stable_mosaic.version = 11 : i64} {
  func.func @_transformer_kernel(%arg0: memref<16x32xf32, #tpu.memory_space<vmem>>, %arg1: memref<16x32xf32, #tpu.memory_space<vmem>>, %arg2: memref<24x32x8xf32, #tpu.memory_space<vmem>>, %arg3: memref<8x8x32xf32, #tpu.memory_space<vmem>>, %arg4: memref<2x32x64xf32, #tpu.memory_space<vmem>>, %arg5: memref<2x1x64xf32, #tpu.memory_space<vmem>>, %arg6: memref<2x64x32xf32, #tpu.memory_space<vmem>>, %arg7: memref<2x8x32xf32, #tpu.memory_space<vmem>>, %arg8: memref<16x32xf32, #tpu.memory_space<vmem>>) attributes {dimension_semantics = [], scalar_prefetch = 0 : i64, scratch_operands = 0 : i64, tpu.core_type = #tpu.core_type<tc>} {
    %c0 = arith.constant 0 : index
    %c0_0 = arith.constant 0 : index
    %0 = vector.load %arg0[%c0, %c0_0] : memref<16x32xf32, #tpu.memory_space<vmem>>, vector<16x32xf32>
    %c0_1 = arith.constant 0 : index
    %c0_2 = arith.constant 0 : index
    %1 = vector.load %arg1[%c0_1, %c0_2] : memref<16x32xf32, #tpu.memory_space<vmem>>, vector<16x32xf32>
    %2 = arith.addf %0, %1 : vector<16x32xf32>
    %3 = tpu.iota {dimensions = array<i32: 0>} : vector<16x16xi32>
    %4 = tpu.iota {dimensions = array<i32: 1>} : vector<16x16xi32>
    %c3_i32 = arith.constant 3 : i32
    %5 = vector.broadcast %c3_i32 : i32 to vector<16x16xi32>
    %6 = arith.shrsi %3, %5 : vector<16x16xi32>
    %c3_i32_3 = arith.constant 3 : i32
    %7 = vector.broadcast %c3_i32_3 : i32 to vector<16x16xi32>
    %8 = arith.shrsi %4, %7 : vector<16x16xi32>
    %9 = arith.cmpi eq, %6, %8 : vector<16x16xi32>
    %10 = arith.cmpi sle, %4, %3 : vector<16x16xi32>
    %11 = arith.andi %9, %10 : vector<16x16xi1>
    %cst = arith.constant 0.000000e+00 : f32
    %cst_4 = arith.constant -1.000000e+09 : f32
    %12 = vector.broadcast %cst : f32 to vector<16x16xf32>
    %13 = vector.broadcast %cst_4 : f32 to vector<16x16xf32>
    %14 = arith.select %11, %12, %13 : vector<16x16xi1>, vector<16x16xf32>
    %c0_5 = arith.constant 0 : index
    %c0_6 = arith.constant 0 : index
    %c0_7 = arith.constant 0 : index
    %15 = vector.load %arg7[%c0_5, %c0_6, %c0_7] : memref<2x8x32xf32, #tpu.memory_space<vmem>>, vector<1x8x32xf32>
    %16 = vector.shape_cast %15 : vector<1x8x32xf32> to vector<8x32xf32>
    %17 = vector.extract_strided_slice %16 {offsets = [0, 0], sizes = [1, 32], strides = [1, 1]} : vector<8x32xf32> to vector<1x32xf32>
    %18 = vector.extract_strided_slice %16 {offsets = [1, 0], sizes = [1, 32], strides = [1, 1]} : vector<8x32xf32> to vector<1x32xf32>
    %19 = vector.extract_strided_slice %16 {offsets = [2, 0], sizes = [1, 32], strides = [1, 1]} : vector<8x32xf32> to vector<1x32xf32>
    %20 = vector.extract_strided_slice %16 {offsets = [3, 0], sizes = [1, 32], strides = [1, 1]} : vector<8x32xf32> to vector<1x32xf32>
    %21 = vector.extract_strided_slice %16 {offsets = [4, 0], sizes = [1, 32], strides = [1, 1]} : vector<8x32xf32> to vector<1x32xf32>
    %22 = vector.extract_strided_slice %16 {offsets = [5, 0], sizes = [1, 32], strides = [1, 1]} : vector<8x32xf32> to vector<1x32xf32>
    %cst_8 = arith.constant dense<0.000000e+00> : vector<16xf32>
    %23 = vector.multi_reduction <add>, %2, %cst_8 [1] : vector<16x32xf32> to vector<16xf32>
    %24 = vector.shape_cast %23 : vector<16xf32> to vector<16x1xf32>
    %cst_9 = arith.constant 3.200000e+01 : f32
    %25 = vector.broadcast %cst_9 : f32 to vector<16x1xf32>
    %26 = arith.divf %24, %25 : vector<16x1xf32>
    %27 = vector.broadcast %26 : vector<16x1xf32> to vector<16x32xf32>
    %28 = arith.subf %2, %27 : vector<16x32xf32>
    %29 = arith.mulf %28, %28 : vector<16x32xf32>
    %cst_10 = arith.constant dense<0.000000e+00> : vector<16xf32>
    %30 = vector.multi_reduction <add>, %29, %cst_10 [1] : vector<16x32xf32> to vector<16xf32>
    %31 = vector.shape_cast %30 : vector<16xf32> to vector<16x1xf32>
    %cst_11 = arith.constant 3.200000e+01 : f32
    %32 = vector.broadcast %cst_11 : f32 to vector<16x1xf32>
    %33 = arith.divf %31, %32 : vector<16x1xf32>
    %34 = vector.broadcast %26 : vector<16x1xf32> to vector<16x32xf32>
    %35 = arith.subf %2, %34 : vector<16x32xf32>
    %cst_12 = arith.constant 9.99999974E-6 : f32
    %36 = vector.broadcast %cst_12 : f32 to vector<16x1xf32>
    %37 = arith.addf %33, %36 : vector<16x1xf32>
    %38 = math.rsqrt %37 : vector<16x1xf32>
    %39 = vector.broadcast %38 : vector<16x1xf32> to vector<16x32xf32>
    %40 = arith.mulf %35, %39 : vector<16x32xf32>
    %41 = vector.broadcast %17 : vector<1x32xf32> to vector<16x32xf32>
    %42 = arith.mulf %40, %41 : vector<16x32xf32>
    %43 = vector.broadcast %18 : vector<1x32xf32> to vector<16x32xf32>
    %44 = arith.addf %42, %43 : vector<16x32xf32>
    %c0_13 = arith.constant 0 : index
    %c0_14 = arith.constant 0 : index
    %c0_15 = arith.constant 0 : index
    %45 = vector.load %arg2[%c0_13, %c0_14, %c0_15] : memref<24x32x8xf32, #tpu.memory_space<vmem>>, vector<1x32x8xf32>
    %46 = vector.shape_cast %45 : vector<1x32x8xf32> to vector<32x8xf32>
    %c4 = arith.constant 4 : index
    %c0_16 = arith.constant 0 : index
    %c0_17 = arith.constant 0 : index
    %47 = vector.load %arg2[%c4, %c0_16, %c0_17] : memref<24x32x8xf32, #tpu.memory_space<vmem>>, vector<1x32x8xf32>
    %48 = vector.shape_cast %47 : vector<1x32x8xf32> to vector<32x8xf32>
    %c8 = arith.constant 8 : index
    %c0_18 = arith.constant 0 : index
    %c0_19 = arith.constant 0 : index
    %49 = vector.load %arg2[%c8, %c0_18, %c0_19] : memref<24x32x8xf32, #tpu.memory_space<vmem>>, vector<1x32x8xf32>
    %50 = vector.shape_cast %49 : vector<1x32x8xf32> to vector<32x8xf32>
    %cst_20 = arith.constant dense<0.000000e+00> : vector<16x8xf32>
    %51 = tpu.matmul %44, %46, %cst_20 {dimension_numbers = #tpu.dot_dimension_numbers<[1], [0], [0], [1], [0, 0, 1, 1], [], []>} : vector<16x32xf32>, vector<32x8xf32>, vector<16x8xf32> -> vector<16x8xf32>
    %cst_21 = arith.constant dense<0.000000e+00> : vector<16x8xf32>
    %52 = tpu.matmul %44, %48, %cst_21 {dimension_numbers = #tpu.dot_dimension_numbers<[1], [0], [0], [1], [0, 0, 1, 1], [], []>} : vector<16x32xf32>, vector<32x8xf32>, vector<16x8xf32> -> vector<16x8xf32>
    %cst_22 = arith.constant dense<0.000000e+00> : vector<16x8xf32>
    %53 = tpu.matmul %44, %50, %cst_22 {dimension_numbers = #tpu.dot_dimension_numbers<[1], [0], [0], [1], [0, 0, 1, 1], [], []>} : vector<16x32xf32>, vector<32x8xf32>, vector<16x8xf32> -> vector<16x8xf32>
    %cst_23 = arith.constant dense<0.000000e+00> : vector<16x16xf32>
    %54 = tpu.matmul %51, %52, %cst_23 {dimension_numbers = #tpu.dot_dimension_numbers<[1], [1], [0], [0], [0, 0, 1, 0], [], []>} : vector<16x8xf32>, vector<16x8xf32>, vector<16x16xf32> -> vector<16x16xf32>
    %55 = arith.addf %54, %14 : vector<16x16xf32>
    %cst_24 = arith.constant dense<0xFF800000> : vector<16xf32>
    %56 = vector.multi_reduction <maximumf>, %55, %cst_24 [1] : vector<16x16xf32> to vector<16xf32>
    %57 = vector.shape_cast %56 : vector<16xf32> to vector<16x1xf32>
    %58 = vector.broadcast %57 : vector<16x1xf32> to vector<16x16xf32>
    %59 = arith.subf %55, %58 : vector<16x16xf32>
    %60 = math.exp %59 : vector<16x16xf32>
    %cst_25 = arith.constant dense<0.000000e+00> : vector<16xf32>
    %61 = vector.multi_reduction <add>, %60, %cst_25 [1] : vector<16x16xf32> to vector<16xf32>
    %62 = vector.shape_cast %61 : vector<16xf32> to vector<16x1xf32>
    %63 = tpu.reciprocal %62 {approx = true} : vector<16x1xf32> -> vector<16x1xf32>
    %64 = vector.broadcast %63 : vector<16x1xf32> to vector<16x16xf32>
    %65 = arith.mulf %60, %64 : vector<16x16xf32>
    %cst_26 = arith.constant dense<0.000000e+00> : vector<16x8xf32>
    %66 = tpu.matmul %65, %53, %cst_26 {dimension_numbers = #tpu.dot_dimension_numbers<[1], [0], [0], [1], [0, 0, 1, 1], [], []>} : vector<16x16xf32>, vector<16x8xf32>, vector<16x8xf32> -> vector<16x8xf32>
    %c0_27 = arith.constant 0 : index
    %c0_28 = arith.constant 0 : index
    %c0_29 = arith.constant 0 : index
    %67 = vector.load %arg3[%c0_27, %c0_28, %c0_29] : memref<8x8x32xf32, #tpu.memory_space<vmem>>, vector<1x8x32xf32>
    %68 = vector.shape_cast %67 : vector<1x8x32xf32> to vector<8x32xf32>
    %cst_30 = arith.constant dense<0.000000e+00> : vector<16x32xf32>
    %69 = tpu.matmul %66, %68, %cst_30 {dimension_numbers = #tpu.dot_dimension_numbers<[1], [0], [0], [1], [0, 0, 1, 1], [], []>} : vector<16x8xf32>, vector<8x32xf32>, vector<16x32xf32> -> vector<16x32xf32>
    %c1 = arith.constant 1 : index
    %c0_31 = arith.constant 0 : index
    %c0_32 = arith.constant 0 : index
    %70 = vector.load %arg2[%c1, %c0_31, %c0_32] : memref<24x32x8xf32, #tpu.memory_space<vmem>>, vector<1x32x8xf32>
    %71 = vector.shape_cast %70 : vector<1x32x8xf32> to vector<32x8xf32>
    %c5 = arith.constant 5 : index
    %c0_33 = arith.constant 0 : index
    %c0_34 = arith.constant 0 : index
    %72 = vector.load %arg2[%c5, %c0_33, %c0_34] : memref<24x32x8xf32, #tpu.memory_space<vmem>>, vector<1x32x8xf32>
    %73 = vector.shape_cast %72 : vector<1x32x8xf32> to vector<32x8xf32>
    %c9 = arith.constant 9 : index
    %c0_35 = arith.constant 0 : index
    %c0_36 = arith.constant 0 : index
    %74 = vector.load %arg2[%c9, %c0_35, %c0_36] : memref<24x32x8xf32, #tpu.memory_space<vmem>>, vector<1x32x8xf32>
    %75 = vector.shape_cast %74 : vector<1x32x8xf32> to vector<32x8xf32>
    %cst_37 = arith.constant dense<0.000000e+00> : vector<16x8xf32>
    %76 = tpu.matmul %44, %71, %cst_37 {dimension_numbers = #tpu.dot_dimension_numbers<[1], [0], [0], [1], [0, 0, 1, 1], [], []>} : vector<16x32xf32>, vector<32x8xf32>, vector<16x8xf32> -> vector<16x8xf32>
    %cst_38 = arith.constant dense<0.000000e+00> : vector<16x8xf32>
    %77 = tpu.matmul %44, %73, %cst_38 {dimension_numbers = #tpu.dot_dimension_numbers<[1], [0], [0], [1], [0, 0, 1, 1], [], []>} : vector<16x32xf32>, vector<32x8xf32>, vector<16x8xf32> -> vector<16x8xf32>
    %cst_39 = arith.constant dense<0.000000e+00> : vector<16x8xf32>
    %78 = tpu.matmul %44, %75, %cst_39 {dimension_numbers = #tpu.dot_dimension_numbers<[1], [0], [0], [1], [0, 0, 1, 1], [], []>} : vector<16x32xf32>, vector<32x8xf32>, vector<16x8xf32> -> vector<16x8xf32>
    %cst_40 = arith.constant dense<0.000000e+00> : vector<16x16xf32>
    %79 = tpu.matmul %76, %77, %cst_40 {dimension_numbers = #tpu.dot_dimension_numbers<[1], [1], [0], [0], [0, 0, 1, 0], [], []>} : vector<16x8xf32>, vector<16x8xf32>, vector<16x16xf32> -> vector<16x16xf32>
    %80 = arith.addf %79, %14 : vector<16x16xf32>
    %cst_41 = arith.constant dense<0xFF800000> : vector<16xf32>
    %81 = vector.multi_reduction <maximumf>, %80, %cst_41 [1] : vector<16x16xf32> to vector<16xf32>
    %82 = vector.shape_cast %81 : vector<16xf32> to vector<16x1xf32>
    %83 = vector.broadcast %82 : vector<16x1xf32> to vector<16x16xf32>
    %84 = arith.subf %80, %83 : vector<16x16xf32>
    %85 = math.exp %84 : vector<16x16xf32>
    %cst_42 = arith.constant dense<0.000000e+00> : vector<16xf32>
    %86 = vector.multi_reduction <add>, %85, %cst_42 [1] : vector<16x16xf32> to vector<16xf32>
    %87 = vector.shape_cast %86 : vector<16xf32> to vector<16x1xf32>
    %88 = tpu.reciprocal %87 {approx = true} : vector<16x1xf32> -> vector<16x1xf32>
    %89 = vector.broadcast %88 : vector<16x1xf32> to vector<16x16xf32>
    %90 = arith.mulf %85, %89 : vector<16x16xf32>
    %cst_43 = arith.constant dense<0.000000e+00> : vector<16x8xf32>
    %91 = tpu.matmul %90, %78, %cst_43 {dimension_numbers = #tpu.dot_dimension_numbers<[1], [0], [0], [1], [0, 0, 1, 1], [], []>} : vector<16x16xf32>, vector<16x8xf32>, vector<16x8xf32> -> vector<16x8xf32>
    %c1_44 = arith.constant 1 : index
    %c0_45 = arith.constant 0 : index
    %c0_46 = arith.constant 0 : index
    %92 = vector.load %arg3[%c1_44, %c0_45, %c0_46] : memref<8x8x32xf32, #tpu.memory_space<vmem>>, vector<1x8x32xf32>
    %93 = vector.shape_cast %92 : vector<1x8x32xf32> to vector<8x32xf32>
    %cst_47 = arith.constant dense<0.000000e+00> : vector<16x32xf32>
    %94 = tpu.matmul %91, %93, %cst_47 {dimension_numbers = #tpu.dot_dimension_numbers<[1], [0], [0], [1], [0, 0, 1, 1], [], []>} : vector<16x8xf32>, vector<8x32xf32>, vector<16x32xf32> -> vector<16x32xf32>
    %95 = arith.addf %69, %94 : vector<16x32xf32>
    %c2 = arith.constant 2 : index
    %c0_48 = arith.constant 0 : index
    %c0_49 = arith.constant 0 : index
    %96 = vector.load %arg2[%c2, %c0_48, %c0_49] : memref<24x32x8xf32, #tpu.memory_space<vmem>>, vector<1x32x8xf32>
    %97 = vector.shape_cast %96 : vector<1x32x8xf32> to vector<32x8xf32>
    %c6 = arith.constant 6 : index
    %c0_50 = arith.constant 0 : index
    %c0_51 = arith.constant 0 : index
    %98 = vector.load %arg2[%c6, %c0_50, %c0_51] : memref<24x32x8xf32, #tpu.memory_space<vmem>>, vector<1x32x8xf32>
    %99 = vector.shape_cast %98 : vector<1x32x8xf32> to vector<32x8xf32>
    %c10 = arith.constant 10 : index
    %c0_52 = arith.constant 0 : index
    %c0_53 = arith.constant 0 : index
    %100 = vector.load %arg2[%c10, %c0_52, %c0_53] : memref<24x32x8xf32, #tpu.memory_space<vmem>>, vector<1x32x8xf32>
    %101 = vector.shape_cast %100 : vector<1x32x8xf32> to vector<32x8xf32>
    %cst_54 = arith.constant dense<0.000000e+00> : vector<16x8xf32>
    %102 = tpu.matmul %44, %97, %cst_54 {dimension_numbers = #tpu.dot_dimension_numbers<[1], [0], [0], [1], [0, 0, 1, 1], [], []>} : vector<16x32xf32>, vector<32x8xf32>, vector<16x8xf32> -> vector<16x8xf32>
    %cst_55 = arith.constant dense<0.000000e+00> : vector<16x8xf32>
    %103 = tpu.matmul %44, %99, %cst_55 {dimension_numbers = #tpu.dot_dimension_numbers<[1], [0], [0], [1], [0, 0, 1, 1], [], []>} : vector<16x32xf32>, vector<32x8xf32>, vector<16x8xf32> -> vector<16x8xf32>
    %cst_56 = arith.constant dense<0.000000e+00> : vector<16x8xf32>
    %104 = tpu.matmul %44, %101, %cst_56 {dimension_numbers = #tpu.dot_dimension_numbers<[1], [0], [0], [1], [0, 0, 1, 1], [], []>} : vector<16x32xf32>, vector<32x8xf32>, vector<16x8xf32> -> vector<16x8xf32>
    %cst_57 = arith.constant dense<0.000000e+00> : vector<16x16xf32>
    %105 = tpu.matmul %102, %103, %cst_57 {dimension_numbers = #tpu.dot_dimension_numbers<[1], [1], [0], [0], [0, 0, 1, 0], [], []>} : vector<16x8xf32>, vector<16x8xf32>, vector<16x16xf32> -> vector<16x16xf32>
    %106 = arith.addf %105, %14 : vector<16x16xf32>
    %cst_58 = arith.constant dense<0xFF800000> : vector<16xf32>
    %107 = vector.multi_reduction <maximumf>, %106, %cst_58 [1] : vector<16x16xf32> to vector<16xf32>
    %108 = vector.shape_cast %107 : vector<16xf32> to vector<16x1xf32>
    %109 = vector.broadcast %108 : vector<16x1xf32> to vector<16x16xf32>
    %110 = arith.subf %106, %109 : vector<16x16xf32>
    %111 = math.exp %110 : vector<16x16xf32>
    %cst_59 = arith.constant dense<0.000000e+00> : vector<16xf32>
    %112 = vector.multi_reduction <add>, %111, %cst_59 [1] : vector<16x16xf32> to vector<16xf32>
    %113 = vector.shape_cast %112 : vector<16xf32> to vector<16x1xf32>
    %114 = tpu.reciprocal %113 {approx = true} : vector<16x1xf32> -> vector<16x1xf32>
    %115 = vector.broadcast %114 : vector<16x1xf32> to vector<16x16xf32>
    %116 = arith.mulf %111, %115 : vector<16x16xf32>
    %cst_60 = arith.constant dense<0.000000e+00> : vector<16x8xf32>
    %117 = tpu.matmul %116, %104, %cst_60 {dimension_numbers = #tpu.dot_dimension_numbers<[1], [0], [0], [1], [0, 0, 1, 1], [], []>} : vector<16x16xf32>, vector<16x8xf32>, vector<16x8xf32> -> vector<16x8xf32>
    %c2_61 = arith.constant 2 : index
    %c0_62 = arith.constant 0 : index
    %c0_63 = arith.constant 0 : index
    %118 = vector.load %arg3[%c2_61, %c0_62, %c0_63] : memref<8x8x32xf32, #tpu.memory_space<vmem>>, vector<1x8x32xf32>
    %119 = vector.shape_cast %118 : vector<1x8x32xf32> to vector<8x32xf32>
    %cst_64 = arith.constant dense<0.000000e+00> : vector<16x32xf32>
    %120 = tpu.matmul %117, %119, %cst_64 {dimension_numbers = #tpu.dot_dimension_numbers<[1], [0], [0], [1], [0, 0, 1, 1], [], []>} : vector<16x8xf32>, vector<8x32xf32>, vector<16x32xf32> -> vector<16x32xf32>
    %121 = arith.addf %95, %120 : vector<16x32xf32>
    %c3 = arith.constant 3 : index
    %c0_65 = arith.constant 0 : index
    %c0_66 = arith.constant 0 : index
    %122 = vector.load %arg2[%c3, %c0_65, %c0_66] : memref<24x32x8xf32, #tpu.memory_space<vmem>>, vector<1x32x8xf32>
    %123 = vector.shape_cast %122 : vector<1x32x8xf32> to vector<32x8xf32>
    %c7 = arith.constant 7 : index
    %c0_67 = arith.constant 0 : index
    %c0_68 = arith.constant 0 : index
    %124 = vector.load %arg2[%c7, %c0_67, %c0_68] : memref<24x32x8xf32, #tpu.memory_space<vmem>>, vector<1x32x8xf32>
    %125 = vector.shape_cast %124 : vector<1x32x8xf32> to vector<32x8xf32>
    %c11 = arith.constant 11 : index
    %c0_69 = arith.constant 0 : index
    %c0_70 = arith.constant 0 : index
    %126 = vector.load %arg2[%c11, %c0_69, %c0_70] : memref<24x32x8xf32, #tpu.memory_space<vmem>>, vector<1x32x8xf32>
    %127 = vector.shape_cast %126 : vector<1x32x8xf32> to vector<32x8xf32>
    %cst_71 = arith.constant dense<0.000000e+00> : vector<16x8xf32>
    %128 = tpu.matmul %44, %123, %cst_71 {dimension_numbers = #tpu.dot_dimension_numbers<[1], [0], [0], [1], [0, 0, 1, 1], [], []>} : vector<16x32xf32>, vector<32x8xf32>, vector<16x8xf32> -> vector<16x8xf32>
    %cst_72 = arith.constant dense<0.000000e+00> : vector<16x8xf32>
    %129 = tpu.matmul %44, %125, %cst_72 {dimension_numbers = #tpu.dot_dimension_numbers<[1], [0], [0], [1], [0, 0, 1, 1], [], []>} : vector<16x32xf32>, vector<32x8xf32>, vector<16x8xf32> -> vector<16x8xf32>
    %cst_73 = arith.constant dense<0.000000e+00> : vector<16x8xf32>
    %130 = tpu.matmul %44, %127, %cst_73 {dimension_numbers = #tpu.dot_dimension_numbers<[1], [0], [0], [1], [0, 0, 1, 1], [], []>} : vector<16x32xf32>, vector<32x8xf32>, vector<16x8xf32> -> vector<16x8xf32>
    %cst_74 = arith.constant dense<0.000000e+00> : vector<16x16xf32>
    %131 = tpu.matmul %128, %129, %cst_74 {dimension_numbers = #tpu.dot_dimension_numbers<[1], [1], [0], [0], [0, 0, 1, 0], [], []>} : vector<16x8xf32>, vector<16x8xf32>, vector<16x16xf32> -> vector<16x16xf32>
    %132 = arith.addf %131, %14 : vector<16x16xf32>
    %cst_75 = arith.constant dense<0xFF800000> : vector<16xf32>
    %133 = vector.multi_reduction <maximumf>, %132, %cst_75 [1] : vector<16x16xf32> to vector<16xf32>
    %134 = vector.shape_cast %133 : vector<16xf32> to vector<16x1xf32>
    %135 = vector.broadcast %134 : vector<16x1xf32> to vector<16x16xf32>
    %136 = arith.subf %132, %135 : vector<16x16xf32>
    %137 = math.exp %136 : vector<16x16xf32>
    %cst_76 = arith.constant dense<0.000000e+00> : vector<16xf32>
    %138 = vector.multi_reduction <add>, %137, %cst_76 [1] : vector<16x16xf32> to vector<16xf32>
    %139 = vector.shape_cast %138 : vector<16xf32> to vector<16x1xf32>
    %140 = tpu.reciprocal %139 {approx = true} : vector<16x1xf32> -> vector<16x1xf32>
    %141 = vector.broadcast %140 : vector<16x1xf32> to vector<16x16xf32>
    %142 = arith.mulf %137, %141 : vector<16x16xf32>
    %cst_77 = arith.constant dense<0.000000e+00> : vector<16x8xf32>
    %143 = tpu.matmul %142, %130, %cst_77 {dimension_numbers = #tpu.dot_dimension_numbers<[1], [0], [0], [1], [0, 0, 1, 1], [], []>} : vector<16x16xf32>, vector<16x8xf32>, vector<16x8xf32> -> vector<16x8xf32>
    %c3_78 = arith.constant 3 : index
    %c0_79 = arith.constant 0 : index
    %c0_80 = arith.constant 0 : index
    %144 = vector.load %arg3[%c3_78, %c0_79, %c0_80] : memref<8x8x32xf32, #tpu.memory_space<vmem>>, vector<1x8x32xf32>
    %145 = vector.shape_cast %144 : vector<1x8x32xf32> to vector<8x32xf32>
    %cst_81 = arith.constant dense<0.000000e+00> : vector<16x32xf32>
    %146 = tpu.matmul %143, %145, %cst_81 {dimension_numbers = #tpu.dot_dimension_numbers<[1], [0], [0], [1], [0, 0, 1, 1], [], []>} : vector<16x8xf32>, vector<8x32xf32>, vector<16x32xf32> -> vector<16x32xf32>
    %147 = arith.addf %121, %146 : vector<16x32xf32>
    %148 = arith.addf %2, %147 : vector<16x32xf32>
    %149 = vector.broadcast %21 : vector<1x32xf32> to vector<16x32xf32>
    %150 = arith.addf %148, %149 : vector<16x32xf32>
    %cst_82 = arith.constant dense<0.000000e+00> : vector<16xf32>
    %151 = vector.multi_reduction <add>, %150, %cst_82 [1] : vector<16x32xf32> to vector<16xf32>
    %152 = vector.shape_cast %151 : vector<16xf32> to vector<16x1xf32>
    %cst_83 = arith.constant 3.200000e+01 : f32
    %153 = vector.broadcast %cst_83 : f32 to vector<16x1xf32>
    %154 = arith.divf %152, %153 : vector<16x1xf32>
    %155 = vector.broadcast %154 : vector<16x1xf32> to vector<16x32xf32>
    %156 = arith.subf %150, %155 : vector<16x32xf32>
    %157 = arith.mulf %156, %156 : vector<16x32xf32>
    %cst_84 = arith.constant dense<0.000000e+00> : vector<16xf32>
    %158 = vector.multi_reduction <add>, %157, %cst_84 [1] : vector<16x32xf32> to vector<16xf32>
    %159 = vector.shape_cast %158 : vector<16xf32> to vector<16x1xf32>
    %cst_85 = arith.constant 3.200000e+01 : f32
    %160 = vector.broadcast %cst_85 : f32 to vector<16x1xf32>
    %161 = arith.divf %159, %160 : vector<16x1xf32>
    %162 = vector.broadcast %154 : vector<16x1xf32> to vector<16x32xf32>
    %163 = arith.subf %150, %162 : vector<16x32xf32>
    %cst_86 = arith.constant 9.99999974E-6 : f32
    %164 = vector.broadcast %cst_86 : f32 to vector<16x1xf32>
    %165 = arith.addf %161, %164 : vector<16x1xf32>
    %166 = math.rsqrt %165 : vector<16x1xf32>
    %167 = vector.broadcast %166 : vector<16x1xf32> to vector<16x32xf32>
    %168 = arith.mulf %163, %167 : vector<16x32xf32>
    %169 = vector.broadcast %19 : vector<1x32xf32> to vector<16x32xf32>
    %170 = arith.mulf %168, %169 : vector<16x32xf32>
    %171 = vector.broadcast %20 : vector<1x32xf32> to vector<16x32xf32>
    %172 = arith.addf %170, %171 : vector<16x32xf32>
    %c0_87 = arith.constant 0 : index
    %c0_88 = arith.constant 0 : index
    %c0_89 = arith.constant 0 : index
    %173 = vector.load %arg4[%c0_87, %c0_88, %c0_89] : memref<2x32x64xf32, #tpu.memory_space<vmem>>, vector<1x32x64xf32>
    %174 = vector.shape_cast %173 : vector<1x32x64xf32> to vector<32x64xf32>
    %cst_90 = arith.constant dense<0.000000e+00> : vector<16x64xf32>
    %175 = tpu.matmul %172, %174, %cst_90 {dimension_numbers = #tpu.dot_dimension_numbers<[1], [0], [0], [1], [0, 0, 1, 1], [], []>} : vector<16x32xf32>, vector<32x64xf32>, vector<16x64xf32> -> vector<16x64xf32>
    %c0_91 = arith.constant 0 : index
    %c0_92 = arith.constant 0 : index
    %c0_93 = arith.constant 0 : index
    %176 = vector.load %arg5[%c0_91, %c0_92, %c0_93] : memref<2x1x64xf32, #tpu.memory_space<vmem>>, vector<1x1x64xf32>
    %177 = vector.shape_cast %176 : vector<1x1x64xf32> to vector<1x64xf32>
    %178 = vector.broadcast %177 : vector<1x64xf32> to vector<16x64xf32>
    %179 = arith.addf %175, %178 : vector<16x64xf32>
    %cst_94 = arith.constant 0.000000e+00 : f32
    %180 = vector.broadcast %cst_94 : f32 to vector<16x64xf32>
    %181 = arith.maximumf %179, %180 : vector<16x64xf32>
    %c0_95 = arith.constant 0 : index
    %c0_96 = arith.constant 0 : index
    %c0_97 = arith.constant 0 : index
    %182 = vector.load %arg6[%c0_95, %c0_96, %c0_97] : memref<2x64x32xf32, #tpu.memory_space<vmem>>, vector<1x64x32xf32>
    %183 = vector.shape_cast %182 : vector<1x64x32xf32> to vector<64x32xf32>
    %cst_98 = arith.constant dense<0.000000e+00> : vector<16x32xf32>
    %184 = tpu.matmul %181, %183, %cst_98 {dimension_numbers = #tpu.dot_dimension_numbers<[1], [0], [0], [1], [0, 0, 1, 1], [], []>} : vector<16x64xf32>, vector<64x32xf32>, vector<16x32xf32> -> vector<16x32xf32>
    %185 = vector.broadcast %22 : vector<1x32xf32> to vector<16x32xf32>
    %186 = arith.addf %184, %185 : vector<16x32xf32>
    %187 = arith.addf %150, %186 : vector<16x32xf32>
    %c1_99 = arith.constant 1 : index
    %c0_100 = arith.constant 0 : index
    %c0_101 = arith.constant 0 : index
    %188 = vector.load %arg7[%c1_99, %c0_100, %c0_101] : memref<2x8x32xf32, #tpu.memory_space<vmem>>, vector<1x8x32xf32>
    %189 = vector.shape_cast %188 : vector<1x8x32xf32> to vector<8x32xf32>
    %190 = vector.extract_strided_slice %189 {offsets = [0, 0], sizes = [1, 32], strides = [1, 1]} : vector<8x32xf32> to vector<1x32xf32>
    %191 = vector.extract_strided_slice %189 {offsets = [1, 0], sizes = [1, 32], strides = [1, 1]} : vector<8x32xf32> to vector<1x32xf32>
    %192 = vector.extract_strided_slice %189 {offsets = [2, 0], sizes = [1, 32], strides = [1, 1]} : vector<8x32xf32> to vector<1x32xf32>
    %193 = vector.extract_strided_slice %189 {offsets = [3, 0], sizes = [1, 32], strides = [1, 1]} : vector<8x32xf32> to vector<1x32xf32>
    %194 = vector.extract_strided_slice %189 {offsets = [4, 0], sizes = [1, 32], strides = [1, 1]} : vector<8x32xf32> to vector<1x32xf32>
    %195 = vector.extract_strided_slice %189 {offsets = [5, 0], sizes = [1, 32], strides = [1, 1]} : vector<8x32xf32> to vector<1x32xf32>
    %cst_102 = arith.constant dense<0.000000e+00> : vector<16xf32>
    %196 = vector.multi_reduction <add>, %187, %cst_102 [1] : vector<16x32xf32> to vector<16xf32>
    %197 = vector.shape_cast %196 : vector<16xf32> to vector<16x1xf32>
    %cst_103 = arith.constant 3.200000e+01 : f32
    %198 = vector.broadcast %cst_103 : f32 to vector<16x1xf32>
    %199 = arith.divf %197, %198 : vector<16x1xf32>
    %200 = vector.broadcast %199 : vector<16x1xf32> to vector<16x32xf32>
    %201 = arith.subf %187, %200 : vector<16x32xf32>
    %202 = arith.mulf %201, %201 : vector<16x32xf32>
    %cst_104 = arith.constant dense<0.000000e+00> : vector<16xf32>
    %203 = vector.multi_reduction <add>, %202, %cst_104 [1] : vector<16x32xf32> to vector<16xf32>
    %204 = vector.shape_cast %203 : vector<16xf32> to vector<16x1xf32>
    %cst_105 = arith.constant 3.200000e+01 : f32
    %205 = vector.broadcast %cst_105 : f32 to vector<16x1xf32>
    %206 = arith.divf %204, %205 : vector<16x1xf32>
    %207 = vector.broadcast %199 : vector<16x1xf32> to vector<16x32xf32>
    %208 = arith.subf %187, %207 : vector<16x32xf32>
    %cst_106 = arith.constant 9.99999974E-6 : f32
    %209 = vector.broadcast %cst_106 : f32 to vector<16x1xf32>
    %210 = arith.addf %206, %209 : vector<16x1xf32>
    %211 = math.rsqrt %210 : vector<16x1xf32>
    %212 = vector.broadcast %211 : vector<16x1xf32> to vector<16x32xf32>
    %213 = arith.mulf %208, %212 : vector<16x32xf32>
    %214 = vector.broadcast %190 : vector<1x32xf32> to vector<16x32xf32>
    %215 = arith.mulf %213, %214 : vector<16x32xf32>
    %216 = vector.broadcast %191 : vector<1x32xf32> to vector<16x32xf32>
    %217 = arith.addf %215, %216 : vector<16x32xf32>
    %c12 = arith.constant 12 : index
    %c0_107 = arith.constant 0 : index
    %c0_108 = arith.constant 0 : index
    %218 = vector.load %arg2[%c12, %c0_107, %c0_108] : memref<24x32x8xf32, #tpu.memory_space<vmem>>, vector<1x32x8xf32>
    %219 = vector.shape_cast %218 : vector<1x32x8xf32> to vector<32x8xf32>
    %c16 = arith.constant 16 : index
    %c0_109 = arith.constant 0 : index
    %c0_110 = arith.constant 0 : index
    %220 = vector.load %arg2[%c16, %c0_109, %c0_110] : memref<24x32x8xf32, #tpu.memory_space<vmem>>, vector<1x32x8xf32>
    %221 = vector.shape_cast %220 : vector<1x32x8xf32> to vector<32x8xf32>
    %c20 = arith.constant 20 : index
    %c0_111 = arith.constant 0 : index
    %c0_112 = arith.constant 0 : index
    %222 = vector.load %arg2[%c20, %c0_111, %c0_112] : memref<24x32x8xf32, #tpu.memory_space<vmem>>, vector<1x32x8xf32>
    %223 = vector.shape_cast %222 : vector<1x32x8xf32> to vector<32x8xf32>
    %cst_113 = arith.constant dense<0.000000e+00> : vector<16x8xf32>
    %224 = tpu.matmul %217, %219, %cst_113 {dimension_numbers = #tpu.dot_dimension_numbers<[1], [0], [0], [1], [0, 0, 1, 1], [], []>} : vector<16x32xf32>, vector<32x8xf32>, vector<16x8xf32> -> vector<16x8xf32>
    %cst_114 = arith.constant dense<0.000000e+00> : vector<16x8xf32>
    %225 = tpu.matmul %217, %221, %cst_114 {dimension_numbers = #tpu.dot_dimension_numbers<[1], [0], [0], [1], [0, 0, 1, 1], [], []>} : vector<16x32xf32>, vector<32x8xf32>, vector<16x8xf32> -> vector<16x8xf32>
    %cst_115 = arith.constant dense<0.000000e+00> : vector<16x8xf32>
    %226 = tpu.matmul %217, %223, %cst_115 {dimension_numbers = #tpu.dot_dimension_numbers<[1], [0], [0], [1], [0, 0, 1, 1], [], []>} : vector<16x32xf32>, vector<32x8xf32>, vector<16x8xf32> -> vector<16x8xf32>
    %cst_116 = arith.constant dense<0.000000e+00> : vector<16x16xf32>
    %227 = tpu.matmul %224, %225, %cst_116 {dimension_numbers = #tpu.dot_dimension_numbers<[1], [1], [0], [0], [0, 0, 1, 0], [], []>} : vector<16x8xf32>, vector<16x8xf32>, vector<16x16xf32> -> vector<16x16xf32>
    %228 = arith.addf %227, %14 : vector<16x16xf32>
    %cst_117 = arith.constant dense<0xFF800000> : vector<16xf32>
    %229 = vector.multi_reduction <maximumf>, %228, %cst_117 [1] : vector<16x16xf32> to vector<16xf32>
    %230 = vector.shape_cast %229 : vector<16xf32> to vector<16x1xf32>
    %231 = vector.broadcast %230 : vector<16x1xf32> to vector<16x16xf32>
    %232 = arith.subf %228, %231 : vector<16x16xf32>
    %233 = math.exp %232 : vector<16x16xf32>
    %cst_118 = arith.constant dense<0.000000e+00> : vector<16xf32>
    %234 = vector.multi_reduction <add>, %233, %cst_118 [1] : vector<16x16xf32> to vector<16xf32>
    %235 = vector.shape_cast %234 : vector<16xf32> to vector<16x1xf32>
    %236 = tpu.reciprocal %235 {approx = true} : vector<16x1xf32> -> vector<16x1xf32>
    %237 = vector.broadcast %236 : vector<16x1xf32> to vector<16x16xf32>
    %238 = arith.mulf %233, %237 : vector<16x16xf32>
    %cst_119 = arith.constant dense<0.000000e+00> : vector<16x8xf32>
    %239 = tpu.matmul %238, %226, %cst_119 {dimension_numbers = #tpu.dot_dimension_numbers<[1], [0], [0], [1], [0, 0, 1, 1], [], []>} : vector<16x16xf32>, vector<16x8xf32>, vector<16x8xf32> -> vector<16x8xf32>
    %c4_120 = arith.constant 4 : index
    %c0_121 = arith.constant 0 : index
    %c0_122 = arith.constant 0 : index
    %240 = vector.load %arg3[%c4_120, %c0_121, %c0_122] : memref<8x8x32xf32, #tpu.memory_space<vmem>>, vector<1x8x32xf32>
    %241 = vector.shape_cast %240 : vector<1x8x32xf32> to vector<8x32xf32>
    %cst_123 = arith.constant dense<0.000000e+00> : vector<16x32xf32>
    %242 = tpu.matmul %239, %241, %cst_123 {dimension_numbers = #tpu.dot_dimension_numbers<[1], [0], [0], [1], [0, 0, 1, 1], [], []>} : vector<16x8xf32>, vector<8x32xf32>, vector<16x32xf32> -> vector<16x32xf32>
    %c13 = arith.constant 13 : index
    %c0_124 = arith.constant 0 : index
    %c0_125 = arith.constant 0 : index
    %243 = vector.load %arg2[%c13, %c0_124, %c0_125] : memref<24x32x8xf32, #tpu.memory_space<vmem>>, vector<1x32x8xf32>
    %244 = vector.shape_cast %243 : vector<1x32x8xf32> to vector<32x8xf32>
    %c17 = arith.constant 17 : index
    %c0_126 = arith.constant 0 : index
    %c0_127 = arith.constant 0 : index
    %245 = vector.load %arg2[%c17, %c0_126, %c0_127] : memref<24x32x8xf32, #tpu.memory_space<vmem>>, vector<1x32x8xf32>
    %246 = vector.shape_cast %245 : vector<1x32x8xf32> to vector<32x8xf32>
    %c21 = arith.constant 21 : index
    %c0_128 = arith.constant 0 : index
    %c0_129 = arith.constant 0 : index
    %247 = vector.load %arg2[%c21, %c0_128, %c0_129] : memref<24x32x8xf32, #tpu.memory_space<vmem>>, vector<1x32x8xf32>
    %248 = vector.shape_cast %247 : vector<1x32x8xf32> to vector<32x8xf32>
    %cst_130 = arith.constant dense<0.000000e+00> : vector<16x8xf32>
    %249 = tpu.matmul %217, %244, %cst_130 {dimension_numbers = #tpu.dot_dimension_numbers<[1], [0], [0], [1], [0, 0, 1, 1], [], []>} : vector<16x32xf32>, vector<32x8xf32>, vector<16x8xf32> -> vector<16x8xf32>
    %cst_131 = arith.constant dense<0.000000e+00> : vector<16x8xf32>
    %250 = tpu.matmul %217, %246, %cst_131 {dimension_numbers = #tpu.dot_dimension_numbers<[1], [0], [0], [1], [0, 0, 1, 1], [], []>} : vector<16x32xf32>, vector<32x8xf32>, vector<16x8xf32> -> vector<16x8xf32>
    %cst_132 = arith.constant dense<0.000000e+00> : vector<16x8xf32>
    %251 = tpu.matmul %217, %248, %cst_132 {dimension_numbers = #tpu.dot_dimension_numbers<[1], [0], [0], [1], [0, 0, 1, 1], [], []>} : vector<16x32xf32>, vector<32x8xf32>, vector<16x8xf32> -> vector<16x8xf32>
    %cst_133 = arith.constant dense<0.000000e+00> : vector<16x16xf32>
    %252 = tpu.matmul %249, %250, %cst_133 {dimension_numbers = #tpu.dot_dimension_numbers<[1], [1], [0], [0], [0, 0, 1, 0], [], []>} : vector<16x8xf32>, vector<16x8xf32>, vector<16x16xf32> -> vector<16x16xf32>
    %253 = arith.addf %252, %14 : vector<16x16xf32>
    %cst_134 = arith.constant dense<0xFF800000> : vector<16xf32>
    %254 = vector.multi_reduction <maximumf>, %253, %cst_134 [1] : vector<16x16xf32> to vector<16xf32>
    %255 = vector.shape_cast %254 : vector<16xf32> to vector<16x1xf32>
    %256 = vector.broadcast %255 : vector<16x1xf32> to vector<16x16xf32>
    %257 = arith.subf %253, %256 : vector<16x16xf32>
    %258 = math.exp %257 : vector<16x16xf32>
    %cst_135 = arith.constant dense<0.000000e+00> : vector<16xf32>
    %259 = vector.multi_reduction <add>, %258, %cst_135 [1] : vector<16x16xf32> to vector<16xf32>
    %260 = vector.shape_cast %259 : vector<16xf32> to vector<16x1xf32>
    %261 = tpu.reciprocal %260 {approx = true} : vector<16x1xf32> -> vector<16x1xf32>
    %262 = vector.broadcast %261 : vector<16x1xf32> to vector<16x16xf32>
    %263 = arith.mulf %258, %262 : vector<16x16xf32>
    %cst_136 = arith.constant dense<0.000000e+00> : vector<16x8xf32>
    %264 = tpu.matmul %263, %251, %cst_136 {dimension_numbers = #tpu.dot_dimension_numbers<[1], [0], [0], [1], [0, 0, 1, 1], [], []>} : vector<16x16xf32>, vector<16x8xf32>, vector<16x8xf32> -> vector<16x8xf32>
    %c5_137 = arith.constant 5 : index
    %c0_138 = arith.constant 0 : index
    %c0_139 = arith.constant 0 : index
    %265 = vector.load %arg3[%c5_137, %c0_138, %c0_139] : memref<8x8x32xf32, #tpu.memory_space<vmem>>, vector<1x8x32xf32>
    %266 = vector.shape_cast %265 : vector<1x8x32xf32> to vector<8x32xf32>
    %cst_140 = arith.constant dense<0.000000e+00> : vector<16x32xf32>
    %267 = tpu.matmul %264, %266, %cst_140 {dimension_numbers = #tpu.dot_dimension_numbers<[1], [0], [0], [1], [0, 0, 1, 1], [], []>} : vector<16x8xf32>, vector<8x32xf32>, vector<16x32xf32> -> vector<16x32xf32>
    %268 = arith.addf %242, %267 : vector<16x32xf32>
    %c14 = arith.constant 14 : index
    %c0_141 = arith.constant 0 : index
    %c0_142 = arith.constant 0 : index
    %269 = vector.load %arg2[%c14, %c0_141, %c0_142] : memref<24x32x8xf32, #tpu.memory_space<vmem>>, vector<1x32x8xf32>
    %270 = vector.shape_cast %269 : vector<1x32x8xf32> to vector<32x8xf32>
    %c18 = arith.constant 18 : index
    %c0_143 = arith.constant 0 : index
    %c0_144 = arith.constant 0 : index
    %271 = vector.load %arg2[%c18, %c0_143, %c0_144] : memref<24x32x8xf32, #tpu.memory_space<vmem>>, vector<1x32x8xf32>
    %272 = vector.shape_cast %271 : vector<1x32x8xf32> to vector<32x8xf32>
    %c22 = arith.constant 22 : index
    %c0_145 = arith.constant 0 : index
    %c0_146 = arith.constant 0 : index
    %273 = vector.load %arg2[%c22, %c0_145, %c0_146] : memref<24x32x8xf32, #tpu.memory_space<vmem>>, vector<1x32x8xf32>
    %274 = vector.shape_cast %273 : vector<1x32x8xf32> to vector<32x8xf32>
    %cst_147 = arith.constant dense<0.000000e+00> : vector<16x8xf32>
    %275 = tpu.matmul %217, %270, %cst_147 {dimension_numbers = #tpu.dot_dimension_numbers<[1], [0], [0], [1], [0, 0, 1, 1], [], []>} : vector<16x32xf32>, vector<32x8xf32>, vector<16x8xf32> -> vector<16x8xf32>
    %cst_148 = arith.constant dense<0.000000e+00> : vector<16x8xf32>
    %276 = tpu.matmul %217, %272, %cst_148 {dimension_numbers = #tpu.dot_dimension_numbers<[1], [0], [0], [1], [0, 0, 1, 1], [], []>} : vector<16x32xf32>, vector<32x8xf32>, vector<16x8xf32> -> vector<16x8xf32>
    %cst_149 = arith.constant dense<0.000000e+00> : vector<16x8xf32>
    %277 = tpu.matmul %217, %274, %cst_149 {dimension_numbers = #tpu.dot_dimension_numbers<[1], [0], [0], [1], [0, 0, 1, 1], [], []>} : vector<16x32xf32>, vector<32x8xf32>, vector<16x8xf32> -> vector<16x8xf32>
    %cst_150 = arith.constant dense<0.000000e+00> : vector<16x16xf32>
    %278 = tpu.matmul %275, %276, %cst_150 {dimension_numbers = #tpu.dot_dimension_numbers<[1], [1], [0], [0], [0, 0, 1, 0], [], []>} : vector<16x8xf32>, vector<16x8xf32>, vector<16x16xf32> -> vector<16x16xf32>
    %279 = arith.addf %278, %14 : vector<16x16xf32>
    %cst_151 = arith.constant dense<0xFF800000> : vector<16xf32>
    %280 = vector.multi_reduction <maximumf>, %279, %cst_151 [1] : vector<16x16xf32> to vector<16xf32>
    %281 = vector.shape_cast %280 : vector<16xf32> to vector<16x1xf32>
    %282 = vector.broadcast %281 : vector<16x1xf32> to vector<16x16xf32>
    %283 = arith.subf %279, %282 : vector<16x16xf32>
    %284 = math.exp %283 : vector<16x16xf32>
    %cst_152 = arith.constant dense<0.000000e+00> : vector<16xf32>
    %285 = vector.multi_reduction <add>, %284, %cst_152 [1] : vector<16x16xf32> to vector<16xf32>
    %286 = vector.shape_cast %285 : vector<16xf32> to vector<16x1xf32>
    %287 = tpu.reciprocal %286 {approx = true} : vector<16x1xf32> -> vector<16x1xf32>
    %288 = vector.broadcast %287 : vector<16x1xf32> to vector<16x16xf32>
    %289 = arith.mulf %284, %288 : vector<16x16xf32>
    %cst_153 = arith.constant dense<0.000000e+00> : vector<16x8xf32>
    %290 = tpu.matmul %289, %277, %cst_153 {dimension_numbers = #tpu.dot_dimension_numbers<[1], [0], [0], [1], [0, 0, 1, 1], [], []>} : vector<16x16xf32>, vector<16x8xf32>, vector<16x8xf32> -> vector<16x8xf32>
    %c6_154 = arith.constant 6 : index
    %c0_155 = arith.constant 0 : index
    %c0_156 = arith.constant 0 : index
    %291 = vector.load %arg3[%c6_154, %c0_155, %c0_156] : memref<8x8x32xf32, #tpu.memory_space<vmem>>, vector<1x8x32xf32>
    %292 = vector.shape_cast %291 : vector<1x8x32xf32> to vector<8x32xf32>
    %cst_157 = arith.constant dense<0.000000e+00> : vector<16x32xf32>
    %293 = tpu.matmul %290, %292, %cst_157 {dimension_numbers = #tpu.dot_dimension_numbers<[1], [0], [0], [1], [0, 0, 1, 1], [], []>} : vector<16x8xf32>, vector<8x32xf32>, vector<16x32xf32> -> vector<16x32xf32>
    %294 = arith.addf %268, %293 : vector<16x32xf32>
    %c15 = arith.constant 15 : index
    %c0_158 = arith.constant 0 : index
    %c0_159 = arith.constant 0 : index
    %295 = vector.load %arg2[%c15, %c0_158, %c0_159] : memref<24x32x8xf32, #tpu.memory_space<vmem>>, vector<1x32x8xf32>
    %296 = vector.shape_cast %295 : vector<1x32x8xf32> to vector<32x8xf32>
    %c19 = arith.constant 19 : index
    %c0_160 = arith.constant 0 : index
    %c0_161 = arith.constant 0 : index
    %297 = vector.load %arg2[%c19, %c0_160, %c0_161] : memref<24x32x8xf32, #tpu.memory_space<vmem>>, vector<1x32x8xf32>
    %298 = vector.shape_cast %297 : vector<1x32x8xf32> to vector<32x8xf32>
    %c23 = arith.constant 23 : index
    %c0_162 = arith.constant 0 : index
    %c0_163 = arith.constant 0 : index
    %299 = vector.load %arg2[%c23, %c0_162, %c0_163] : memref<24x32x8xf32, #tpu.memory_space<vmem>>, vector<1x32x8xf32>
    %300 = vector.shape_cast %299 : vector<1x32x8xf32> to vector<32x8xf32>
    %cst_164 = arith.constant dense<0.000000e+00> : vector<16x8xf32>
    %301 = tpu.matmul %217, %296, %cst_164 {dimension_numbers = #tpu.dot_dimension_numbers<[1], [0], [0], [1], [0, 0, 1, 1], [], []>} : vector<16x32xf32>, vector<32x8xf32>, vector<16x8xf32> -> vector<16x8xf32>
    %cst_165 = arith.constant dense<0.000000e+00> : vector<16x8xf32>
    %302 = tpu.matmul %217, %298, %cst_165 {dimension_numbers = #tpu.dot_dimension_numbers<[1], [0], [0], [1], [0, 0, 1, 1], [], []>} : vector<16x32xf32>, vector<32x8xf32>, vector<16x8xf32> -> vector<16x8xf32>
    %cst_166 = arith.constant dense<0.000000e+00> : vector<16x8xf32>
    %303 = tpu.matmul %217, %300, %cst_166 {dimension_numbers = #tpu.dot_dimension_numbers<[1], [0], [0], [1], [0, 0, 1, 1], [], []>} : vector<16x32xf32>, vector<32x8xf32>, vector<16x8xf32> -> vector<16x8xf32>
    %cst_167 = arith.constant dense<0.000000e+00> : vector<16x16xf32>
    %304 = tpu.matmul %301, %302, %cst_167 {dimension_numbers = #tpu.dot_dimension_numbers<[1], [1], [0], [0], [0, 0, 1, 0], [], []>} : vector<16x8xf32>, vector<16x8xf32>, vector<16x16xf32> -> vector<16x16xf32>
    %305 = arith.addf %304, %14 : vector<16x16xf32>
    %cst_168 = arith.constant dense<0xFF800000> : vector<16xf32>
    %306 = vector.multi_reduction <maximumf>, %305, %cst_168 [1] : vector<16x16xf32> to vector<16xf32>
    %307 = vector.shape_cast %306 : vector<16xf32> to vector<16x1xf32>
    %308 = vector.broadcast %307 : vector<16x1xf32> to vector<16x16xf32>
    %309 = arith.subf %305, %308 : vector<16x16xf32>
    %310 = math.exp %309 : vector<16x16xf32>
    %cst_169 = arith.constant dense<0.000000e+00> : vector<16xf32>
    %311 = vector.multi_reduction <add>, %310, %cst_169 [1] : vector<16x16xf32> to vector<16xf32>
    %312 = vector.shape_cast %311 : vector<16xf32> to vector<16x1xf32>
    %313 = tpu.reciprocal %312 {approx = true} : vector<16x1xf32> -> vector<16x1xf32>
    %314 = vector.broadcast %313 : vector<16x1xf32> to vector<16x16xf32>
    %315 = arith.mulf %310, %314 : vector<16x16xf32>
    %cst_170 = arith.constant dense<0.000000e+00> : vector<16x8xf32>
    %316 = tpu.matmul %315, %303, %cst_170 {dimension_numbers = #tpu.dot_dimension_numbers<[1], [0], [0], [1], [0, 0, 1, 1], [], []>} : vector<16x16xf32>, vector<16x8xf32>, vector<16x8xf32> -> vector<16x8xf32>
    %c7_171 = arith.constant 7 : index
    %c0_172 = arith.constant 0 : index
    %c0_173 = arith.constant 0 : index
    %317 = vector.load %arg3[%c7_171, %c0_172, %c0_173] : memref<8x8x32xf32, #tpu.memory_space<vmem>>, vector<1x8x32xf32>
    %318 = vector.shape_cast %317 : vector<1x8x32xf32> to vector<8x32xf32>
    %cst_174 = arith.constant dense<0.000000e+00> : vector<16x32xf32>
    %319 = tpu.matmul %316, %318, %cst_174 {dimension_numbers = #tpu.dot_dimension_numbers<[1], [0], [0], [1], [0, 0, 1, 1], [], []>} : vector<16x8xf32>, vector<8x32xf32>, vector<16x32xf32> -> vector<16x32xf32>
    %320 = arith.addf %294, %319 : vector<16x32xf32>
    %321 = arith.addf %187, %320 : vector<16x32xf32>
    %322 = vector.broadcast %194 : vector<1x32xf32> to vector<16x32xf32>
    %323 = arith.addf %321, %322 : vector<16x32xf32>
    %cst_175 = arith.constant dense<0.000000e+00> : vector<16xf32>
    %324 = vector.multi_reduction <add>, %323, %cst_175 [1] : vector<16x32xf32> to vector<16xf32>
    %325 = vector.shape_cast %324 : vector<16xf32> to vector<16x1xf32>
    %cst_176 = arith.constant 3.200000e+01 : f32
    %326 = vector.broadcast %cst_176 : f32 to vector<16x1xf32>
    %327 = arith.divf %325, %326 : vector<16x1xf32>
    %328 = vector.broadcast %327 : vector<16x1xf32> to vector<16x32xf32>
    %329 = arith.subf %323, %328 : vector<16x32xf32>
    %330 = arith.mulf %329, %329 : vector<16x32xf32>
    %cst_177 = arith.constant dense<0.000000e+00> : vector<16xf32>
    %331 = vector.multi_reduction <add>, %330, %cst_177 [1] : vector<16x32xf32> to vector<16xf32>
    %332 = vector.shape_cast %331 : vector<16xf32> to vector<16x1xf32>
    %cst_178 = arith.constant 3.200000e+01 : f32
    %333 = vector.broadcast %cst_178 : f32 to vector<16x1xf32>
    %334 = arith.divf %332, %333 : vector<16x1xf32>
    %335 = vector.broadcast %327 : vector<16x1xf32> to vector<16x32xf32>
    %336 = arith.subf %323, %335 : vector<16x32xf32>
    %cst_179 = arith.constant 9.99999974E-6 : f32
    %337 = vector.broadcast %cst_179 : f32 to vector<16x1xf32>
    %338 = arith.addf %334, %337 : vector<16x1xf32>
    %339 = math.rsqrt %338 : vector<16x1xf32>
    %340 = vector.broadcast %339 : vector<16x1xf32> to vector<16x32xf32>
    %341 = arith.mulf %336, %340 : vector<16x32xf32>
    %342 = vector.broadcast %192 : vector<1x32xf32> to vector<16x32xf32>
    %343 = arith.mulf %341, %342 : vector<16x32xf32>
    %344 = vector.broadcast %193 : vector<1x32xf32> to vector<16x32xf32>
    %345 = arith.addf %343, %344 : vector<16x32xf32>
    %c1_180 = arith.constant 1 : index
    %c0_181 = arith.constant 0 : index
    %c0_182 = arith.constant 0 : index
    %346 = vector.load %arg4[%c1_180, %c0_181, %c0_182] : memref<2x32x64xf32, #tpu.memory_space<vmem>>, vector<1x32x64xf32>
    %347 = vector.shape_cast %346 : vector<1x32x64xf32> to vector<32x64xf32>
    %cst_183 = arith.constant dense<0.000000e+00> : vector<16x64xf32>
    %348 = tpu.matmul %345, %347, %cst_183 {dimension_numbers = #tpu.dot_dimension_numbers<[1], [0], [0], [1], [0, 0, 1, 1], [], []>} : vector<16x32xf32>, vector<32x64xf32>, vector<16x64xf32> -> vector<16x64xf32>
    %c1_184 = arith.constant 1 : index
    %c0_185 = arith.constant 0 : index
    %c0_186 = arith.constant 0 : index
    %349 = vector.load %arg5[%c1_184, %c0_185, %c0_186] : memref<2x1x64xf32, #tpu.memory_space<vmem>>, vector<1x1x64xf32>
    %350 = vector.shape_cast %349 : vector<1x1x64xf32> to vector<1x64xf32>
    %351 = vector.broadcast %350 : vector<1x64xf32> to vector<16x64xf32>
    %352 = arith.addf %348, %351 : vector<16x64xf32>
    %cst_187 = arith.constant 0.000000e+00 : f32
    %353 = vector.broadcast %cst_187 : f32 to vector<16x64xf32>
    %354 = arith.maximumf %352, %353 : vector<16x64xf32>
    %c1_188 = arith.constant 1 : index
    %c0_189 = arith.constant 0 : index
    %c0_190 = arith.constant 0 : index
    %355 = vector.load %arg6[%c1_188, %c0_189, %c0_190] : memref<2x64x32xf32, #tpu.memory_space<vmem>>, vector<1x64x32xf32>
    %356 = vector.shape_cast %355 : vector<1x64x32xf32> to vector<64x32xf32>
    %cst_191 = arith.constant dense<0.000000e+00> : vector<16x32xf32>
    %357 = tpu.matmul %354, %356, %cst_191 {dimension_numbers = #tpu.dot_dimension_numbers<[1], [0], [0], [1], [0, 0, 1, 1], [], []>} : vector<16x64xf32>, vector<64x32xf32>, vector<16x32xf32> -> vector<16x32xf32>
    %358 = vector.broadcast %195 : vector<1x32xf32> to vector<16x32xf32>
    %359 = arith.addf %357, %358 : vector<16x32xf32>
    %360 = arith.addf %323, %359 : vector<16x32xf32>
    %c0_192 = arith.constant 0 : index
    %c0_193 = arith.constant 0 : index
    %361 = vector.load %arg8[%c0_192, %c0_193] : memref<16x32xf32, #tpu.memory_space<vmem>>, vector<16x32xf32>
    tpu.vector_store %arg8[%c0_192, %c0_193], %360 {strides = array<i32>} : memref<16x32xf32, #tpu.memory_space<vmem>>, vector<16x32xf32>,
    return
  }
}

</mosaic_0001>

<llo_original>
// kernel: transformer_forward.1
$region0: #{transformer_forward.1}
  #allocation0 [shape = 'u32[]', space=smem, size = 0x4, offset = 0x4, fixed_abs, tag = 'smem constant byte address 0x4 - core index']
  #allocation1 [shape = 'u32[144,128]{1,0:T(1,128)}', space=vmem, size = 0x12000, scoped, tag = 'internal scratch']
  %s0 = inlined_call_operand.hbm [shape: f32[16,32], index: 0, kind: input, shape index: {}]
  %s1 = inlined_call_operand.vmem [shape: f32[16,32], index: 1, kind: input, shape index: {}]
  %s2 = inlined_call_operand.vmem [shape: f32[24,32,8], index: 2, kind: input, shape index: {}]
  %s3 = inlined_call_operand.hbm [shape: f32[8,8,32], index: 3, kind: input, shape index: {}]
  %s4 = inlined_call_operand.hbm [shape: f32[2,32,64], index: 4, kind: input, shape index: {}]
  %s5 = inlined_call_operand.hbm [shape: f32[2,1,64], index: 5, kind: input, shape index: {}]
  %s6 = inlined_call_operand.vmem [shape: f32[2,64,32], index: 6, kind: input, shape index: {}]
  %s7 = inlined_call_operand.hbm [shape: f32[2,8,32], index: 7, kind: input, shape index: {}]
  %s8 = inlined_call_operand.hbm [shape: f32[16,32], index: 8, kind: output, shape index: {}]
  %s9 = sld [smem:[#allocation0]]
  $region62: #{transformer_forward.1} parent=0
    _
  %s11 = ssub.s32 1, %s9
  %s12 = scalar_select 0, %s11, %s9
  $region1: #{transformer_forward.1} parent=0
    #allocation2 [shape = 'u8[8192]{0}', space=vmem, size = 0x2000, scoped, tag = 'input window, operand 0, single buffered']
    #allocation3 [shape = 's32[1]{0}', space=sflag, size = 0x4, scoped, tag = 'scoped memory for transformer_forward.1']
    #allocation4 [shape = 's32[1]{0}', space=sflag, size = 0x4, scoped, tag = 'scoped memory for transformer_forward.1']
    #allocation5 [shape = 'u8[32768]{0}', space=vmem, size = 0x8000, scoped, tag = 'input window, operand 3, single buffered']
    #allocation6 [shape = 's32[1]{0}', space=sflag, size = 0x4, scoped, tag = 'scoped memory for transformer_forward.1']
    #allocation7 [shape = 'u8[32768]{0}', space=vmem, size = 0x8000, scoped, tag = 'input window, operand 4, single buffered']
    #allocation8 [shape = 'u8[1024]{0}', space=vmem, size = 0x400, scoped, tag = 'input window, operand 5, single buffered']
    #allocation9 [shape = 's32[1]{0}', space=sflag, size = 0x4, scoped, tag = 'scoped memory for transformer_forward.1']
    #allocation10 [shape = 'u8[8192]{0}', space=vmem, size = 0x2000, scoped, tag = 'input window, operand 7, single buffered']
    #allocation11 [shape = 'u8[8192]{0}', space=vmem, size = 0x2000, scoped, tag = 'output window, operand 0, single buffered']
    %13 = vsyncpa [#allocation3], 0
    %14 = vsyncpa [#allocation6], 0
    %15 = vsyncpa [#allocation9], 0
    %16 = vsyncpa [#allocation4], 0
    // Predicated region
    $region2: #{transformer_forward.1} parent=1 // pred_check
      _
    $region3: #{transformer_forward.1} parent=1 // pred_check_branch
      %18 = sbr.rel (0) target = $region5
    $region4: #{transformer_forward.1} parent=1 // pred_region
      %s20 = ssub.s32 256, 256
      %21 = vsyncadd [#allocation3], %s20
      %s22 = sshll.u32 [#allocation2], 4
      %s23 = int_to_ptr.vmem [resolvable:$true] %s22
      %28 = dma.hbm_to_vmem [thread:$0]  %s0, 256, %s23, [#allocation3], 128, 128, 8
    $region5: #{transformer_forward.1} parent=1 // pred_fallthru
      _
    // Predicated region
    $region6: #{transformer_forward.1} parent=1 // pred_check
      _
    $region7: #{transformer_forward.1} parent=1 // pred_check_branch
      %30 = sbr.rel (0) target = $region9
    $region8: #{transformer_forward.1} parent=1 // pred_region
      _
    $region9: #{transformer_forward.1} parent=1 // pred_fallthru
      _
    // Predicated region
    $region10: #{transformer_forward.1} parent=1 // pred_check
      _
    $region11: #{transformer_forward.1} parent=1 // pred_check_branch
      %32 = sbr.rel (0) target = $region13
    $region12: #{transformer_forward.1} parent=1 // pred_region
      _
    $region13: #{transformer_forward.1} parent=1 // pred_fallthru
      _
    // Predicated region
    $region14: #{transformer_forward.1} parent=1 // pred_check
      _
    $region15: #{transformer_forward.1} parent=1 // pred_check_branch
      %34 = sbr.rel (0) target = $region17
    $region16: #{transformer_forward.1} parent=1 // pred_region
      %s36 = ssub.s32 1024, 1024
      %37 = vsyncadd [#allocation6], %s36
      %s38 = sshll.u32 [#allocation5], 4
      %s39 = int_to_ptr.vmem [resolvable:$true] %s38
      %44 = dma.hbm_to_vmem [thread:$0]  %s3, 1024, %s39, [#allocation6], 128, 128, 8
    $region17: #{transformer_forward.1} parent=1 // pred_fallthru
      _
    // Predicated region
    $region18: #{transformer_forward.1} parent=1 // pred_check
      _
    $region19: #{transformer_forward.1} parent=1 // pred_check_branch
      %46 = sbr.rel (0) target = $region21
    $region20: #{transformer_forward.1} parent=1 // pred_region
      %s48 = ssub.s32 1024, 1024
      %49 = vsyncadd [#allocation6], %s48
      %s50 = sshll.u32 [#allocation7], 4
      %s51 = int_to_ptr.vmem [resolvable:$true] %s50
      %56 = dma.hbm_to_vmem [thread:$0]  %s4, 1024, %s51, [#allocation6], 128, 128, 8
    $region21: #{transformer_forward.1} parent=1 // pred_fallthru
      _
    // Predicated region
    $region22: #{transformer_forward.1} parent=1 // pred_check
      _
    $region23: #{transformer_forward.1} parent=1 // pred_check_branch
      %58 = sbr.rel (0) target = $region25
    $region24: #{transformer_forward.1} parent=1 // pred_region
      %s60 = ssub.s32 32, 32
      %61 = vsyncadd [#allocation9], %s60
      %s62 = sshll.u32 [#allocation8], 4
      %s63 = int_to_ptr.vmem [resolvable:$true] %s62
      %68 = dma.hbm_to_vmem [thread:$0]  %s5, 32, %s63, [#allocation9], 16, 16, 1
    $region25: #{transformer_forward.1} parent=1 // pred_fallthru
      _
    // Predicated region
    $region26: #{transformer_forward.1} parent=1 // pred_check
      _
    $region27: #{transformer_forward.1} parent=1 // pred_check_branch
      %70 = sbr.rel (0) target = $region29
    $region28: #{transformer_forward.1} parent=1 // pred_region
      _
    $region29: #{transformer_forward.1} parent=1 // pred_fallthru
      _
    // Predicated region
    $region30: #{transformer_forward.1} parent=1 // pred_check
      _
    $region31: #{transformer_forward.1} parent=1 // pred_check_branch
      %72 = sbr.rel (0) target = $region33
    $region32: #{transformer_forward.1} parent=1 // pred_region
      %s74 = ssub.s32 256, 256
      %75 = vsyncadd [#allocation9], %s74
      %s76 = sshll.u32 [#allocation10], 4
      %s77 = int_to_ptr.vmem [resolvable:$true] %s76
      %82 = dma.hbm_to_vmem [thread:$0]  %s7, 256, %s77, [#allocation9], 128, 128, 8
    $region33: #{transformer_forward.1} parent=1 // pred_fallthru
      _
    // Predicated region
    $region34: #{transformer_forward.1} parent=1 // pred_check
      _
    $region35: #{transformer_forward.1} parent=1 // pred_check_branch
      %84 = sbr.rel (0) target = $region37
    $region36: #{transformer_forward.1} parent=1 // pred_region
      %85 = dma.done [#allocation3], 256
    $region37: #{transformer_forward.1} parent=1 // pred_fallthru
      _
    // Predicated region
    $region38: #{transformer_forward.1} parent=1 // pred_check
      _
    $region39: #{transformer_forward.1} parent=1 // pred_check_branch
      %87 = sbr.rel (0) target = $region41
    $region40: #{transformer_forward.1} parent=1 // pred_region
      %88 = dma.done [#allocation6], 1024
    $region41: #{transformer_forward.1} parent=1 // pred_fallthru
      _
    // Predicated region
    $region42: #{transformer_forward.1} parent=1 // pred_check
      _
    $region43: #{transformer_forward.1} parent=1 // pred_check_branch
      %90 = sbr.rel (0) target = $region45
    $region44: #{transformer_forward.1} parent=1 // pred_region
      %91 = dma.done [#allocation6], 1024
    $region45: #{transformer_forward.1} parent=1 // pred_fallthru
      _
    // Predicated region
    $region46: #{transformer_forward.1} parent=1 // pred_check
      _
    $region47: #{transformer_forward.1} parent=1 // pred_check_branch
      %93 = sbr.rel (0) target = $region49
    $region48: #{transformer_forward.1} parent=1 // pred_region
      %94 = dma.done [#allocation9], 32
    $region49: #{transformer_forward.1} parent=1 // pred_fallthru
      _
    // Predicated region
    $region50: #{transformer_forward.1} parent=1 // pred_check
      _
    $region51: #{transformer_forward.1} parent=1 // pred_check_branch
      %96 = sbr.rel (0) target = $region53
    $region52: #{transformer_forward.1} parent=1 // pred_region
      %97 = dma.done [#allocation9], 256
    $region53: #{transformer_forward.1} parent=1 // pred_fallthru
      _
    %v98 = vld [vmem:[#allocation2] sm:$0xff]
    %v99 = vld [vmem:[#allocation2 + $0x8] sm:$0xff]
    %v100 = vld [vmem:[%s1] sm:$0xff]
    %v101 = vld [vmem:[%s1 + $0x8] sm:$0xff]
    %v102 = vadd.f32 %v98, %v100
    %v103 = vadd.f32 %v99, %v101
    %v104 = vlaneseq
    %v105 = vshrl.u32 %v104, 7
    %v106 = vadd.s32 %v105, 8
    %v107 = vlaneseq
    %v108 = vand.u32 %v107, 127
    %v109 = vshra.s32 %v105, 3
    %v110 = vshra.s32 %v106, 3
    %v111 = vshra.s32 %v108, 3
    %vm112 = vcmp.eq.s32.totalorder %v109, %v111
    %vm113 = vcmp.eq.s32.totalorder %v110, %v111
    %vm114 = vcmp.le.s32.totalorder %v108, %v105
    %vm115 = vcmp.le.s32.totalorder %v108, %v106
    %vm116 = vmand %vm112, %vm114
    %vm117 = vmand %vm113, %vm115
    %v118 = vsel %vm116, 0.0, -1e+09
    %v119 = vsel %vm117, 0.0, -1e+09
    %v120 = vld [vmem:[#allocation10] sm:$0xff]
    %vm121 = vcmask 261120
    %v122 = vsel %vm121, %v102, 0.0
    %123 = vadd.xlane.f32.xlu0 %v122
    %v124 = vpop.xlane.xlu0 %123
    %v125 = vsel %vm121, %v103, 0.0
    %126 = vadd.xlane.f32.xlu0 %v125
    %v127 = vpop.xlane.xlu0 %126
    %v128 = vrcp.pop 32.0
    %v129 = vmul.f32 %v124, %v128
    %v130 = vmul.f32 %v127, %v128
    %v131 = vsub.f32 %v102, %v129
    %v132 = vsub.f32 %v103, %v130
    %v133 = vmul.f32 %v131, %v131
    %v134 = vmul.f32 %v132, %v132
    %v135 = vsel %vm121, %v133, 0.0
    %136 = vadd.xlane.f32.xlu0 %v135
    %v137 = vpop.xlane.xlu0 %136
    %v138 = vsel %vm121, %v134, 0.0
    %139 = vadd.xlane.f32.xlu0 %v138
    %v140 = vpop.xlane.xlu0 %139
    %v141 = vmul.f32 %v137, %v128
    %v142 = vmul.f32 %v140, %v128
    %v143 = vadd.f32 %v141, 1e-05
    %v144 = vadd.f32 %v142, 1e-05
    %v145 = vrsqrt.pop %v143
    %v146 = vrsqrt.pop %v144
    %v147 = vmul.f32 %v131, %v145
    %v148 = vmul.f32 %v132, %v146
    %v149 = vlaneseq
    %v150 = vshrl.u32 %v149, 7
    %v151 = vsub.s32 0, %v150
    %v152 = vrot.slane %v120, %v151
    %v153 = vmul.f32 %v147, %v152
    %v154 = vmul.f32 %v148, %v152
    %v155 = vlaneseq
    %v156 = vshrl.u32 %v155, 7
    %v157 = vsub.s32 1, %v156
    %v158 = vrot.slane %v120, %v157
    %v159 = vadd.f32 %v153, %v158
    %v160 = vadd.f32 %v154, %v158
    %v161 = vld [vmem:[%s2] sm:$0xff]
    %v162 = vld [vmem:[%s2 + $0x8] sm:$0xff]
    %v163 = vld [vmem:[%s2 + $0x10] sm:$0xff]
    %v164 = vld [vmem:[%s2 + $0x18] sm:$0xff]
    %s165 = scalar_lea.vmem %s2, 128
    %v166 = vld [vmem:[%s165] sm:$0xff]
    %v167 = vld [vmem:[%s165 + $0x8] sm:$0xff]
    %v168 = vld [vmem:[%s165 + $0x10] sm:$0xff]
    %v169 = vld [vmem:[%s165 + $0x18] sm:$0xff]
    %s170 = scalar_lea.vmem %s2, 256
    %v171 = vld [vmem:[%s170] sm:$0xff]
    %v172 = vld [vmem:[%s170 + $0x8] sm:$0xff]
    %v173 = vld [vmem:[%s170 + $0x10] sm:$0xff]
    %v174 = vld [vmem:[%s170 + $0x18] sm:$0xff]
    %v176 = vsel %vm121, %v159, 0
    %v179 = vsel %vm121, %v160, 0
    %181 = vmatprep.subr.mxu0 0.0
    %182 = vmatpush1.msra.mxu0 0.0
    %183 = vmatprep.subr.mxu0 0.0
    %184 = vmatpush1.msra.mxu0 0.0
    %185 = vmatprep.subr.mxu0 0.0
    %186 = vmatpush1.msra.mxu0 0.0
    %187 = vmatprep.subr.mxu0 0.0
    %188 = vmatpush1.msra.mxu0 0.0
    %189 = vmatprep.subr.mxu0 0.0
    %190 = vmatpush1.msra.mxu0 0.0
    %191 = vmatprep.subr.mxu0 0.0
    %192 = vmatpush1.msra.mxu0 0.0
    %193 = vmatprep.subr.mxu0 0.0
    %194 = vmatpush1.msra.mxu0 0.0
    %195 = vmatprep.subr.mxu0 0.0
    %196 = vmatpush1.msra.mxu0 0.0
    %197 = vmatprep.subr.mxu0 0.0
    %198 = vmatpush1.msra.mxu0 0.0
    %199 = vmatprep.subr.mxu0 0.0
    %200 = vmatpush1.msra.mxu0 0.0
    %201 = vmatprep.subr.mxu0 0.0
    %202 = vmatpush1.msra.mxu0 0.0
    %203 = vmatprep.subr.mxu0 0.0
    %204 = vmatpush1.msra.mxu0 0.0
    %205 = vmatprep.subr.mxu0 0.0
    %206 = vmatpush1.msra.mxu0 %v164
    %207 = vmatprep.subr.mxu0 0.0
    %208 = vmatpush1.msra.mxu0 %v163
    %209 = vmatprep.subr.mxu0 0.0
    %210 = vmatpush1.msra.mxu0 %v162
    %211 = vmatprep.subr.mxu0 0.0
    %212 = vmatpush1.msra.mxu0 %v161
    %213 = vmatprep.subr.mxu0 0.0
    %214 = vmatpush2.msra.mxu0 0.0
    %215 = vmatprep.subr.mxu0 0.0
    %216 = vmatpush2.msra.mxu0 0.0
    %217 = vmatprep.subr.mxu0 0.0
    %218 = vmatpush2.msra.mxu0 0.0
    %219 = vmatprep.subr.mxu0 0.0
    %220 = vmatpush2.msra.mxu0 0.0
    %221 = vmatprep.subr.mxu0 0.0
    %222 = vmatpush2.msra.mxu0 0.0
    %223 = vmatprep.subr.mxu0 0.0
    %224 = vmatpush2.msra.mxu0 0.0
    %225 = vmatprep.subr.mxu0 0.0
    %226 = vmatpush2.msra.mxu0 0.0
    %227 = vmatprep.subr.mxu0 0.0
    %228 = vmatpush2.msra.mxu0 0.0
    %229 = vmatprep.subr.mxu0 0.0
    %230 = vmatpush2.msra.mxu0 0.0
    %231 = vmatprep.subr.mxu0 0.0
    %232 = vmatpush2.msra.mxu0 0.0
    %233 = vmatprep.subr.mxu0 0.0
    %234 = vmatpush2.msra.mxu0 0.0
    %235 = vmatprep.subr.mxu0 0.0
    %236 = vmatpush2.msra.mxu0 0.0
    %237 = vmatprep.subr.mxu0 0.0
    %238 = vmatpush2.msra.mxu0 0.0
    %239 = vmatprep.subr.mxu0 0.0
    %240 = vmatpush2.msra.mxu0 0.0
    %241 = vmatprep.subr.mxu0 0.0
    %242 = vmatpush2.msra.mxu0 0.0
    %243 = vmatprep.subr.mxu0 0.0
    %244 = vmatpush2.msra.mxu0 0.0
    %245 = vmatprep.mubr.f32.mxu0 0.0
    %246 = vmatmul.mubr.f32.gmra.mxu0 %v176
    %v247 = vpop.f32.mrf.mxu0
    %v248 = vadd.f32 0.0, %v247
    %v249 = vpop.f32.mrf.mxu0
    %250 = vmatprep.mubr.f32.mxu0 0.0
    %251 = vmatmul.mubr.f32.gmra.mxu0 %v179
    %v252 = vpop.f32.mrf.mxu0
    %v253 = vadd.f32 0.0, %v252
    %v254 = vpop.f32.mrf.mxu0
    %255 = vdwg.mxu0
    %256 = vmatprep.subr.mxu0 0.0
    %257 = vmatpush1.msra.mxu0 0.0
    %258 = vmatprep.subr.mxu0 0.0
    %259 = vmatpush1.msra.mxu0 0.0
    %260 = vmatprep.subr.mxu0 0.0
    %261 = vmatpush1.msra.mxu0 0.0
    %262 = vmatprep.subr.mxu0 0.0
    %263 = vmatpush1.msra.mxu0 0.0
    %264 = vmatprep.subr.mxu0 0.0
    %265 = vmatpush1.msra.mxu0 0.0
    %266 = vmatprep.subr.mxu0 0.0
    %267 = vmatpush1.msra.mxu0 0.0
    %268 = vmatprep.subr.mxu0 0.0
    %269 = vmatpush1.msra.mxu0 0.0
    %270 = vmatprep.subr.mxu0 0.0
    %271 = vmatpush1.msra.mxu0 0.0
    %272 = vmatprep.subr.mxu0 0.0
    %273 = vmatpush1.msra.mxu0 0.0
    %274 = vmatprep.subr.mxu0 0.0
    %275 = vmatpush1.msra.mxu0 0.0
    %276 = vmatprep.subr.mxu0 0.0
    %277 = vmatpush1.msra.mxu0 0.0
    %278 = vmatprep.subr.mxu0 0.0
    %279 = vmatpush1.msra.mxu0 0.0
    %280 = vmatprep.subr.mxu0 0.0
    %281 = vmatpush1.msra.mxu0 %v169
    %282 = vmatprep.subr.mxu0 0.0
    %283 = vmatpush1.msra.mxu0 %v168
    %284 = vmatprep.subr.mxu0 0.0
    %285 = vmatpush1.msra.mxu0 %v167
    %286 = vmatprep.subr.mxu0 0.0
    %287 = vmatpush1.msra.mxu0 %v166
    %288 = vmatprep.subr.mxu0 0.0
    %289 = vmatpush2.msra.mxu0 0.0
    %290 = vmatprep.subr.mxu0 0.0
    %291 = vmatpush2.msra.mxu0 0.0
    %292 = vmatprep.subr.mxu0 0.0
    %293 = vmatpush2.msra.mxu0 0.0
    %294 = vmatprep.subr.mxu0 0.0
    %295 = vmatpush2.msra.mxu0 0.0
    %296 = vmatprep.subr.mxu0 0.0
    %297 = vmatpush2.msra.mxu0 0.0
    %298 = vmatprep.subr.mxu0 0.0
    %299 = vmatpush2.msra.mxu0 0.0
    %300 = vmatprep.subr.mxu0 0.0
    %301 = vmatpush2.msra.mxu0 0.0
    %302 = vmatprep.subr.mxu0 0.0
    %303 = vmatpush2.msra.mxu0 0.0
    %304 = vmatprep.subr.mxu0 0.0
    %305 = vmatpush2.msra.mxu0 0.0
    %306 = vmatprep.subr.mxu0 0.0
    %307 = vmatpush2.msra.mxu0 0.0
    %308 = vmatprep.subr.mxu0 0.0
    %309 = vmatpush2.msra.mxu0 0.0
    %310 = vmatprep.subr.mxu0 0.0
    %311 = vmatpush2.msra.mxu0 0.0
    %312 = vmatprep.subr.mxu0 0.0
    %313 = vmatpush2.msra.mxu0 0.0
    %314 = vmatprep.subr.mxu0 0.0
    %315 = vmatpush2.msra.mxu0 0.0
    %316 = vmatprep.subr.mxu0 0.0
    %317 = vmatpush2.msra.mxu0 0.0
    %318 = vmatprep.subr.mxu0 0.0
    %319 = vmatpush2.msra.mxu0 0.0
    %320 = vmatprep.mubr.f32.mxu0 0.0
    %321 = vmatmul.mubr.f32.gmra.mxu0 %v176
    %v322 = vpop.f32.mrf.mxu0
    %v323 = vadd.f32 0.0, %v322
    %v324 = vpop.f32.mrf.mxu0
    %325 = vmatprep.mubr.f32.mxu0 0.0
    %326 = vmatmul.mubr.f32.gmra.mxu0 %v179
    %v327 = vpop.f32.mrf.mxu0
    %v328 = vadd.f32 0.0, %v327
    %v329 = vpop.f32.mrf.mxu0
    %330 = vdwg.mxu0
    %331 = vmatprep.subr.mxu0 0.0
    %332 = vmatpush1.msra.mxu0 0.0
    %333 = vmatprep.subr.mxu0 0.0
    %334 = vmatpush1.msra.mxu0 0.0
    %335 = vmatprep.subr.mxu0 0.0
    %336 = vmatpush1.msra.mxu0 0.0
    %337 = vmatprep.subr.mxu0 0.0
    %338 = vmatpush1.msra.mxu0 0.0
    %339 = vmatprep.subr.mxu0 0.0
    %340 = vmatpush1.msra.mxu0 0.0
    %341 = vmatprep.subr.mxu0 0.0
    %342 = vmatpush1.msra.mxu0 0.0
    %343 = vmatprep.subr.mxu0 0.0
    %344 = vmatpush1.msra.mxu0 0.0
    %345 = vmatprep.subr.mxu0 0.0
    %346 = vmatpush1.msra.mxu0 0.0
    %347 = vmatprep.subr.mxu0 0.0
    %348 = vmatpush1.msra.mxu0 0.0
    %349 = vmatprep.subr.mxu0 0.0
    %350 = vmatpush1.msra.mxu0 0.0
    %351 = vmatprep.subr.mxu0 0.0
    %352 = vmatpush1.msra.mxu0 0.0
    %353 = vmatprep.subr.mxu0 0.0
    %354 = vmatpush1.msra.mxu0 0.0
    %355 = vmatprep.subr.mxu0 0.0
    %356 = vmatpush1.msra.mxu0 %v174
    %357 = vmatprep.subr.mxu0 0.0
    %358 = vmatpush1.msra.mxu0 %v173
    %359 = vmatprep.subr.mxu0 0.0
    %360 = vmatpush1.msra.mxu0 %v172
    %361 = vmatprep.subr.mxu0 0.0
    %362 = vmatpush1.msra.mxu0 %v171
    %363 = vmatprep.subr.mxu0 0.0
    %364 = vmatpush2.msra.mxu0 0.0
    %365 = vmatprep.subr.mxu0 0.0
    %366 = vmatpush2.msra.mxu0 0.0
    %367 = vmatprep.subr.mxu0 0.0
    %368 = vmatpush2.msra.mxu0 0.0
    %369 = vmatprep.subr.mxu0 0.0
    %370 = vmatpush2.msra.mxu0 0.0
    %371 = vmatprep.subr.mxu0 0.0
    %372 = vmatpush2.msra.mxu0 0.0
    %373 = vmatprep.subr.mxu0 0.0
    %374 = vmatpush2.msra.mxu0 0.0
    %375 = vmatprep.subr.mxu0 0.0
    %376 = vmatpush2.msra.mxu0 0.0
    %377 = vmatprep.subr.mxu0 0.0
    %378 = vmatpush2.msra.mxu0 0.0
    %379 = vmatprep.subr.mxu0 0.0
    %380 = vmatpush2.msra.mxu0 0.0
    %381 = vmatprep.subr.mxu0 0.0
    %382 = vmatpush2.msra.mxu0 0.0
    %383 = vmatprep.subr.mxu0 0.0
    %384 = vmatpush2.msra.mxu0 0.0
    %385 = vmatprep.subr.mxu0 0.0
    %386 = vmatpush2.msra.mxu0 0.0
    %387 = vmatprep.subr.mxu0 0.0
    %388 = vmatpush2.msra.mxu0 0.0
    %389 = vmatprep.subr.mxu0 0.0
    %390 = vmatpush2.msra.mxu0 0.0
    %391 = vmatprep.subr.mxu0 0.0
    %392 = vmatpush2.msra.mxu0 0.0
    %393 = vmatprep.subr.mxu0 0.0
    %394 = vmatpush2.msra.mxu0 0.0
    %395 = vmatprep.mubr.f32.mxu0 0.0
    %396 = vmatmul.mubr.f32.gmra.mxu0 %v176
    %v397 = vpop.f32.mrf.mxu0
    %v398 = vadd.f32 0.0, %v397
    %v399 = vpop.f32.mrf.mxu0
    %400 = vmatprep.mubr.f32.mxu0 0.0
    %401 = vmatmul.mubr.f32.gmra.mxu0 %v179
    %v402 = vpop.f32.mrf.mxu0
    %v403 = vadd.f32 0.0, %v402
    %v404 = vpop.f32.mrf.mxu0
    %405 = vdwg.mxu0
    %vm406 = vcmask 64512
    %v408 = vsel %vm406, %v248, 0
    %v411 = vsel %vm406, %v253, 0
    %v414 = vsel %vm406, %v323, 0
    %v417 = vsel %vm406, %v328, 0
    %419 = vmatprep.subr.mxu0 0.0
    %420 = vmatpush1.xpose.msra.mxu0 0.0
    %421 = vmatprep.subr.mxu0 0.0
    %422 = vmatpush1.xpose.msra.mxu0 0.0
    %423 = vmatprep.subr.mxu0 0.0
    %424 = vmatpush1.xpose.msra.mxu0 0.0
    %425 = vmatprep.subr.mxu0 0.0
    %426 = vmatpush1.xpose.msra.mxu0 0.0
    %427 = vmatprep.subr.mxu0 0.0
    %428 = vmatpush1.xpose.msra.mxu0 0.0
    %429 = vmatprep.subr.mxu0 0.0
    %430 = vmatpush1.xpose.msra.mxu0 0.0
    %431 = vmatprep.subr.mxu0 0.0
    %432 = vmatpush1.xpose.msra.mxu0 0.0
    %433 = vmatprep.subr.mxu0 0.0
    %434 = vmatpush1.xpose.msra.mxu0 0.0
    %435 = vmatprep.subr.mxu0 0.0
    %436 = vmatpush1.xpose.msra.mxu0 0.0
    %437 = vmatprep.subr.mxu0 0.0
    %438 = vmatpush1.xpose.msra.mxu0 0.0
    %439 = vmatprep.subr.mxu0 0.0
    %440 = vmatpush1.xpose.msra.mxu0 0.0
    %441 = vmatprep.subr.mxu0 0.0
    %442 = vmatpush1.xpose.msra.mxu0 0.0
    %443 = vmatprep.subr.mxu0 0.0
    %444 = vmatpush1.xpose.msra.mxu0 0.0
    %445 = vmatprep.subr.mxu0 0.0
    %446 = vmatpush1.xpose.msra.mxu0 0.0
    %447 = vmatprep.subr.mxu0 0.0
    %448 = vmatpush1.xpose.msra.mxu0 %v417
    %449 = vmatprep.subr.mxu0 0.0
    %450 = vmatpush1.xpose.msra.mxu0 %v414
    %451 = vmatprep.subr.mxu0 0.0
    %452 = vmatpush2.xpose.msra.mxu0 0.0
    %453 = vmatprep.subr.mxu0 0.0
    %454 = vmatpush2.xpose.msra.mxu0 0.0
    %455 = vmatprep.subr.mxu0 0.0
    %456 = vmatpush2.xpose.msra.mxu0 0.0
    %457 = vmatprep.subr.mxu0 0.0
    %458 = vmatpush2.xpose.msra.mxu0 0.0
    %459 = vmatprep.subr.mxu0 0.0
    %460 = vmatpush2.xpose.msra.mxu0 0.0
    %461 = vmatprep.subr.mxu0 0.0
    %462 = vmatpush2.xpose.msra.mxu0 0.0
    %463 = vmatprep.subr.mxu0 0.0
    %464 = vmatpush2.xpose.msra.mxu0 0.0
    %465 = vmatprep.subr.mxu0 0.0
    %466 = vmatpush2.xpose.msra.mxu0 0.0
    %467 = vmatprep.subr.mxu0 0.0
    %468 = vmatpush2.xpose.msra.mxu0 0.0
    %469 = vmatprep.subr.mxu0 0.0
    %470 = vmatpush2.xpose.msra.mxu0 0.0
    %471 = vmatprep.subr.mxu0 0.0
    %472 = vmatpush2.xpose.msra.mxu0 0.0
    %473 = vmatprep.subr.mxu0 0.0
    %474 = vmatpush2.xpose.msra.mxu0 0.0
    %475 = vmatprep.subr.mxu0 0.0
    %476 = vmatpush2.xpose.msra.mxu0 0.0
    %477 = vmatprep.subr.mxu0 0.0
    %478 = vmatpush2.xpose.msra.mxu0 0.0
    %479 = vmatprep.subr.mxu0 0.0
    %480 = vmatpush2.xpose.msra.mxu0 0.0
    %481 = vmatprep.subr.mxu0 0.0
    %482 = vmatpush2.xpose.msra.mxu0 0.0
    %483 = vmatprep.mubr.f32.mxu0 0.0
    %484 = vmatmul.mubr.f32.gmra.mxu0 %v408
    %v485 = vpop.f32.mrf.mxu0
    %v486 = vadd.f32 %v118, %v485
    %v487 = vpop.f32.mrf.mxu0
    %488 = vmatprep.mubr.f32.mxu0 0.0
    %489 = vmatmul.mubr.f32.gmra.mxu0 %v411
    %v490 = vpop.f32.mrf.mxu0
    %v491 = vadd.f32 %v119, %v490
    %v492 = vpop.f32.mrf.mxu0
    %493 = vdwg.mxu0
    %vm494 = vcmask 130048
    %v495 = vsel %vm494, %v486, -inf
    %496 = vmax.xlane.f32.xlu0 %v495
    %v497 = vpop.xlane.xlu0 %496
    %v498 = vsel %vm494, %v491, -inf
    %499 = vmax.xlane.f32.xlu0 %v498
    %v500 = vpop.xlane.xlu0 %499
    %v501 = vsub.f32 %v486, %v497
    %v502 = vsub.f32 %v491, %v500
    %v503 = vmul.f32 %v501, 1.442695
    %v504 = vpow.pop %v503
    %v505 = vmul.f32 %v502, 1.442695
    %v506 = vpow.pop %v505
    %v507 = vsel %vm494, %v504, 0.0
    %508 = vadd.xlane.f32.xlu0 %v507
    %v509 = vpop.xlane.xlu0 %508
    %v510 = vsel %vm494, %v506, 0.0
    %511 = vadd.xlane.f32.xlu0 %v510
    %v512 = vpop.xlane.xlu0 %511
    %v513 = vrcp.pop %v509
    %v514 = vrcp.pop %v512
    %v515 = vmul.f32 %v504, %v513
    %v516 = vmul.f32 %v506, %v514
    %v518 = vsel %vm494, %v515, 0
    %v521 = vsel %vm494, %v516, 0
    %523 = vmatprep.subr.mxu0 0.0
    %524 = vmatpush1.msra.mxu0 0.0
    %525 = vmatprep.subr.mxu0 0.0
    %526 = vmatpush1.msra.mxu0 0.0
    %527 = vmatprep.subr.mxu0 0.0
    %528 = vmatpush1.msra.mxu0 0.0
    %529 = vmatprep.subr.mxu0 0.0
    %530 = vmatpush1.msra.mxu0 0.0
    %531 = vmatprep.subr.mxu0 0.0
    %532 = vmatpush1.msra.mxu0 0.0
    %533 = vmatprep.subr.mxu0 0.0
    %534 = vmatpush1.msra.mxu0 0.0
    %535 = vmatprep.subr.mxu0 0.0
    %536 = vmatpush1.msra.mxu0 0.0
    %537 = vmatprep.subr.mxu0 0.0
    %538 = vmatpush1.msra.mxu0 0.0
    %539 = vmatprep.subr.mxu0 0.0
    %540 = vmatpush1.msra.mxu0 0.0
    %541 = vmatprep.subr.mxu0 0.0
    %542 = vmatpush1.msra.mxu0 0.0
    %543 = vmatprep.subr.mxu0 0.0
    %544 = vmatpush1.msra.mxu0 0.0
    %545 = vmatprep.subr.mxu0 0.0
    %546 = vmatpush1.msra.mxu0 0.0
    %547 = vmatprep.subr.mxu0 0.0
    %548 = vmatpush1.msra.mxu0 0.0
    %549 = vmatprep.subr.mxu0 0.0
    %550 = vmatpush1.msra.mxu0 0.0
    %551 = vmatprep.subr.mxu0 0.0
    %552 = vmatpush1.msra.mxu0 %v403
    %553 = vmatprep.subr.mxu0 0.0
    %554 = vmatpush1.msra.mxu0 %v398
    %555 = vmatprep.subr.mxu0 0.0
    %556 = vmatpush2.msra.mxu0 0.0
    %557 = vmatprep.subr.mxu0 0.0
    %558 = vmatpush2.msra.mxu0 0.0
    %559 = vmatprep.subr.mxu0 0.0
    %560 = vmatpush2.msra.mxu0 0.0
    %561 = vmatprep.subr.mxu0 0.0
    %562 = vmatpush2.msra.mxu0 0.0
    %563 = vmatprep.subr.mxu0 0.0
    %564 = vmatpush2.msra.mxu0 0.0
    %565 = vmatprep.subr.mxu0 0.0
    %566 = vmatpush2.msra.mxu0 0.0
    %567 = vmatprep.subr.mxu0 0.0
    %568 = vmatpush2.msra.mxu0 0.0
    %569 = vmatprep.subr.mxu0 0.0
    %570 = vmatpush2.msra.mxu0 0.0
    %571 = vmatprep.subr.mxu0 0.0
    %572 = vmatpush2.msra.mxu0 0.0
    %573 = vmatprep.subr.mxu0 0.0
    %574 = vmatpush2.msra.mxu0 0.0
    %575 = vmatprep.subr.mxu0 0.0
    %576 = vmatpush2.msra.mxu0 0.0
    %577 = vmatprep.subr.mxu0 0.0
    %578 = vmatpush2.msra.mxu0 0.0
    %579 = vmatprep.subr.mxu0 0.0
    %580 = vmatpush2.msra.mxu0 0.0
    %581 = vmatprep.subr.mxu0 0.0
    %582 = vmatpush2.msra.mxu0 0.0
    %583 = vmatprep.subr.mxu0 0.0
    %584 = vmatpush2.msra.mxu0 0.0
    %585 = vmatprep.subr.mxu0 0.0
    %586 = vmatpush2.msra.mxu0 0.0
    %587 = vmatprep.mubr.f32.mxu0 0.0
    %588 = vmatmul.mubr.f32.gmra.mxu0 %v518
    %v589 = vpop.f32.mrf.mxu0
    %v590 = vadd.f32 0.0, %v589
    %v591 = vpop.f32.mrf.mxu0
    %592 = vmatprep.mubr.f32.mxu0 0.0
    %593 = vmatmul.mubr.f32.gmra.mxu0 %v521
    %v594 = vpop.f32.mrf.mxu0
    %v595 = vadd.f32 0.0, %v594
    %v596 = vpop.f32.mrf.mxu0
    %597 = vdwg.mxu0
    %v598 = vld [vmem:[#allocation5] sm:$0xff]
    %s599 = scalar_lea.vmem %s2, 32
    %v600 = vld [vmem:[%s599] sm:$0xff]
    %v601 = vld [vmem:[%s599 + $0x8] sm:$0xff]
    %v602 = vld [vmem:[%s599 + $0x10] sm:$0xff]
    %v603 = vld [vmem:[%s599 + $0x18] sm:$0xff]
    %s604 = scalar_lea.vmem %s2, 160
    %v605 = vld [vmem:[%s604] sm:$0xff]
    %v606 = vld [vmem:[%s604 + $0x8] sm:$0xff]
    %v607 = vld [vmem:[%s604 + $0x10] sm:$0xff]
    %v608 = vld [vmem:[%s604 + $0x18] sm:$0xff]
    %s609 = scalar_lea.vmem %s2, 288
    %v610 = vld [vmem:[%s609] sm:$0xff]
    %v611 = vld [vmem:[%s609 + $0x8] sm:$0xff]
    %v612 = vld [vmem:[%s609 + $0x10] sm:$0xff]
    %v613 = vld [vmem:[%s609 + $0x18] sm:$0xff]
    %614 = vmatprep.subr.mxu0 0.0
    %615 = vmatpush1.msra.mxu0 0.0
    %616 = vmatprep.subr.mxu0 0.0
    %617 = vmatpush1.msra.mxu0 0.0
    %618 = vmatprep.subr.mxu0 0.0
    %619 = vmatpush1.msra.mxu0 0.0
    %620 = vmatprep.subr.mxu0 0.0
    %621 = vmatpush1.msra.mxu0 0.0
    %622 = vmatprep.subr.mxu0 0.0
    %623 = vmatpush1.msra.mxu0 0.0
    %624 = vmatprep.subr.mxu0 0.0
    %625 = vmatpush1.msra.mxu0 0.0
    %626 = vmatprep.subr.mxu0 0.0
    %627 = vmatpush1.msra.mxu0 0.0
    %628 = vmatprep.subr.mxu0 0.0
    %629 = vmatpush1.msra.mxu0 0.0
    %630 = vmatprep.subr.mxu0 0.0
    %631 = vmatpush1.msra.mxu0 0.0
    %632 = vmatprep.subr.mxu0 0.0
    %633 = vmatpush1.msra.mxu0 0.0
    %634 = vmatprep.subr.mxu0 0.0
    %635 = vmatpush1.msra.mxu0 0.0
    %636 = vmatprep.subr.mxu0 0.0
    %637 = vmatpush1.msra.mxu0 0.0
    %638 = vmatprep.subr.mxu0 0.0
    %639 = vmatpush1.msra.mxu0 %v603
    %640 = vmatprep.subr.mxu0 0.0
    %641 = vmatpush1.msra.mxu0 %v602
    %642 = vmatprep.subr.mxu0 0.0
    %643 = vmatpush1.msra.mxu0 %v601
    %644 = vmatprep.subr.mxu0 0.0
    %645 = vmatpush1.msra.mxu0 %v600
    %646 = vmatprep.subr.mxu0 0.0
    %647 = vmatpush2.msra.mxu0 0.0
    %648 = vmatprep.subr.mxu0 0.0
    %649 = vmatpush2.msra.mxu0 0.0
    %650 = vmatprep.subr.mxu0 0.0
    %651 = vmatpush2.msra.mxu0 0.0
    %652 = vmatprep.subr.mxu0 0.0
    %653 = vmatpush2.msra.mxu0 0.0
    %654 = vmatprep.subr.mxu0 0.0
    %655 = vmatpush2.msra.mxu0 0.0
    %656 = vmatprep.subr.mxu0 0.0
    %657 = vmatpush2.msra.mxu0 0.0
    %658 = vmatprep.subr.mxu0 0.0
    %659 = vmatpush2.msra.mxu0 0.0
    %660 = vmatprep.subr.mxu0 0.0
    %661 = vmatpush2.msra.mxu0 0.0
    %662 = vmatprep.subr.mxu0 0.0
    %663 = vmatpush2.msra.mxu0 0.0
    %664 = vmatprep.subr.mxu0 0.0
    %665 = vmatpush2.msra.mxu0 0.0
    %666 = vmatprep.subr.mxu0 0.0
    %667 = vmatpush2.msra.mxu0 0.0
    %668 = vmatprep.subr.mxu0 0.0
    %669 = vmatpush2.msra.mxu0 0.0
    %670 = vmatprep.subr.mxu0 0.0
    %671 = vmatpush2.msra.mxu0 0.0
    %672 = vmatprep.subr.mxu0 0.0
    %673 = vmatpush2.msra.mxu0 0.0
    %674 = vmatprep.subr.mxu0 0.0
    %675 = vmatpush2.msra.mxu0 0.0
    %676 = vmatprep.subr.mxu0 0.0
    %677 = vmatpush2.msra.mxu0 0.0
    %678 = vmatprep.mubr.f32.mxu0 0.0
    %679 = vmatmul.mubr.f32.gmra.mxu0 %v176
    %v680 = vpop.f32.mrf.mxu0
    %v681 = vadd.f32 0.0, %v680
    %v682 = vpop.f32.mrf.mxu0
    %683 = vmatprep.mubr.f32.mxu0 0.0
    %684 = vmatmul.mubr.f32.gmra.mxu0 %v179
    %v685 = vpop.f32.mrf.mxu0
    %v686 = vadd.f32 0.0, %v685
    %v687 = vpop.f32.mrf.mxu0
    %688 = vdwg.mxu0
    %689 = vmatprep.subr.mxu0 0.0
    %690 = vmatpush1.msra.mxu0 0.0
    %691 = vmatprep.subr.mxu0 0.0
    %692 = vmatpush1.msra.mxu0 0.0
    %693 = vmatprep.subr.mxu0 0.0
    %694 = vmatpush1.msra.mxu0 0.0
    %695 = vmatprep.subr.mxu0 0.0
    %696 = vmatpush1.msra.mxu0 0.0
    %697 = vmatprep.subr.mxu0 0.0
    %698 = vmatpush1.msra.mxu0 0.0
    %699 = vmatprep.subr.mxu0 0.0
    %700 = vmatpush1.msra.mxu0 0.0
    %701 = vmatprep.subr.mxu0 0.0
    %702 = vmatpush1.msra.mxu0 0.0
    %703 = vmatprep.subr.mxu0 0.0
    %704 = vmatpush1.msra.mxu0 0.0
    %705 = vmatprep.subr.mxu0 0.0
    %706 = vmatpush1.msra.mxu0 0.0
    %707 = vmatprep.subr.mxu0 0.0
    %708 = vmatpush1.msra.mxu0 0.0
    %709 = vmatprep.subr.mxu0 0.0
    %710 = vmatpush1.msra.mxu0 0.0
    %711 = vmatprep.subr.mxu0 0.0
    %712 = vmatpush1.msra.mxu0 0.0
    %713 = vmatprep.subr.mxu0 0.0
    %714 = vmatpush1.msra.mxu0 %v608
    %715 = vmatprep.subr.mxu0 0.0
    %716 = vmatpush1.msra.mxu0 %v607
    %717 = vmatprep.subr.mxu0 0.0
    %718 = vmatpush1.msra.mxu0 %v606
    %719 = vmatprep.subr.mxu0 0.0
    %720 = vmatpush1.msra.mxu0 %v605
    %721 = vmatprep.subr.mxu0 0.0
    %722 = vmatpush2.msra.mxu0 0.0
    %723 = vmatprep.subr.mxu0 0.0
    %724 = vmatpush2.msra.mxu0 0.0
    %725 = vmatprep.subr.mxu0 0.0
    %726 = vmatpush2.msra.mxu0 0.0
    %727 = vmatprep.subr.mxu0 0.0
    %728 = vmatpush2.msra.mxu0 0.0
    %729 = vmatprep.subr.mxu0 0.0
    %730 = vmatpush2.msra.mxu0 0.0
    %731 = vmatprep.subr.mxu0 0.0
    %732 = vmatpush2.msra.mxu0 0.0
    %733 = vmatprep.subr.mxu0 0.0
    %734 = vmatpush2.msra.mxu0 0.0
    %735 = vmatprep.subr.mxu0 0.0
    %736 = vmatpush2.msra.mxu0 0.0
    %737 = vmatprep.subr.mxu0 0.0
    %738 = vmatpush2.msra.mxu0 0.0
    %739 = vmatprep.subr.mxu0 0.0
    %740 = vmatpush2.msra.mxu0 0.0
    %741 = vmatprep.subr.mxu0 0.0
    %742 = vmatpush2.msra.mxu0 0.0
    %743 = vmatprep.subr.mxu0 0.0
    %744 = vmatpush2.msra.mxu0 0.0
    %745 = vmatprep.subr.mxu0 0.0
    %746 = vmatpush2.msra.mxu0 0.0
    %747 = vmatprep.subr.mxu0 0.0
    %748 = vmatpush2.msra.mxu0 0.0
    %749 = vmatprep.subr.mxu0 0.0
    %750 = vmatpush2.msra.mxu0 0.0
    %751 = vmatprep.subr.mxu0 0.0
    %752 = vmatpush2.msra.mxu0 0.0
    %753 = vmatprep.mubr.f32.mxu0 0.0
    %754 = vmatmul.mubr.f32.gmra.mxu0 %v176
    %v755 = vpop.f32.mrf.mxu0
    %v756 = vadd.f32 0.0, %v755
    %v757 = vpop.f32.mrf.mxu0
    %758 = vmatprep.mubr.f32.mxu0 0.0
    %759 = vmatmul.mubr.f32.gmra.mxu0 %v179
    %v760 = vpop.f32.mrf.mxu0
    %v761 = vadd.f32 0.0, %v760
    %v762 = vpop.f32.mrf.mxu0
    %763 = vdwg.mxu0
    %764 = vmatprep.subr.mxu0 0.0
    %765 = vmatpush1.msra.mxu0 0.0
    %766 = vmatprep.subr.mxu0 0.0
    %767 = vmatpush1.msra.mxu0 0.0
    %768 = vmatprep.subr.mxu0 0.0
    %769 = vmatpush1.msra.mxu0 0.0
    %770 = vmatprep.subr.mxu0 0.0
    %771 = vmatpush1.msra.mxu0 0.0
    %772 = vmatprep.subr.mxu0 0.0
    %773 = vmatpush1.msra.mxu0 0.0
    %774 = vmatprep.subr.mxu0 0.0
    %775 = vmatpush1.msra.mxu0 0.0
    %776 = vmatprep.subr.mxu0 0.0
    %777 = vmatpush1.msra.mxu0 0.0
    %778 = vmatprep.subr.mxu0 0.0
    %779 = vmatpush1.msra.mxu0 0.0
    %780 = vmatprep.subr.mxu0 0.0
    %781 = vmatpush1.msra.mxu0 0.0
    %782 = vmatprep.subr.mxu0 0.0
    %783 = vmatpush1.msra.mxu0 0.0
    %784 = vmatprep.subr.mxu0 0.0
    %785 = vmatpush1.msra.mxu0 0.0
    %786 = vmatprep.subr.mxu0 0.0
    %787 = vmatpush1.msra.mxu0 0.0
    %788 = vmatprep.subr.mxu0 0.0
    %789 = vmatpush1.msra.mxu0 %v613
    %790 = vmatprep.subr.mxu0 0.0
    %791 = vmatpush1.msra.mxu0 %v612
    %792 = vmatprep.subr.mxu0 0.0
    %793 = vmatpush1.msra.mxu0 %v611
    %794 = vmatprep.subr.mxu0 0.0
    %795 = vmatpush1.msra.mxu0 %v610
    %796 = vmatprep.subr.mxu0 0.0
    %797 = vmatpush2.msra.mxu0 0.0
    %798 = vmatprep.subr.mxu0 0.0
    %799 = vmatpush2.msra.mxu0 0.0
    %800 = vmatprep.subr.mxu0 0.0
    %801 = vmatpush2.msra.mxu0 0.0
    %802 = vmatprep.subr.mxu0 0.0
    %803 = vmatpush2.msra.mxu0 0.0
    %804 = vmatprep.subr.mxu0 0.0
    %805 = vmatpush2.msra.mxu0 0.0
    %806 = vmatprep.subr.mxu0 0.0
    %807 = vmatpush2.msra.mxu0 0.0
    %808 = vmatprep.subr.mxu0 0.0
    %809 = vmatpush2.msra.mxu0 0.0
    %810 = vmatprep.subr.mxu0 0.0
    %811 = vmatpush2.msra.mxu0 0.0
    %812 = vmatprep.subr.mxu0 0.0
    %813 = vmatpush2.msra.mxu0 0.0
    %814 = vmatprep.subr.mxu0 0.0
    %815 = vmatpush2.msra.mxu0 0.0
    %816 = vmatprep.subr.mxu0 0.0
    %817 = vmatpush2.msra.mxu0 0.0
    %818 = vmatprep.subr.mxu0 0.0
    %819 = vmatpush2.msra.mxu0 0.0
    %820 = vmatprep.subr.mxu0 0.0
    %821 = vmatpush2.msra.mxu0 0.0
    %822 = vmatprep.subr.mxu0 0.0
    %823 = vmatpush2.msra.mxu0 0.0
    %824 = vmatprep.subr.mxu0 0.0
    %825 = vmatpush2.msra.mxu0 0.0
    %826 = vmatprep.subr.mxu0 0.0
    %827 = vmatpush2.msra.mxu0 0.0
    %828 = vmatprep.mubr.f32.mxu0 0.0
    %829 = vmatmul.mubr.f32.gmra.mxu0 %v176
    %v830 = vpop.f32.mrf.mxu0
    %v831 = vadd.f32 0.0, %v830
    %v832 = vpop.f32.mrf.mxu0
    %833 = vmatprep.mubr.f32.mxu0 0.0
    %834 = vmatmul.mubr.f32.gmra.mxu0 %v179
    %v835 = vpop.f32.mrf.mxu0
    %v836 = vadd.f32 0.0, %v835
    %v837 = vpop.f32.mrf.mxu0
    %838 = vdwg.mxu0
    %v840 = vsel %vm406, %v681, 0
    %v843 = vsel %vm406, %v686, 0
    %v846 = vsel %vm406, %v756, 0
    %v849 = vsel %vm406, %v761, 0
    %851 = vmatprep.subr.mxu0 0.0
    %852 = vmatpush1.xpose.msra.mxu0 0.0
    %853 = vmatprep.subr.mxu0 0.0
    %854 = vmatpush1.xpose.msra.mxu0 0.0
    %855 = vmatprep.subr.mxu0 0.0
    %856 = vmatpush1.xpose.msra.mxu0 0.0
    %857 = vmatprep.subr.mxu0 0.0
    %858 = vmatpush1.xpose.msra.mxu0 0.0
    %859 = vmatprep.subr.mxu0 0.0
    %860 = vmatpush1.xpose.msra.mxu0 0.0
    %861 = vmatprep.subr.mxu0 0.0
    %862 = vmatpush1.xpose.msra.mxu0 0.0
    %863 = vmatprep.subr.mxu0 0.0
    %864 = vmatpush1.xpose.msra.mxu0 0.0
    %865 = vmatprep.subr.mxu0 0.0
    %866 = vmatpush1.xpose.msra.mxu0 0.0
    %867 = vmatprep.subr.mxu0 0.0
    %868 = vmatpush1.xpose.msra.mxu0 0.0
    %869 = vmatprep.subr.mxu0 0.0
    %870 = vmatpush1.xpose.msra.mxu0 0.0
    %871 = vmatprep.subr.mxu0 0.0
    %872 = vmatpush1.xpose.msra.mxu0 0.0
    %873 = vmatprep.subr.mxu0 0.0
    %874 = vmatpush1.xpose.msra.mxu0 0.0
    %875 = vmatprep.subr.mxu0 0.0
    %876 = vmatpush1.xpose.msra.mxu0 0.0
    %877 = vmatprep.subr.mxu0 0.0
    %878 = vmatpush1.xpose.msra.mxu0 0.0
    %879 = vmatprep.subr.mxu0 0.0
    %880 = vmatpush1.xpose.msra.mxu0 %v849
    %881 = vmatprep.subr.mxu0 0.0
    %882 = vmatpush1.xpose.msra.mxu0 %v846
    %883 = vmatprep.subr.mxu0 0.0
    %884 = vmatpush2.xpose.msra.mxu0 0.0
    %885 = vmatprep.subr.mxu0 0.0
    %886 = vmatpush2.xpose.msra.mxu0 0.0
    %887 = vmatprep.subr.mxu0 0.0
    %888 = vmatpush2.xpose.msra.mxu0 0.0
    %889 = vmatprep.subr.mxu0 0.0
    %890 = vmatpush2.xpose.msra.mxu0 0.0
    %891 = vmatprep.subr.mxu0 0.0
    %892 = vmatpush2.xpose.msra.mxu0 0.0
    %893 = vmatprep.subr.mxu0 0.0
    %894 = vmatpush2.xpose.msra.mxu0 0.0
    %895 = vmatprep.subr.mxu0 0.0
    %896 = vmatpush2.xpose.msra.mxu0 0.0
    %897 = vmatprep.subr.mxu0 0.0
    %898 = vmatpush2.xpose.msra.mxu0 0.0
    %899 = vmatprep.subr.mxu0 0.0
    %900 = vmatpush2.xpose.msra.mxu0 0.0
    %901 = vmatprep.subr.mxu0 0.0
    %902 = vmatpush2.xpose.msra.mxu0 0.0
    %903 = vmatprep.subr.mxu0 0.0
    %904 = vmatpush2.xpose.msra.mxu0 0.0
    %905 = vmatprep.subr.mxu0 0.0
    %906 = vmatpush2.xpose.msra.mxu0 0.0
    %907 = vmatprep.subr.mxu0 0.0
    %908 = vmatpush2.xpose.msra.mxu0 0.0
    %909 = vmatprep.subr.mxu0 0.0
    %910 = vmatpush2.xpose.msra.mxu0 0.0
    %911 = vmatprep.subr.mxu0 0.0
    %912 = vmatpush2.xpose.msra.mxu0 0.0
    %913 = vmatprep.subr.mxu0 0.0
    %914 = vmatpush2.xpose.msra.mxu0 0.0
    %915 = vmatprep.mubr.f32.mxu0 0.0
    %916 = vmatmul.mubr.f32.gmra.mxu0 %v840
    %v917 = vpop.f32.mrf.mxu0
    %v918 = vadd.f32 %v118, %v917
    %v919 = vpop.f32.mrf.mxu0
    %920 = vmatprep.mubr.f32.mxu0 0.0
    %921 = vmatmul.mubr.f32.gmra.mxu0 %v843
    %v922 = vpop.f32.mrf.mxu0
    %v923 = vadd.f32 %v119, %v922
    %v924 = vpop.f32.mrf.mxu0
    %925 = vdwg.mxu0
    %v926 = vsel %vm494, %v918, -inf
    %927 = vmax.xlane.f32.xlu0 %v926
    %v928 = vpop.xlane.xlu0 %927
    %v929 = vsel %vm494, %v923, -inf
    %930 = vmax.xlane.f32.xlu0 %v929
    %v931 = vpop.xlane.xlu0 %930
    %v932 = vsub.f32 %v918, %v928
    %v933 = vsub.f32 %v923, %v931
    %v934 = vmul.f32 %v932, 1.442695
    %v935 = vpow.pop %v934
    %v936 = vmul.f32 %v933, 1.442695
    %v937 = vpow.pop %v936
    %v938 = vsel %vm494, %v935, 0.0
    %939 = vadd.xlane.f32.xlu0 %v938
    %v940 = vpop.xlane.xlu0 %939
    %v941 = vsel %vm494, %v937, 0.0
    %942 = vadd.xlane.f32.xlu0 %v941
    %v943 = vpop.xlane.xlu0 %942
    %v944 = vrcp.pop %v940
    %v945 = vrcp.pop %v943
    %v946 = vmul.f32 %v935, %v944
    %v947 = vmul.f32 %v937, %v945
    %v949 = vsel %vm494, %v946, 0
    %v952 = vsel %vm494, %v947, 0
    %954 = vmatprep.subr.mxu0 0.0
    %955 = vmatpush1.msra.mxu0 0.0
    %956 = vmatprep.subr.mxu0 0.0
    %957 = vmatpush1.msra.mxu0 0.0
    %958 = vmatprep.subr.mxu0 0.0
    %959 = vmatpush1.msra.mxu0 0.0
    %960 = vmatprep.subr.mxu0 0.0
    %961 = vmatpush1.msra.mxu0 0.0
    %962 = vmatprep.subr.mxu0 0.0
    %963 = vmatpush1.msra.mxu0 0.0
    %964 = vmatprep.subr.mxu0 0.0
    %965 = vmatpush1.msra.mxu0 0.0
    %966 = vmatprep.subr.mxu0 0.0
    %967 = vmatpush1.msra.mxu0 0.0
    %968 = vmatprep.subr.mxu0 0.0
    %969 = vmatpush1.msra.mxu0 0.0
    %970 = vmatprep.subr.mxu0 0.0
    %971 = vmatpush1.msra.mxu0 0.0
    %972 = vmatprep.subr.mxu0 0.0
    %973 = vmatpush1.msra.mxu0 0.0
    %974 = vmatprep.subr.mxu0 0.0
    %975 = vmatpush1.msra.mxu0 0.0
    %976 = vmatprep.subr.mxu0 0.0
    %977 = vmatpush1.msra.mxu0 0.0
    %978 = vmatprep.subr.mxu0 0.0
    %979 = vmatpush1.msra.mxu0 0.0
    %980 = vmatprep.subr.mxu0 0.0
    %981 = vmatpush1.msra.mxu0 0.0
    %982 = vmatprep.subr.mxu0 0.0
    %983 = vmatpush1.msra.mxu0 %v836
    %984 = vmatprep.subr.mxu0 0.0
    %985 = vmatpush1.msra.mxu0 %v831
    %986 = vmatprep.subr.mxu0 0.0
    %987 = vmatpush2.msra.mxu0 0.0
    %988 = vmatprep.subr.mxu0 0.0
    %989 = vmatpush2.msra.mxu0 0.0
    %990 = vmatprep.subr.mxu0 0.0
    %991 = vmatpush2.msra.mxu0 0.0
    %992 = vmatprep.subr.mxu0 0.0
    %993 = vmatpush2.msra.mxu0 0.0
    %994 = vmatprep.subr.mxu0 0.0
    %995 = vmatpush2.msra.mxu0 0.0
    %996 = vmatprep.subr.mxu0 0.0
    %997 = vmatpush2.msra.mxu0 0.0
    %998 = vmatprep.subr.mxu0 0.0
    %999 = vmatpush2.msra.mxu0 0.0
    %1000 = vmatprep.subr.mxu0 0.0
    %1001 = vmatpush2.msra.mxu0 0.0
    %1002 = vmatprep.subr.mxu0 0.0
    %1003 = vmatpush2.msra.mxu0 0.0
    %1004 = vmatprep.subr.mxu0 0.0
    %1005 = vmatpush2.msra.mxu0 0.0
    %1006 = vmatprep.subr.mxu0 0.0
    %1007 = vmatpush2.msra.mxu0 0.0
    %1008 = vmatprep.subr.mxu0 0.0
    %1009 = vmatpush2.msra.mxu0 0.0
    %1010 = vmatprep.subr.mxu0 0.0
    %1011 = vmatpush2.msra.mxu0 0.0
    %1012 = vmatprep.subr.mxu0 0.0
    %1013 = vmatpush2.msra.mxu0 0.0
    %1014 = vmatprep.subr.mxu0 0.0
    %1015 = vmatpush2.msra.mxu0 0.0
    %1016 = vmatprep.subr.mxu0 0.0
    %1017 = vmatpush2.msra.mxu0 0.0
    %1018 = vmatprep.mubr.f32.mxu0 0.0
    %1019 = vmatmul.mubr.f32.gmra.mxu0 %v949
    %v1020 = vpop.f32.mrf.mxu0
    %v1021 = vadd.f32 0.0, %v1020
    %v1022 = vpop.f32.mrf.mxu0
    %1023 = vmatprep.mubr.f32.mxu0 0.0
    %1024 = vmatmul.mubr.f32.gmra.mxu0 %v952
    %v1025 = vpop.f32.mrf.mxu0
    %v1026 = vadd.f32 0.0, %v1025
    %v1027 = vpop.f32.mrf.mxu0
    %1028 = vdwg.mxu0
    %s1029 = scalar_lea.vmem [#allocation5], 8
    %v1030 = vld [vmem:[%s1029] sm:$0xff]
    %v1032 = vsel %vm406, %v1021, 0
    %v1035 = vsel %vm406, %v1026, 0
    %1037 = vmatprep.subr.mxu0 0.0
    %1038 = vmatpush1.msra.mxu0 0.0
    %1039 = vmatprep.subr.mxu0 0.0
    %1040 = vmatpush1.msra.mxu0 0.0
    %1041 = vmatprep.subr.mxu0 0.0
    %1042 = vmatpush1.msra.mxu0 0.0
    %1043 = vmatprep.subr.mxu0 0.0
    %1044 = vmatpush1.msra.mxu0 0.0
    %1045 = vmatprep.subr.mxu0 0.0
    %1046 = vmatpush1.msra.mxu0 0.0
    %1047 = vmatprep.subr.mxu0 0.0
    %1048 = vmatpush1.msra.mxu0 0.0
    %1049 = vmatprep.subr.mxu0 0.0
    %1050 = vmatpush1.msra.mxu0 0.0
    %1051 = vmatprep.subr.mxu0 0.0
    %1052 = vmatpush1.msra.mxu0 0.0
    %1053 = vmatprep.subr.mxu0 0.0
    %1054 = vmatpush1.msra.mxu0 0.0
    %1055 = vmatprep.subr.mxu0 0.0
    %1056 = vmatpush1.msra.mxu0 0.0
    %1057 = vmatprep.subr.mxu0 0.0
    %1058 = vmatpush1.msra.mxu0 0.0
    %1059 = vmatprep.subr.mxu0 0.0
    %1060 = vmatpush1.msra.mxu0 0.0
    %1061 = vmatprep.subr.mxu0 0.0
    %1062 = vmatpush1.msra.mxu0 0.0
    %1063 = vmatprep.subr.mxu0 0.0
    %1064 = vmatpush1.msra.mxu0 0.0
    %1065 = vmatprep.subr.mxu0 0.0
    %1066 = vmatpush1.msra.mxu0 0.0
    %1067 = vmatprep.subr.mxu0 0.0
    %1068 = vmatpush1.msra.mxu0 %v1030
    %1069 = vmatprep.subr.mxu0 0.0
    %1070 = vmatpush2.msra.mxu0 0.0
    %1071 = vmatprep.subr.mxu0 0.0
    %1072 = vmatpush2.msra.mxu0 0.0
    %1073 = vmatprep.subr.mxu0 0.0
    %1074 = vmatpush2.msra.mxu0 0.0
    %1075 = vmatprep.subr.mxu0 0.0
    %1076 = vmatpush2.msra.mxu0 0.0
    %1077 = vmatprep.subr.mxu0 0.0
    %1078 = vmatpush2.msra.mxu0 0.0
    %1079 = vmatprep.subr.mxu0 0.0
    %1080 = vmatpush2.msra.mxu0 0.0
    %1081 = vmatprep.subr.mxu0 0.0
    %1082 = vmatpush2.msra.mxu0 0.0
    %1083 = vmatprep.subr.mxu0 0.0
    %1084 = vmatpush2.msra.mxu0 0.0
    %1085 = vmatprep.subr.mxu0 0.0
    %1086 = vmatpush2.msra.mxu0 0.0
    %1087 = vmatprep.subr.mxu0 0.0
    %1088 = vmatpush2.msra.mxu0 0.0
    %1089 = vmatprep.subr.mxu0 0.0
    %1090 = vmatpush2.msra.mxu0 0.0
    %1091 = vmatprep.subr.mxu0 0.0
    %1092 = vmatpush2.msra.mxu0 0.0
    %1093 = vmatprep.subr.mxu0 0.0
    %1094 = vmatpush2.msra.mxu0 0.0
    %1095 = vmatprep.subr.mxu0 0.0
    %1096 = vmatpush2.msra.mxu0 0.0
    %1097 = vmatprep.subr.mxu0 0.0
    %1098 = vmatpush2.msra.mxu0 0.0
    %1099 = vmatprep.subr.mxu0 0.0
    %1100 = vmatpush2.msra.mxu0 0.0
    %1101 = vmatprep.mubr.f32.mxu0 0.0
    %1102 = vmatmul.mubr.f32.gmra.mxu0 %v1032
    %v1103 = vpop.f32.mrf.mxu0
    %v1104 = vadd.f32 0.0, %v1103
    %v1105 = vpop.f32.mrf.mxu0
    %1106 = vmatprep.mubr.f32.mxu0 0.0
    %1107 = vmatmul.mubr.f32.gmra.mxu0 %v1035
    %v1108 = vpop.f32.mrf.mxu0
    %v1109 = vadd.f32 0.0, %v1108
    %v1110 = vpop.f32.mrf.mxu0
    %1111 = vdwg.mxu0
    %v1113 = vsel %vm406, %v590, 0
    %v1116 = vsel %vm406, %v595, 0
    %1118 = vmatprep.subr.mxu0 0.0
    %1119 = vmatpush1.msra.mxu0 0.0
    %1120 = vmatprep.subr.mxu0 0.0
    %1121 = vmatpush1.msra.mxu0 0.0
    %1122 = vmatprep.subr.mxu0 0.0
    %1123 = vmatpush1.msra.mxu0 0.0
    %1124 = vmatprep.subr.mxu0 0.0
    %1125 = vmatpush1.msra.mxu0 0.0
    %1126 = vmatprep.subr.mxu0 0.0
    %1127 = vmatpush1.msra.mxu0 0.0
    %1128 = vmatprep.subr.mxu0 0.0
    %1129 = vmatpush1.msra.mxu0 0.0
    %1130 = vmatprep.subr.mxu0 0.0
    %1131 = vmatpush1.msra.mxu0 0.0
    %1132 = vmatprep.subr.mxu0 0.0
    %1133 = vmatpush1.msra.mxu0 0.0
    %1134 = vmatprep.subr.mxu0 0.0
    %1135 = vmatpush1.msra.mxu0 0.0
    %1136 = vmatprep.subr.mxu0 0.0
    %1137 = vmatpush1.msra.mxu0 0.0
    %1138 = vmatprep.subr.mxu0 0.0
    %1139 = vmatpush1.msra.mxu0 0.0
    %1140 = vmatprep.subr.mxu0 0.0
    %1141 = vmatpush1.msra.mxu0 0.0
    %1142 = vmatprep.subr.mxu0 0.0
    %1143 = vmatpush1.msra.mxu0 0.0
    %1144 = vmatprep.subr.mxu0 0.0
    %1145 = vmatpush1.msra.mxu0 0.0
    %1146 = vmatprep.subr.mxu0 0.0
    %1147 = vmatpush1.msra.mxu0 0.0
    %1148 = vmatprep.subr.mxu0 0.0
    %1149 = vmatpush1.msra.mxu0 %v598
    %1150 = vmatprep.subr.mxu0 0.0
    %1151 = vmatpush2.msra.mxu0 0.0
    %1152 = vmatprep.subr.mxu0 0.0
    %1153 = vmatpush2.msra.mxu0 0.0
    %1154 = vmatprep.subr.mxu0 0.0
    %1155 = vmatpush2.msra.mxu0 0.0
    %1156 = vmatprep.subr.mxu0 0.0
    %1157 = vmatpush2.msra.mxu0 0.0
    %1158 = vmatprep.subr.mxu0 0.0
    %1159 = vmatpush2.msra.mxu0 0.0
    %1160 = vmatprep.subr.mxu0 0.0
    %1161 = vmatpush2.msra.mxu0 0.0
    %1162 = vmatprep.subr.mxu0 0.0
    %1163 = vmatpush2.msra.mxu0 0.0
    %1164 = vmatprep.subr.mxu0 0.0
    %1165 = vmatpush2.msra.mxu0 0.0
    %1166 = vmatprep.subr.mxu0 0.0
    %1167 = vmatpush2.msra.mxu0 0.0
    %1168 = vmatprep.subr.mxu0 0.0
    %1169 = vmatpush2.msra.mxu0 0.0
    %1170 = vmatprep.subr.mxu0 0.0
    %1171 = vmatpush2.msra.mxu0 0.0
    %1172 = vmatprep.subr.mxu0 0.0
    %1173 = vmatpush2.msra.mxu0 0.0
    %1174 = vmatprep.subr.mxu0 0.0
    %1175 = vmatpush2.msra.mxu0 0.0
    %1176 = vmatprep.subr.mxu0 0.0
    %1177 = vmatpush2.msra.mxu0 0.0
    %1178 = vmatprep.subr.mxu0 0.0
    %1179 = vmatpush2.msra.mxu0 0.0
    %1180 = vmatprep.subr.mxu0 0.0
    %1181 = vmatpush2.msra.mxu0 0.0
    %1182 = vmatprep.mubr.f32.mxu0 0.0
    %1183 = vmatmul.mubr.f32.gmra.mxu0 %v1113
    %v1184 = vpop.f32.mrf.mxu0
    %v1185 = vadd.f32 %v1104, %v1184
    %v1186 = vpop.f32.mrf.mxu0
    %1187 = vmatprep.mubr.f32.mxu0 0.0
    %1188 = vmatmul.mubr.f32.gmra.mxu0 %v1116
    %v1189 = vpop.f32.mrf.mxu0
    %v1190 = vadd.f32 %v1109, %v1189
    %v1191 = vpop.f32.mrf.mxu0
    %1192 = vdwg.mxu0
    %s1193 = scalar_lea.vmem %s2, 64
    %v1194 = vld [vmem:[%s1193] sm:$0xff]
    %v1195 = vld [vmem:[%s1193 + $0x8] sm:$0xff]
    %v1196 = vld [vmem:[%s1193 + $0x10] sm:$0xff]
    %v1197 = vld [vmem:[%s1193 + $0x18] sm:$0xff]
    %s1198 = scalar_lea.vmem %s2, 192
    %v1199 = vld [vmem:[%s1198] sm:$0xff]
    %v1200 = vld [vmem:[%s1198 + $0x8] sm:$0xff]
    %v1201 = vld [vmem:[%s1198 + $0x10] sm:$0xff]
    %v1202 = vld [vmem:[%s1198 + $0x18] sm:$0xff]
    %s1203 = scalar_lea.vmem %s2, 320
    %v1204 = vld [vmem:[%s1203] sm:$0xff]
    %v1205 = vld [vmem:[%s1203 + $0x8] sm:$0xff]
    %v1206 = vld [vmem:[%s1203 + $0x10] sm:$0xff]
    %v1207 = vld [vmem:[%s1203 + $0x18] sm:$0xff]
    %1208 = vmatprep.subr.mxu0 0.0
    %1209 = vmatpush1.msra.mxu0 0.0
    %1210 = vmatprep.subr.mxu0 0.0
    %1211 = vmatpush1.msra.mxu0 0.0
    %1212 = vmatprep.subr.mxu0 0.0
    %1213 = vmatpush1.msra.mxu0 0.0
    %1214 = vmatprep.subr.mxu0 0.0
    %1215 = vmatpush1.msra.mxu0 0.0
    %1216 = vmatprep.subr.mxu0 0.0
    %1217 = vmatpush1.msra.mxu0 0.0
    %1218 = vmatprep.subr.mxu0 0.0
    %1219 = vmatpush1.msra.mxu0 0.0
    %1220 = vmatprep.subr.mxu0 0.0
    %1221 = vmatpush1.msra.mxu0 0.0
    %1222 = vmatprep.subr.mxu0 0.0
    %1223 = vmatpush1.msra.mxu0 0.0
    %1224 = vmatprep.subr.mxu0 0.0
    %1225 = vmatpush1.msra.mxu0 0.0
    %1226 = vmatprep.subr.mxu0 0.0
    %1227 = vmatpush1.msra.mxu0 0.0
    %1228 = vmatprep.subr.mxu0 0.0
    %1229 = vmatpush1.msra.mxu0 0.0
    %1230 = vmatprep.subr.mxu0 0.0
    %1231 = vmatpush1.msra.mxu0 0.0
    %1232 = vmatprep.subr.mxu0 0.0
    %1233 = vmatpush1.msra.mxu0 %v1197
    %1234 = vmatprep.subr.mxu0 0.0
    %1235 = vmatpush1.msra.mxu0 %v1196
    %1236 = vmatprep.subr.mxu0 0.0
    %1237 = vmatpush1.msra.mxu0 %v1195
    %1238 = vmatprep.subr.mxu0 0.0
    %1239 = vmatpush1.msra.mxu0 %v1194
    %1240 = vmatprep.subr.mxu0 0.0
    %1241 = vmatpush2.msra.mxu0 0.0
    %1242 = vmatprep.subr.mxu0 0.0
    %1243 = vmatpush2.msra.mxu0 0.0
    %1244 = vmatprep.subr.mxu0 0.0
    %1245 = vmatpush2.msra.mxu0 0.0
    %1246 = vmatprep.subr.mxu0 0.0
    %1247 = vmatpush2.msra.mxu0 0.0
    %1248 = vmatprep.subr.mxu0 0.0
    %1249 = vmatpush2.msra.mxu0 0.0
    %1250 = vmatprep.subr.mxu0 0.0
    %1251 = vmatpush2.msra.mxu0 0.0
    %1252 = vmatprep.subr.mxu0 0.0
    %1253 = vmatpush2.msra.mxu0 0.0
    %1254 = vmatprep.subr.mxu0 0.0
    %1255 = vmatpush2.msra.mxu0 0.0
    %1256 = vmatprep.subr.mxu0 0.0
    %1257 = vmatpush2.msra.mxu0 0.0
    %1258 = vmatprep.subr.mxu0 0.0
    %1259 = vmatpush2.msra.mxu0 0.0
    %1260 = vmatprep.subr.mxu0 0.0
    %1261 = vmatpush2.msra.mxu0 0.0
    %1262 = vmatprep.subr.mxu0 0.0
    %1263 = vmatpush2.msra.mxu0 0.0
    %1264 = vmatprep.subr.mxu0 0.0
    %1265 = vmatpush2.msra.mxu0 0.0
    %1266 = vmatprep.subr.mxu0 0.0
    %1267 = vmatpush2.msra.mxu0 0.0
    %1268 = vmatprep.subr.mxu0 0.0
    %1269 = vmatpush2.msra.mxu0 0.0
    %1270 = vmatprep.subr.mxu0 0.0
    %1271 = vmatpush2.msra.mxu0 0.0
    %1272 = vmatprep.mubr.f32.mxu0 0.0
    %1273 = vmatmul.mubr.f32.gmra.mxu0 %v176
    %v1274 = vpop.f32.mrf.mxu0
    %v1275 = vadd.f32 0.0, %v1274
    %v1276 = vpop.f32.mrf.mxu0
    %1277 = vmatprep.mubr.f32.mxu0 0.0
    %1278 = vmatmul.mubr.f32.gmra.mxu0 %v179
    %v1279 = vpop.f32.mrf.mxu0
    %v1280 = vadd.f32 0.0, %v1279
    %v1281 = vpop.f32.mrf.mxu0
    %1282 = vdwg.mxu0
    %1283 = vmatprep.subr.mxu0 0.0
    %1284 = vmatpush1.msra.mxu0 0.0
    %1285 = vmatprep.subr.mxu0 0.0
    %1286 = vmatpush1.msra.mxu0 0.0
    %1287 = vmatprep.subr.mxu0 0.0
    %1288 = vmatpush1.msra.mxu0 0.0
    %1289 = vmatprep.subr.mxu0 0.0
    %1290 = vmatpush1.msra.mxu0 0.0
    %1291 = vmatprep.subr.mxu0 0.0
    %1292 = vmatpush1.msra.mxu0 0.0
    %1293 = vmatprep.subr.mxu0 0.0
    %1294 = vmatpush1.msra.mxu0 0.0
    %1295 = vmatprep.subr.mxu0 0.0
    %1296 = vmatpush1.msra.mxu0 0.0
    %1297 = vmatprep.subr.mxu0 0.0
    %1298 = vmatpush1.msra.mxu0 0.0
    %1299 = vmatprep.subr.mxu0 0.0
    %1300 = vmatpush1.msra.mxu0 0.0
    %1301 = vmatprep.subr.mxu0 0.0
    %1302 = vmatpush1.msra.mxu0 0.0
    %1303 = vmatprep.subr.mxu0 0.0
    %1304 = vmatpush1.msra.mxu0 0.0
    %1305 = vmatprep.subr.mxu0 0.0
    %1306 = vmatpush1.msra.mxu0 0.0
    %1307 = vmatprep.subr.mxu0 0.0
    %1308 = vmatpush1.msra.mxu0 %v1202
    %1309 = vmatprep.subr.mxu0 0.0
    %1310 = vmatpush1.msra.mxu0 %v1201
    %1311 = vmatprep.subr.mxu0 0.0
    %1312 = vmatpush1.msra.mxu0 %v1200
    %1313 = vmatprep.subr.mxu0 0.0
    %1314 = vmatpush1.msra.mxu0 %v1199
    %1315 = vmatprep.subr.mxu0 0.0
    %1316 = vmatpush2.msra.mxu0 0.0
    %1317 = vmatprep.subr.mxu0 0.0
    %1318 = vmatpush2.msra.mxu0 0.0
    %1319 = vmatprep.subr.mxu0 0.0
    %1320 = vmatpush2.msra.mxu0 0.0
    %1321 = vmatprep.subr.mxu0 0.0
    %1322 = vmatpush2.msra.mxu0 0.0
    %1323 = vmatprep.subr.mxu0 0.0
    %1324 = vmatpush2.msra.mxu0 0.0
    %1325 = vmatprep.subr.mxu0 0.0
    %1326 = vmatpush2.msra.mxu0 0.0
    %1327 = vmatprep.subr.mxu0 0.0
    %1328 = vmatpush2.msra.mxu0 0.0
    %1329 = vmatprep.subr.mxu0 0.0
    %1330 = vmatpush2.msra.mxu0 0.0
    %1331 = vmatprep.subr.mxu0 0.0
    %1332 = vmatpush2.msra.mxu0 0.0
    %1333 = vmatprep.subr.mxu0 0.0
    %1334 = vmatpush2.msra.mxu0 0.0
    %1335 = vmatprep.subr.mxu0 0.0
    %1336 = vmatpush2.msra.mxu0 0.0
    %1337 = vmatprep.subr.mxu0 0.0
    %1338 = vmatpush2.msra.mxu0 0.0
    %1339 = vmatprep.subr.mxu0 0.0
    %1340 = vmatpush2.msra.mxu0 0.0
    %1341 = vmatprep.subr.mxu0 0.0
    %1342 = vmatpush2.msra.mxu0 0.0
    %1343 = vmatprep.subr.mxu0 0.0
    %1344 = vmatpush2.msra.mxu0 0.0
    %1345 = vmatprep.subr.mxu0 0.0
    %1346 = vmatpush2.msra.mxu0 0.0
    %1347 = vmatprep.mubr.f32.mxu0 0.0
    %1348 = vmatmul.mubr.f32.gmra.mxu0 %v176
    %v1349 = vpop.f32.mrf.mxu0
    %v1350 = vadd.f32 0.0, %v1349
    %v1351 = vpop.f32.mrf.mxu0
    %1352 = vmatprep.mubr.f32.mxu0 0.0
    %1353 = vmatmul.mubr.f32.gmra.mxu0 %v179
    %v1354 = vpop.f32.mrf.mxu0
    %v1355 = vadd.f32 0.0, %v1354
    %v1356 = vpop.f32.mrf.mxu0
    %1357 = vdwg.mxu0
    %1358 = vmatprep.subr.mxu0 0.0
    %1359 = vmatpush1.msra.mxu0 0.0
    %1360 = vmatprep.subr.mxu0 0.0
    %1361 = vmatpush1.msra.mxu0 0.0
    %1362 = vmatprep.subr.mxu0 0.0
    %1363 = vmatpush1.msra.mxu0 0.0
    %1364 = vmatprep.subr.mxu0 0.0
    %1365 = vmatpush1.msra.mxu0 0.0
    %1366 = vmatprep.subr.mxu0 0.0
    %1367 = vmatpush1.msra.mxu0 0.0
    %1368 = vmatprep.subr.mxu0 0.0
    %1369 = vmatpush1.msra.mxu0 0.0
    %1370 = vmatprep.subr.mxu0 0.0
    %1371 = vmatpush1.msra.mxu0 0.0
    %1372 = vmatprep.subr.mxu0 0.0
    %1373 = vmatpush1.msra.mxu0 0.0
    %1374 = vmatprep.subr.mxu0 0.0
    %1375 = vmatpush1.msra.mxu0 0.0
    %1376 = vmatprep.subr.mxu0 0.0
    %1377 = vmatpush1.msra.mxu0 0.0
    %1378 = vmatprep.subr.mxu0 0.0
    %1379 = vmatpush1.msra.mxu0 0.0
    %1380 = vmatprep.subr.mxu0 0.0
    %1381 = vmatpush1.msra.mxu0 0.0
    %1382 = vmatprep.subr.mxu0 0.0
    %1383 = vmatpush1.msra.mxu0 %v1207
    %1384 = vmatprep.subr.mxu0 0.0
    %1385 = vmatpush1.msra.mxu0 %v1206
    %1386 = vmatprep.subr.mxu0 0.0
    %1387 = vmatpush1.msra.mxu0 %v1205
    %1388 = vmatprep.subr.mxu0 0.0
    %1389 = vmatpush1.msra.mxu0 %v1204
    %1390 = vmatprep.subr.mxu0 0.0
    %1391 = vmatpush2.msra.mxu0 0.0
    %1392 = vmatprep.subr.mxu0 0.0
    %1393 = vmatpush2.msra.mxu0 0.0
    %1394 = vmatprep.subr.mxu0 0.0
    %1395 = vmatpush2.msra.mxu0 0.0
    %1396 = vmatprep.subr.mxu0 0.0
    %1397 = vmatpush2.msra.mxu0 0.0
    %1398 = vmatprep.subr.mxu0 0.0
    %1399 = vmatpush2.msra.mxu0 0.0
    %1400 = vmatprep.subr.mxu0 0.0
    %1401 = vmatpush2.msra.mxu0 0.0
    %1402 = vmatprep.subr.mxu0 0.0
    %1403 = vmatpush2.msra.mxu0 0.0
    %1404 = vmatprep.subr.mxu0 0.0
    %1405 = vmatpush2.msra.mxu0 0.0
    %1406 = vmatprep.subr.mxu0 0.0
    %1407 = vmatpush2.msra.mxu0 0.0
    %1408 = vmatprep.subr.mxu0 0.0
    %1409 = vmatpush2.msra.mxu0 0.0
    %1410 = vmatprep.subr.mxu0 0.0
    %1411 = vmatpush2.msra.mxu0 0.0
    %1412 = vmatprep.subr.mxu0 0.0
    %1413 = vmatpush2.msra.mxu0 0.0
    %1414 = vmatprep.subr.mxu0 0.0
    %1415 = vmatpush2.msra.mxu0 0.0
    %1416 = vmatprep.subr.mxu0 0.0
    %1417 = vmatpush2.msra.mxu0 0.0
    %1418 = vmatprep.subr.mxu0 0.0
    %1419 = vmatpush2.msra.mxu0 0.0
    %1420 = vmatprep.subr.mxu0 0.0
    %1421 = vmatpush2.msra.mxu0 0.0
    %1422 = vmatprep.mubr.f32.mxu0 0.0
    %1423 = vmatmul.mubr.f32.gmra.mxu0 %v176
    %v1424 = vpop.f32.mrf.mxu0
    %v1425 = vadd.f32 0.0, %v1424
    %v1426 = vpop.f32.mrf.mxu0
    %1427 = vmatprep.mubr.f32.mxu0 0.0
    %1428 = vmatmul.mubr.f32.gmra.mxu0 %v179
    %v1429 = vpop.f32.mrf.mxu0
    %v1430 = vadd.f32 0.0, %v1429
    %v1431 = vpop.f32.mrf.mxu0
    %1432 = vdwg.mxu0
    %v1434 = vsel %vm406, %v1275, 0
    %v1437 = vsel %vm406, %v1280, 0
    %v1440 = vsel %vm406, %v1350, 0
    %v1443 = vsel %vm406, %v1355, 0
    %1445 = vmatprep.subr.mxu0 0.0
    %1446 = vmatpush1.xpose.msra.mxu0 0.0
    %1447 = vmatprep.subr.mxu0 0.0
    %1448 = vmatpush1.xpose.msra.mxu0 0.0
    %1449 = vmatprep.subr.mxu0 0.0
    %1450 = vmatpush1.xpose.msra.mxu0 0.0
    %1451 = vmatprep.subr.mxu0 0.0
    %1452 = vmatpush1.xpose.msra.mxu0 0.0
    %1453 = vmatprep.subr.mxu0 0.0
    %1454 = vmatpush1.xpose.msra.mxu0 0.0
    %1455 = vmatprep.subr.mxu0 0.0
    %1456 = vmatpush1.xpose.msra.mxu0 0.0
    %1457 = vmatprep.subr.mxu0 0.0
    %1458 = vmatpush1.xpose.msra.mxu0 0.0
    %1459 = vmatprep.subr.mxu0 0.0
    %1460 = vmatpush1.xpose.msra.mxu0 0.0
    %1461 = vmatprep.subr.mxu0 0.0
    %1462 = vmatpush1.xpose.msra.mxu0 0.0
    %1463 = vmatprep.subr.mxu0 0.0
    %1464 = vmatpush1.xpose.msra.mxu0 0.0
    %1465 = vmatprep.subr.mxu0 0.0
    %1466 = vmatpush1.xpose.msra.mxu0 0.0
    %1467 = vmatprep.subr.mxu0 0.0
    %1468 = vmatpush1.xpose.msra.mxu0 0.0
    %1469 = vmatprep.subr.mxu0 0.0
    %1470 = vmatpush1.xpose.msra.mxu0 0.0
    %1471 = vmatprep.subr.mxu0 0.0
    %1472 = vmatpush1.xpose.msra.mxu0 0.0
    %1473 = vmatprep.subr.mxu0 0.0
    %1474 = vmatpush1.xpose.msra.mxu0 %v1443
    %1475 = vmatprep.subr.mxu0 0.0
    %1476 = vmatpush1.xpose.msra.mxu0 %v1440
    %1477 = vmatprep.subr.mxu0 0.0
    %1478 = vmatpush2.xpose.msra.mxu0 0.0
    %1479 = vmatprep.subr.mxu0 0.0
    %1480 = vmatpush2.xpose.msra.mxu0 0.0
    %1481 = vmatprep.subr.mxu0 0.0
    %1482 = vmatpush2.xpose.msra.mxu0 0.0
    %1483 = vmatprep.subr.mxu0 0.0
    %1484 = vmatpush2.xpose.msra.mxu0 0.0
    %1485 = vmatprep.subr.mxu0 0.0
    %1486 = vmatpush2.xpose.msra.mxu0 0.0
    %1487 = vmatprep.subr.mxu0 0.0
    %1488 = vmatpush2.xpose.msra.mxu0 0.0
    %1489 = vmatprep.subr.mxu0 0.0
    %1490 = vmatpush2.xpose.msra.mxu0 0.0
    %1491 = vmatprep.subr.mxu0 0.0
    %1492 = vmatpush2.xpose.msra.mxu0 0.0
    %1493 = vmatprep.subr.mxu0 0.0
    %1494 = vmatpush2.xpose.msra.mxu0 0.0
    %1495 = vmatprep.subr.mxu0 0.0
    %1496 = vmatpush2.xpose.msra.mxu0 0.0
    %1497 = vmatprep.subr.mxu0 0.0
    %1498 = vmatpush2.xpose.msra.mxu0 0.0
    %1499 = vmatprep.subr.mxu0 0.0
    %1500 = vmatpush2.xpose.msra.mxu0 0.0
    %1501 = vmatprep.subr.mxu0 0.0
    %1502 = vmatpush2.xpose.msra.mxu0 0.0
    %1503 = vmatprep.subr.mxu0 0.0
    %1504 = vmatpush2.xpose.msra.mxu0 0.0
    %1505 = vmatprep.subr.mxu0 0.0
    %1506 = vmatpush2.xpose.msra.mxu0 0.0
    %1507 = vmatprep.subr.mxu0 0.0
    %1508 = vmatpush2.xpose.msra.mxu0 0.0
    %1509 = vmatprep.mubr.f32.mxu0 0.0
    %1510 = vmatmul.mubr.f32.gmra.mxu0 %v1434
    %v1511 = vpop.f32.mrf.mxu0
    %v1512 = vadd.f32 %v118, %v1511
    %v1513 = vpop.f32.mrf.mxu0
    %1514 = vmatprep.mubr.f32.mxu0 0.0
    %1515 = vmatmul.mubr.f32.gmra.mxu0 %v1437
    %v1516 = vpop.f32.mrf.mxu0
    %v1517 = vadd.f32 %v119, %v1516
    %v1518 = vpop.f32.mrf.mxu0
    %1519 = vdwg.mxu0
    %v1520 = vsel %vm494, %v1512, -inf
    %1521 = vmax.xlane.f32.xlu0 %v1520
    %v1522 = vpop.xlane.xlu0 %1521
    %v1523 = vsel %vm494, %v1517, -inf
    %1524 = vmax.xlane.f32.xlu0 %v1523
    %v1525 = vpop.xlane.xlu0 %1524
    %v1526 = vsub.f32 %v1512, %v1522
    %v1527 = vsub.f32 %v1517, %v1525
    %v1528 = vmul.f32 %v1526, 1.442695
    %v1529 = vpow.pop %v1528
    %v1530 = vmul.f32 %v1527, 1.442695
    %v1531 = vpow.pop %v1530
    %v1532 = vsel %vm494, %v1529, 0.0
    %1533 = vadd.xlane.f32.xlu0 %v1532
    %v1534 = vpop.xlane.xlu0 %1533
    %v1535 = vsel %vm494, %v1531, 0.0
    %1536 = vadd.xlane.f32.xlu0 %v1535
    %v1537 = vpop.xlane.xlu0 %1536
    %v1538 = vrcp.pop %v1534
    %v1539 = vrcp.pop %v1537
    %v1540 = vmul.f32 %v1529, %v1538
    %v1541 = vmul.f32 %v1531, %v1539
    %v1543 = vsel %vm494, %v1540, 0
    %v1546 = vsel %vm494, %v1541, 0
    %1548 = vmatprep.subr.mxu0 0.0
    %1549 = vmatpush1.msra.mxu0 0.0
    %1550 = vmatprep.subr.mxu0 0.0
    %1551 = vmatpush1.msra.mxu0 0.0
    %1552 = vmatprep.subr.mxu0 0.0
    %1553 = vmatpush1.msra.mxu0 0.0
    %1554 = vmatprep.subr.mxu0 0.0
    %1555 = vmatpush1.msra.mxu0 0.0
    %1556 = vmatprep.subr.mxu0 0.0
    %1557 = vmatpush1.msra.mxu0 0.0
    %1558 = vmatprep.subr.mxu0 0.0
    %1559 = vmatpush1.msra.mxu0 0.0
    %1560 = vmatprep.subr.mxu0 0.0
    %1561 = vmatpush1.msra.mxu0 0.0
    %1562 = vmatprep.subr.mxu0 0.0
    %1563 = vmatpush1.msra.mxu0 0.0
    %1564 = vmatprep.subr.mxu0 0.0
    %1565 = vmatpush1.msra.mxu0 0.0
    %1566 = vmatprep.subr.mxu0 0.0
    %1567 = vmatpush1.msra.mxu0 0.0
    %1568 = vmatprep.subr.mxu0 0.0
    %1569 = vmatpush1.msra.mxu0 0.0
    %1570 = vmatprep.subr.mxu0 0.0
    %1571 = vmatpush1.msra.mxu0 0.0
    %1572 = vmatprep.subr.mxu0 0.0
    %1573 = vmatpush1.msra.mxu0 0.0
    %1574 = vmatprep.subr.mxu0 0.0
    %1575 = vmatpush1.msra.mxu0 0.0
    %1576 = vmatprep.subr.mxu0 0.0
    %1577 = vmatpush1.msra.mxu0 %v1430
    %1578 = vmatprep.subr.mxu0 0.0
    %1579 = vmatpush1.msra.mxu0 %v1425
    %1580 = vmatprep.subr.mxu0 0.0
    %1581 = vmatpush2.msra.mxu0 0.0
    %1582 = vmatprep.subr.mxu0 0.0
    %1583 = vmatpush2.msra.mxu0 0.0
    %1584 = vmatprep.subr.mxu0 0.0
    %1585 = vmatpush2.msra.mxu0 0.0
    %1586 = vmatprep.subr.mxu0 0.0
    %1587 = vmatpush2.msra.mxu0 0.0
    %1588 = vmatprep.subr.mxu0 0.0
    %1589 = vmatpush2.msra.mxu0 0.0
    %1590 = vmatprep.subr.mxu0 0.0
    %1591 = vmatpush2.msra.mxu0 0.0
    %1592 = vmatprep.subr.mxu0 0.0
    %1593 = vmatpush2.msra.mxu0 0.0
    %1594 = vmatprep.subr.mxu0 0.0
    %1595 = vmatpush2.msra.mxu0 0.0
    %1596 = vmatprep.subr.mxu0 0.0
    %1597 = vmatpush2.msra.mxu0 0.0
    %1598 = vmatprep.subr.mxu0 0.0
    %1599 = vmatpush2.msra.mxu0 0.0
    %1600 = vmatprep.subr.mxu0 0.0
    %1601 = vmatpush2.msra.mxu0 0.0
    %1602 = vmatprep.subr.mxu0 0.0
    %1603 = vmatpush2.msra.mxu0 0.0
    %1604 = vmatprep.subr.mxu0 0.0
    %1605 = vmatpush2.msra.mxu0 0.0
    %1606 = vmatprep.subr.mxu0 0.0
    %1607 = vmatpush2.msra.mxu0 0.0
    %1608 = vmatprep.subr.mxu0 0.0
    %1609 = vmatpush2.msra.mxu0 0.0
    %1610 = vmatprep.subr.mxu0 0.0
    %1611 = vmatpush2.msra.mxu0 0.0
    %1612 = vmatprep.mubr.f32.mxu0 0.0
    %1613 = vmatmul.mubr.f32.gmra.mxu0 %v1543
    %v1614 = vpop.f32.mrf.mxu0
    %v1615 = vadd.f32 0.0, %v1614
    %v1616 = vpop.f32.mrf.mxu0
    %1617 = vmatprep.mubr.f32.mxu0 0.0
    %1618 = vmatmul.mubr.f32.gmra.mxu0 %v1546
    %v1619 = vpop.f32.mrf.mxu0
    %v1620 = vadd.f32 0.0, %v1619
    %v1621 = vpop.f32.mrf.mxu0
    %1622 = vdwg.mxu0
    %s1623 = scalar_lea.vmem [#allocation5], 16
    %v1624 = vld [vmem:[%s1623] sm:$0xff]
    %v1626 = vsel %vm406, %v1615, 0
    %v1629 = vsel %vm406, %v1620, 0
    %1631 = vmatprep.subr.mxu0 0.0
    %1632 = vmatpush1.msra.mxu0 0.0
    %1633 = vmatprep.subr.mxu0 0.0
    %1634 = vmatpush1.msra.mxu0 0.0
    %1635 = vmatprep.subr.mxu0 0.0
    %1636 = vmatpush1.msra.mxu0 0.0
    %1637 = vmatprep.subr.mxu0 0.0
    %1638 = vmatpush1.msra.mxu0 0.0
    %1639 = vmatprep.subr.mxu0 0.0
    %1640 = vmatpush1.msra.mxu0 0.0
    %1641 = vmatprep.subr.mxu0 0.0
    %1642 = vmatpush1.msra.mxu0 0.0
    %1643 = vmatprep.subr.mxu0 0.0
    %1644 = vmatpush1.msra.mxu0 0.0
    %1645 = vmatprep.subr.mxu0 0.0
    %1646 = vmatpush1.msra.mxu0 0.0
    %1647 = vmatprep.subr.mxu0 0.0
    %1648 = vmatpush1.msra.mxu0 0.0
    %1649 = vmatprep.subr.mxu0 0.0
    %1650 = vmatpush1.msra.mxu0 0.0
    %1651 = vmatprep.subr.mxu0 0.0
    %1652 = vmatpush1.msra.mxu0 0.0
    %1653 = vmatprep.subr.mxu0 0.0
    %1654 = vmatpush1.msra.mxu0 0.0
    %1655 = vmatprep.subr.mxu0 0.0
    %1656 = vmatpush1.msra.mxu0 0.0
    %1657 = vmatprep.subr.mxu0 0.0
    %1658 = vmatpush1.msra.mxu0 0.0
    %1659 = vmatprep.subr.mxu0 0.0
    %1660 = vmatpush1.msra.mxu0 0.0
    %1661 = vmatprep.subr.mxu0 0.0
    %1662 = vmatpush1.msra.mxu0 %v1624
    %1663 = vmatprep.subr.mxu0 0.0
    %1664 = vmatpush2.msra.mxu0 0.0
    %1665 = vmatprep.subr.mxu0 0.0
    %1666 = vmatpush2.msra.mxu0 0.0
    %1667 = vmatprep.subr.mxu0 0.0
    %1668 = vmatpush2.msra.mxu0 0.0
    %1669 = vmatprep.subr.mxu0 0.0
    %1670 = vmatpush2.msra.mxu0 0.0
    %1671 = vmatprep.subr.mxu0 0.0
    %1672 = vmatpush2.msra.mxu0 0.0
    %1673 = vmatprep.subr.mxu0 0.0
    %1674 = vmatpush2.msra.mxu0 0.0
    %1675 = vmatprep.subr.mxu0 0.0
    %1676 = vmatpush2.msra.mxu0 0.0
    %1677 = vmatprep.subr.mxu0 0.0
    %1678 = vmatpush2.msra.mxu0 0.0
    %1679 = vmatprep.subr.mxu0 0.0
    %1680 = vmatpush2.msra.mxu0 0.0
    %1681 = vmatprep.subr.mxu0 0.0
    %1682 = vmatpush2.msra.mxu0 0.0
    %1683 = vmatprep.subr.mxu0 0.0
    %1684 = vmatpush2.msra.mxu0 0.0
    %1685 = vmatprep.subr.mxu0 0.0
    %1686 = vmatpush2.msra.mxu0 0.0
    %1687 = vmatprep.subr.mxu0 0.0
    %1688 = vmatpush2.msra.mxu0 0.0
    %1689 = vmatprep.subr.mxu0 0.0
    %1690 = vmatpush2.msra.mxu0 0.0
    %1691 = vmatprep.subr.mxu0 0.0
    %1692 = vmatpush2.msra.mxu0 0.0
    %1693 = vmatprep.subr.mxu0 0.0
    %1694 = vmatpush2.msra.mxu0 0.0
    %1695 = vmatprep.mubr.f32.mxu0 0.0
    %1696 = vmatmul.mubr.f32.gmra.mxu0 %v1626
    %v1697 = vpop.f32.mrf.mxu0
    %v1698 = vadd.f32 0.0, %v1697
    %v1699 = vpop.f32.mrf.mxu0
    %1700 = vmatprep.mubr.f32.mxu0 0.0
    %1701 = vmatmul.mubr.f32.gmra.mxu0 %v1629
    %v1702 = vpop.f32.mrf.mxu0
    %v1703 = vadd.f32 0.0, %v1702
    %v1704 = vpop.f32.mrf.mxu0
    %1705 = vdwg.mxu0
    %v1706 = vadd.f32 %v1185, %v1698
    %v1707 = vadd.f32 %v1190, %v1703
    %s1708 = scalar_lea.vmem %s2, 96
    %v1709 = vld [vmem:[%s1708] sm:$0xff]
    %v1710 = vld [vmem:[%s1708 + $0x8] sm:$0xff]
    %v1711 = vld [vmem:[%s1708 + $0x10] sm:$0xff]
    %v1712 = vld [vmem:[%s1708 + $0x18] sm:$0xff]
    %s1713 = scalar_lea.vmem %s2, 224
    %v1714 = vld [vmem:[%s1713] sm:$0xff]
    %v1715 = vld [vmem:[%s1713 + $0x8] sm:$0xff]
    %v1716 = vld [vmem:[%s1713 + $0x10] sm:$0xff]
    %v1717 = vld [vmem:[%s1713 + $0x18] sm:$0xff]
    %s1718 = scalar_lea.vmem %s2, 352
    %v1719 = vld [vmem:[%s1718] sm:$0xff]
    %v1720 = vld [vmem:[%s1718 + $0x8] sm:$0xff]
    %v1721 = vld [vmem:[%s1718 + $0x10] sm:$0xff]
    %v1722 = vld [vmem:[%s1718 + $0x18] sm:$0xff]
    %1723 = vmatprep.subr.mxu0 0.0
    %1724 = vmatpush1.msra.mxu0 0.0
    %1725 = vmatprep.subr.mxu0 0.0
    %1726 = vmatpush1.msra.mxu0 0.0
    %1727 = vmatprep.subr.mxu0 0.0
    %1728 = vmatpush1.msra.mxu0 0.0
    %1729 = vmatprep.subr.mxu0 0.0
    %1730 = vmatpush1.msra.mxu0 0.0
    %1731 = vmatprep.subr.mxu0 0.0
    %1732 = vmatpush1.msra.mxu0 0.0
    %1733 = vmatprep.subr.mxu0 0.0
    %1734 = vmatpush1.msra.mxu0 0.0
    %1735 = vmatprep.subr.mxu0 0.0
    %1736 = vmatpush1.msra.mxu0 0.0
    %1737 = vmatprep.subr.mxu0 0.0
    %1738 = vmatpush1.msra.mxu0 0.0
    %1739 = vmatprep.subr.mxu0 0.0
    %1740 = vmatpush1.msra.mxu0 0.0
    %1741 = vmatprep.subr.mxu0 0.0
    %1742 = vmatpush1.msra.mxu0 0.0
    %1743 = vmatprep.subr.mxu0 0.0
    %1744 = vmatpush1.msra.mxu0 0.0
    %1745 = vmatprep.subr.mxu0 0.0
    %1746 = vmatpush1.msra.mxu0 0.0
    %1747 = vmatprep.subr.mxu0 0.0
    %1748 = vmatpush1.msra.mxu0 %v1712
    %1749 = vmatprep.subr.mxu0 0.0
    %1750 = vmatpush1.msra.mxu0 %v1711
    %1751 = vmatprep.subr.mxu0 0.0
    %1752 = vmatpush1.msra.mxu0 %v1710
    %1753 = vmatprep.subr.mxu0 0.0
    %1754 = vmatpush1.msra.mxu0 %v1709
    %1755 = vmatprep.subr.mxu0 0.0
    %1756 = vmatpush2.msra.mxu0 0.0
    %1757 = vmatprep.subr.mxu0 0.0
    %1758 = vmatpush2.msra.mxu0 0.0
    %1759 = vmatprep.subr.mxu0 0.0
    %1760 = vmatpush2.msra.mxu0 0.0
    %1761 = vmatprep.subr.mxu0 0.0
    %1762 = vmatpush2.msra.mxu0 0.0
    %1763 = vmatprep.subr.mxu0 0.0
    %1764 = vmatpush2.msra.mxu0 0.0
    %1765 = vmatprep.subr.mxu0 0.0
    %1766 = vmatpush2.msra.mxu0 0.0
    %1767 = vmatprep.subr.mxu0 0.0
    %1768 = vmatpush2.msra.mxu0 0.0
    %1769 = vmatprep.subr.mxu0 0.0
    %1770 = vmatpush2.msra.mxu0 0.0
    %1771 = vmatprep.subr.mxu0 0.0
    %1772 = vmatpush2.msra.mxu0 0.0
    %1773 = vmatprep.subr.mxu0 0.0
    %1774 = vmatpush2.msra.mxu0 0.0
    %1775 = vmatprep.subr.mxu0 0.0
    %1776 = vmatpush2.msra.mxu0 0.0
    %1777 = vmatprep.subr.mxu0 0.0
    %1778 = vmatpush2.msra.mxu0 0.0
    %1779 = vmatprep.subr.mxu0 0.0
    %1780 = vmatpush2.msra.mxu0 0.0
    %1781 = vmatprep.subr.mxu0 0.0
    %1782 = vmatpush2.msra.mxu0 0.0
    %1783 = vmatprep.subr.mxu0 0.0
    %1784 = vmatpush2.msra.mxu0 0.0
    %1785 = vmatprep.subr.mxu0 0.0
    %1786 = vmatpush2.msra.mxu0 0.0
    %1787 = vmatprep.mubr.f32.mxu0 0.0
    %1788 = vmatmul.mubr.f32.gmra.mxu0 %v176
    %v1789 = vpop.f32.mrf.mxu0
    %v1790 = vadd.f32 0.0, %v1789
    %v1791 = vpop.f32.mrf.mxu0
    %1792 = vmatprep.mubr.f32.mxu0 0.0
    %1793 = vmatmul.mubr.f32.gmra.mxu0 %v179
    %v1794 = vpop.f32.mrf.mxu0
    %v1795 = vadd.f32 0.0, %v1794
    %v1796 = vpop.f32.mrf.mxu0
    %1797 = vdwg.mxu0
    %1798 = vmatprep.subr.mxu0 0.0
    %1799 = vmatpush1.msra.mxu0 0.0
    %1800 = vmatprep.subr.mxu0 0.0
    %1801 = vmatpush1.msra.mxu0 0.0
    %1802 = vmatprep.subr.mxu0 0.0
    %1803 = vmatpush1.msra.mxu0 0.0
    %1804 = vmatprep.subr.mxu0 0.0
    %1805 = vmatpush1.msra.mxu0 0.0
    %1806 = vmatprep.subr.mxu0 0.0
    %1807 = vmatpush1.msra.mxu0 0.0
    %1808 = vmatprep.subr.mxu0 0.0
    %1809 = vmatpush1.msra.mxu0 0.0
    %1810 = vmatprep.subr.mxu0 0.0
    %1811 = vmatpush1.msra.mxu0 0.0
    %1812 = vmatprep.subr.mxu0 0.0
    %1813 = vmatpush1.msra.mxu0 0.0
    %1814 = vmatprep.subr.mxu0 0.0
    %1815 = vmatpush1.msra.mxu0 0.0
    %1816 = vmatprep.subr.mxu0 0.0
    %1817 = vmatpush1.msra.mxu0 0.0
    %1818 = vmatprep.subr.mxu0 0.0
    %1819 = vmatpush1.msra.mxu0 0.0
    %1820 = vmatprep.subr.mxu0 0.0
    %1821 = vmatpush1.msra.mxu0 0.0
    %1822 = vmatprep.subr.mxu0 0.0
    %1823 = vmatpush1.msra.mxu0 %v1717
    %1824 = vmatprep.subr.mxu0 0.0
    %1825 = vmatpush1.msra.mxu0 %v1716
    %1826 = vmatprep.subr.mxu0 0.0
    %1827 = vmatpush1.msra.mxu0 %v1715
    %1828 = vmatprep.subr.mxu0 0.0
    %1829 = vmatpush1.msra.mxu0 %v1714
    %1830 = vmatprep.subr.mxu0 0.0
    %1831 = vmatpush2.msra.mxu0 0.0
    %1832 = vmatprep.subr.mxu0 0.0
    %1833 = vmatpush2.msra.mxu0 0.0
    %1834 = vmatprep.subr.mxu0 0.0
    %1835 = vmatpush2.msra.mxu0 0.0
    %1836 = vmatprep.subr.mxu0 0.0
    %1837 = vmatpush2.msra.mxu0 0.0
    %1838 = vmatprep.subr.mxu0 0.0
    %1839 = vmatpush2.msra.mxu0 0.0
    %1840 = vmatprep.subr.mxu0 0.0
    %1841 = vmatpush2.msra.mxu0 0.0
    %1842 = vmatprep.subr.mxu0 0.0
    %1843 = vmatpush2.msra.mxu0 0.0
    %1844 = vmatprep.subr.mxu0 0.0
    %1845 = vmatpush2.msra.mxu0 0.0
    %1846 = vmatprep.subr.mxu0 0.0
    %1847 = vmatpush2.msra.mxu0 0.0
    %1848 = vmatprep.subr.mxu0 0.0
    %1849 = vmatpush2.msra.mxu0 0.0
    %1850 = vmatprep.subr.mxu0 0.0
    %1851 = vmatpush2.msra.mxu0 0.0
    %1852 = vmatprep.subr.mxu0 0.0
    %1853 = vmatpush2.msra.mxu0 0.0
    %1854 = vmatprep.subr.mxu0 0.0
    %1855 = vmatpush2.msra.mxu0 0.0
    %1856 = vmatprep.subr.mxu0 0.0
    %1857 = vmatpush2.msra.mxu0 0.0
    %1858 = vmatprep.subr.mxu0 0.0
    %1859 = vmatpush2.msra.mxu0 0.0
    %1860 = vmatprep.subr.mxu0 0.0
    %1861 = vmatpush2.msra.mxu0 0.0
    %1862 = vmatprep.mubr.f32.mxu0 0.0
    %1863 = vmatmul.mubr.f32.gmra.mxu0 %v176
    %v1864 = vpop.f32.mrf.mxu0
    %v1865 = vadd.f32 0.0, %v1864
    %v1866 = vpop.f32.mrf.mxu0
    %1867 = vmatprep.mubr.f32.mxu0 0.0
    %1868 = vmatmul.mubr.f32.gmra.mxu0 %v179
    %v1869 = vpop.f32.mrf.mxu0
    %v1870 = vadd.f32 0.0, %v1869
    %v1871 = vpop.f32.mrf.mxu0
    %1872 = vdwg.mxu0
    %1873 = vmatprep.subr.mxu0 0.0
    %1874 = vmatpush1.msra.mxu0 0.0
    %1875 = vmatprep.subr.mxu0 0.0
    %1876 = vmatpush1.msra.mxu0 0.0
    %1877 = vmatprep.subr.mxu0 0.0
    %1878 = vmatpush1.msra.mxu0 0.0
    %1879 = vmatprep.subr.mxu0 0.0
    %1880 = vmatpush1.msra.mxu0 0.0
    %1881 = vmatprep.subr.mxu0 0.0
    %1882 = vmatpush1.msra.mxu0 0.0
    %1883 = vmatprep.subr.mxu0 0.0
    %1884 = vmatpush1.msra.mxu0 0.0
    %1885 = vmatprep.subr.mxu0 0.0
    %1886 = vmatpush1.msra.mxu0 0.0
    %1887 = vmatprep.subr.mxu0 0.0
    %1888 = vmatpush1.msra.mxu0 0.0
    %1889 = vmatprep.subr.mxu0 0.0
    %1890 = vmatpush1.msra.mxu0 0.0
    %1891 = vmatprep.subr.mxu0 0.0
    %1892 = vmatpush1.msra.mxu0 0.0
    %1893 = vmatprep.subr.mxu0 0.0
    %1894 = vmatpush1.msra.mxu0 0.0
    %1895 = vmatprep.subr.mxu0 0.0
    %1896 = vmatpush1.msra.mxu0 0.0
    %1897 = vmatprep.subr.mxu0 0.0
    %1898 = vmatpush1.msra.mxu0 %v1722
    %1899 = vmatprep.subr.mxu0 0.0
    %1900 = vmatpush1.msra.mxu0 %v1721
    %1901 = vmatprep.subr.mxu0 0.0
    %1902 = vmatpush1.msra.mxu0 %v1720
    %1903 = vmatprep.subr.mxu0 0.0
    %1904 = vmatpush1.msra.mxu0 %v1719
    %1905 = vmatprep.subr.mxu0 0.0
    %1906 = vmatpush2.msra.mxu0 0.0
    %1907 = vmatprep.subr.mxu0 0.0
    %1908 = vmatpush2.msra.mxu0 0.0
    %1909 = vmatprep.subr.mxu0 0.0
    %1910 = vmatpush2.msra.mxu0 0.0
    %1911 = vmatprep.subr.mxu0 0.0
    %1912 = vmatpush2.msra.mxu0 0.0
    %1913 = vmatprep.subr.mxu0 0.0
    %1914 = vmatpush2.msra.mxu0 0.0
    %1915 = vmatprep.subr.mxu0 0.0
    %1916 = vmatpush2.msra.mxu0 0.0
    %1917 = vmatprep.subr.mxu0 0.0
    %1918 = vmatpush2.msra.mxu0 0.0
    %1919 = vmatprep.subr.mxu0 0.0
    %1920 = vmatpush2.msra.mxu0 0.0
    %1921 = vmatprep.subr.mxu0 0.0
    %1922 = vmatpush2.msra.mxu0 0.0
    %1923 = vmatprep.subr.mxu0 0.0
    %1924 = vmatpush2.msra.mxu0 0.0
    %1925 = vmatprep.subr.mxu0 0.0
    %1926 = vmatpush2.msra.mxu0 0.0
    %1927 = vmatprep.subr.mxu0 0.0
    %1928 = vmatpush2.msra.mxu0 0.0
    %1929 = vmatprep.subr.mxu0 0.0
    %1930 = vmatpush2.msra.mxu0 0.0
    %1931 = vmatprep.subr.mxu0 0.0
    %1932 = vmatpush2.msra.mxu0 0.0
    %1933 = vmatprep.subr.mxu0 0.0
    %1934 = vmatpush2.msra.mxu0 0.0
    %1935 = vmatprep.subr.mxu0 0.0
    %1936 = vmatpush2.msra.mxu0 0.0
    %1937 = vmatprep.mubr.f32.mxu0 0.0
    %1938 = vmatmul.mubr.f32.gmra.mxu0 %v176
    %v1939 = vpop.f32.mrf.mxu0
    %v1940 = vadd.f32 0.0, %v1939
    %v1941 = vpop.f32.mrf.mxu0
    %1942 = vmatprep.mubr.f32.mxu0 0.0
    %1943 = vmatmul.mubr.f32.gmra.mxu0 %v179
    %v1944 = vpop.f32.mrf.mxu0
    %v1945 = vadd.f32 0.0, %v1944
    %v1946 = vpop.f32.mrf.mxu0
    %1947 = vdwg.mxu0
    %v1949 = vsel %vm406, %v1790, 0
    %v1952 = vsel %vm406, %v1795, 0
    %v1955 = vsel %vm406, %v1865, 0
    %v1958 = vsel %vm406, %v1870, 0
    %1960 = vmatprep.subr.mxu0 0.0
    %1961 = vmatpush1.xpose.msra.mxu0 0.0
    %1962 = vmatprep.subr.mxu0 0.0
    %1963 = vmatpush1.xpose.msra.mxu0 0.0
    %1964 = vmatprep.subr.mxu0 0.0
    %1965 = vmatpush1.xpose.msra.mxu0 0.0
    %1966 = vmatprep.subr.mxu0 0.0
    %1967 = vmatpush1.xpose.msra.mxu0 0.0
    %1968 = vmatprep.subr.mxu0 0.0
    %1969 = vmatpush1.xpose.msra.mxu0 0.0
    %1970 = vmatprep.subr.mxu0 0.0
    %1971 = vmatpush1.xpose.msra.mxu0 0.0
    %1972 = vmatprep.subr.mxu0 0.0
    %1973 = vmatpush1.xpose.msra.mxu0 0.0
    %1974 = vmatprep.subr.mxu0 0.0
    %1975 = vmatpush1.xpose.msra.mxu0 0.0
    %1976 = vmatprep.subr.mxu0 0.0
    %1977 = vmatpush1.xpose.msra.mxu0 0.0
    %1978 = vmatprep.subr.mxu0 0.0
    %1979 = vmatpush1.xpose.msra.mxu0 0.0
    %1980 = vmatprep.subr.mxu0 0.0
    %1981 = vmatpush1.xpose.msra.mxu0 0.0
    %1982 = vmatprep.subr.mxu0 0.0
    %1983 = vmatpush1.xpose.msra.mxu0 0.0
    %1984 = vmatprep.subr.mxu0 0.0
    %1985 = vmatpush1.xpose.msra.mxu0 0.0
    %1986 = vmatprep.subr.mxu0 0.0
    %1987 = vmatpush1.xpose.msra.mxu0 0.0
    %1988 = vmatprep.subr.mxu0 0.0
    %1989 = vmatpush1.xpose.msra.mxu0 %v1958
    %1990 = vmatprep.subr.mxu0 0.0
    %1991 = vmatpush1.xpose.msra.mxu0 %v1955
    %1992 = vmatprep.subr.mxu0 0.0
    %1993 = vmatpush2.xpose.msra.mxu0 0.0
    %1994 = vmatprep.subr.mxu0 0.0
    %1995 = vmatpush2.xpose.msra.mxu0 0.0
    %1996 = vmatprep.subr.mxu0 0.0
    %1997 = vmatpush2.xpose.msra.mxu0 0.0
    %1998 = vmatprep.subr.mxu0 0.0
    %1999 = vmatpush2.xpose.msra.mxu0 0.0
    %2000 = vmatprep.subr.mxu0 0.0
    %2001 = vmatpush2.xpose.msra.mxu0 0.0
    %2002 = vmatprep.subr.mxu0 0.0
    %2003 = vmatpush2.xpose.msra.mxu0 0.0
    %2004 = vmatprep.subr.mxu0 0.0
    %2005 = vmatpush2.xpose.msra.mxu0 0.0
    %2006 = vmatprep.subr.mxu0 0.0
    %2007 = vmatpush2.xpose.msra.mxu0 0.0
    %2008 = vmatprep.subr.mxu0 0.0
    %2009 = vmatpush2.xpose.msra.mxu0 0.0
    %2010 = vmatprep.subr.mxu0 0.0
    %2011 = vmatpush2.xpose.msra.mxu0 0.0
    %2012 = vmatprep.subr.mxu0 0.0
    %2013 = vmatpush2.xpose.msra.mxu0 0.0
    %2014 = vmatprep.subr.mxu0 0.0
    %2015 = vmatpush2.xpose.msra.mxu0 0.0
    %2016 = vmatprep.subr.mxu0 0.0
    %2017 = vmatpush2.xpose.msra.mxu0 0.0
    %2018 = vmatprep.subr.mxu0 0.0
    %2019 = vmatpush2.xpose.msra.mxu0 0.0
    %2020 = vmatprep.subr.mxu0 0.0
    %2021 = vmatpush2.xpose.msra.mxu0 0.0
    %2022 = vmatprep.subr.mxu0 0.0
    %2023 = vmatpush2.xpose.msra.mxu0 0.0
    %2024 = vmatprep.mubr.f32.mxu0 0.0
    %2025 = vmatmul.mubr.f32.gmra.mxu0 %v1949
    %v2026 = vpop.f32.mrf.mxu0
    %v2027 = vadd.f32 %v118, %v2026
    %v2028 = vpop.f32.mrf.mxu0
    %2029 = vmatprep.mubr.f32.mxu0 0.0
    %2030 = vmatmul.mubr.f32.gmra.mxu0 %v1952
    %v2031 = vpop.f32.mrf.mxu0
    %v2032 = vadd.f32 %v119, %v2031
    %v2033 = vpop.f32.mrf.mxu0
    %2034 = vdwg.mxu0
    %v2035 = vsel %vm494, %v2027, -inf
    %2036 = vmax.xlane.f32.xlu0 %v2035
    %v2037 = vpop.xlane.xlu0 %2036
    %v2038 = vsel %vm494, %v2032, -inf
    %2039 = vmax.xlane.f32.xlu0 %v2038
    %v2040 = vpop.xlane.xlu0 %2039
    %v2041 = vsub.f32 %v2027, %v2037
    %v2042 = vsub.f32 %v2032, %v2040
    %v2043 = vmul.f32 %v2041, 1.442695
    %v2044 = vpow.pop %v2043
    %v2045 = vmul.f32 %v2042, 1.442695
    %v2046 = vpow.pop %v2045
    %v2047 = vsel %vm494, %v2044, 0.0
    %2048 = vadd.xlane.f32.xlu0 %v2047
    %v2049 = vpop.xlane.xlu0 %2048
    %v2050 = vsel %vm494, %v2046, 0.0
    %2051 = vadd.xlane.f32.xlu0 %v2050
    %v2052 = vpop.xlane.xlu0 %2051
    %v2053 = vrcp.pop %v2049
    %v2054 = vrcp.pop %v2052
    %v2055 = vmul.f32 %v2044, %v2053
    %v2056 = vmul.f32 %v2046, %v2054
    %v2058 = vsel %vm494, %v2055, 0
    %v2061 = vsel %vm494, %v2056, 0
    %2063 = vmatprep.subr.mxu0 0.0
    %2064 = vmatpush1.msra.mxu0 0.0
    %2065 = vmatprep.subr.mxu0 0.0
    %2066 = vmatpush1.msra.mxu0 0.0
    %2067 = vmatprep.subr.mxu0 0.0
    %2068 = vmatpush1.msra.mxu0 0.0
    %2069 = vmatprep.subr.mxu0 0.0
    %2070 = vmatpush1.msra.mxu0 0.0
    %2071 = vmatprep.subr.mxu0 0.0
    %2072 = vmatpush1.msra.mxu0 0.0
    %2073 = vmatprep.subr.mxu0 0.0
    %2074 = vmatpush1.msra.mxu0 0.0
    %2075 = vmatprep.subr.mxu0 0.0
    %2076 = vmatpush1.msra.mxu0 0.0
    %2077 = vmatprep.subr.mxu0 0.0
    %2078 = vmatpush1.msra.mxu0 0.0
    %2079 = vmatprep.subr.mxu0 0.0
    %2080 = vmatpush1.msra.mxu0 0.0
    %2081 = vmatprep.subr.mxu0 0.0
    %2082 = vmatpush1.msra.mxu0 0.0
    %2083 = vmatprep.subr.mxu0 0.0
    %2084 = vmatpush1.msra.mxu0 0.0
    %2085 = vmatprep.subr.mxu0 0.0
    %2086 = vmatpush1.msra.mxu0 0.0
    %2087 = vmatprep.subr.mxu0 0.0
    %2088 = vmatpush1.msra.mxu0 0.0
    %2089 = vmatprep.subr.mxu0 0.0
    %2090 = vmatpush1.msra.mxu0 0.0
    %2091 = vmatprep.subr.mxu0 0.0
    %2092 = vmatpush1.msra.mxu0 %v1945
    %2093 = vmatprep.subr.mxu0 0.0
    %2094 = vmatpush1.msra.mxu0 %v1940
    %2095 = vmatprep.subr.mxu0 0.0
    %2096 = vmatpush2.msra.mxu0 0.0
    %2097 = vmatprep.subr.mxu0 0.0
    %2098 = vmatpush2.msra.mxu0 0.0
    %2099 = vmatprep.subr.mxu0 0.0
    %2100 = vmatpush2.msra.mxu0 0.0
    %2101 = vmatprep.subr.mxu0 0.0
    %2102 = vmatpush2.msra.mxu0 0.0
    %2103 = vmatprep.subr.mxu0 0.0
    %2104 = vmatpush2.msra.mxu0 0.0
    %2105 = vmatprep.subr.mxu0 0.0
    %2106 = vmatpush2.msra.mxu0 0.0
    %2107 = vmatprep.subr.mxu0 0.0
    %2108 = vmatpush2.msra.mxu0 0.0
    %2109 = vmatprep.subr.mxu0 0.0
    %2110 = vmatpush2.msra.mxu0 0.0
    %2111 = vmatprep.subr.mxu0 0.0
    %2112 = vmatpush2.msra.mxu0 0.0
    %2113 = vmatprep.subr.mxu0 0.0
    %2114 = vmatpush2.msra.mxu0 0.0
    %2115 = vmatprep.subr.mxu0 0.0
    %2116 = vmatpush2.msra.mxu0 0.0
    %2117 = vmatprep.subr.mxu0 0.0
    %2118 = vmatpush2.msra.mxu0 0.0
    %2119 = vmatprep.subr.mxu0 0.0
    %2120 = vmatpush2.msra.mxu0 0.0
    %2121 = vmatprep.subr.mxu0 0.0
    %2122 = vmatpush2.msra.mxu0 0.0
    %2123 = vmatprep.subr.mxu0 0.0
    %2124 = vmatpush2.msra.mxu0 0.0
    %2125 = vmatprep.subr.mxu0 0.0
    %2126 = vmatpush2.msra.mxu0 0.0
    %2127 = vmatprep.mubr.f32.mxu0 0.0
    %2128 = vmatmul.mubr.f32.gmra.mxu0 %v2058
    %v2129 = vpop.f32.mrf.mxu0
    %v2130 = vadd.f32 0.0, %v2129
    %v2131 = vpop.f32.mrf.mxu0
    %2132 = vmatprep.mubr.f32.mxu0 0.0
    %2133 = vmatmul.mubr.f32.gmra.mxu0 %v2061
    %v2134 = vpop.f32.mrf.mxu0
    %v2135 = vadd.f32 0.0, %v2134
    %v2136 = vpop.f32.mrf.mxu0
    %2137 = vdwg.mxu0
    %s2138 = scalar_lea.vmem [#allocation5], 24
    %v2139 = vld [vmem:[%s2138] sm:$0xff]
    %v2141 = vsel %vm406, %v2130, 0
    %v2144 = vsel %vm406, %v2135, 0
    %2146 = vmatprep.subr.mxu0 0.0
    %2147 = vmatpush1.msra.mxu0 0.0
    %2148 = vmatprep.subr.mxu0 0.0
    %2149 = vmatpush1.msra.mxu0 0.0
    %2150 = vmatprep.subr.mxu0 0.0
    %2151 = vmatpush1.msra.mxu0 0.0
    %2152 = vmatprep.subr.mxu0 0.0
    %2153 = vmatpush1.msra.mxu0 0.0
    %2154 = vmatprep.subr.mxu0 0.0
    %2155 = vmatpush1.msra.mxu0 0.0
    %2156 = vmatprep.subr.mxu0 0.0
    %2157 = vmatpush1.msra.mxu0 0.0
    %2158 = vmatprep.subr.mxu0 0.0
    %2159 = vmatpush1.msra.mxu0 0.0
    %2160 = vmatprep.subr.mxu0 0.0
    %2161 = vmatpush1.msra.mxu0 0.0
    %2162 = vmatprep.subr.mxu0 0.0
    %2163 = vmatpush1.msra.mxu0 0.0
    %2164 = vmatprep.subr.mxu0 0.0
    %2165 = vmatpush1.msra.mxu0 0.0
    %2166 = vmatprep.subr.mxu0 0.0
    %2167 = vmatpush1.msra.mxu0 0.0
    %2168 = vmatprep.subr.mxu0 0.0
    %2169 = vmatpush1.msra.mxu0 0.0
    %2170 = vmatprep.subr.mxu0 0.0
    %2171 = vmatpush1.msra.mxu0 0.0
    %2172 = vmatprep.subr.mxu0 0.0
    %2173 = vmatpush1.msra.mxu0 0.0
    %2174 = vmatprep.subr.mxu0 0.0
    %2175 = vmatpush1.msra.mxu0 0.0
    %2176 = vmatprep.subr.mxu0 0.0
    %2177 = vmatpush1.msra.mxu0 %v2139
    %2178 = vmatprep.subr.mxu0 0.0
    %2179 = vmatpush2.msra.mxu0 0.0
    %2180 = vmatprep.subr.mxu0 0.0
    %2181 = vmatpush2.msra.mxu0 0.0
    %2182 = vmatprep.subr.mxu0 0.0
    %2183 = vmatpush2.msra.mxu0 0.0
    %2184 = vmatprep.subr.mxu0 0.0
    %2185 = vmatpush2.msra.mxu0 0.0
    %2186 = vmatprep.subr.mxu0 0.0
    %2187 = vmatpush2.msra.mxu0 0.0
    %2188 = vmatprep.subr.mxu0 0.0
    %2189 = vmatpush2.msra.mxu0 0.0
    %2190 = vmatprep.subr.mxu0 0.0
    %2191 = vmatpush2.msra.mxu0 0.0
    %2192 = vmatprep.subr.mxu0 0.0
    %2193 = vmatpush2.msra.mxu0 0.0
    %2194 = vmatprep.subr.mxu0 0.0
    %2195 = vmatpush2.msra.mxu0 0.0
    %2196 = vmatprep.subr.mxu0 0.0
    %2197 = vmatpush2.msra.mxu0 0.0
    %2198 = vmatprep.subr.mxu0 0.0
    %2199 = vmatpush2.msra.mxu0 0.0
    %2200 = vmatprep.subr.mxu0 0.0
    %2201 = vmatpush2.msra.mxu0 0.0
    %2202 = vmatprep.subr.mxu0 0.0
    %2203 = vmatpush2.msra.mxu0 0.0
    %2204 = vmatprep.subr.mxu0 0.0
    %2205 = vmatpush2.msra.mxu0 0.0
    %2206 = vmatprep.subr.mxu0 0.0
    %2207 = vmatpush2.msra.mxu0 0.0
    %2208 = vmatprep.subr.mxu0 0.0
    %2209 = vmatpush2.msra.mxu0 0.0
    %2210 = vmatprep.mubr.f32.mxu0 0.0
    %2211 = vmatmul.mubr.f32.gmra.mxu0 %v2141
    %v2212 = vpop.f32.mrf.mxu0
    %v2213 = vadd.f32 0.0, %v2212
    %v2214 = vpop.f32.mrf.mxu0
    %2215 = vmatprep.mubr.f32.mxu0 0.0
    %2216 = vmatmul.mubr.f32.gmra.mxu0 %v2144
    %v2217 = vpop.f32.mrf.mxu0
    %v2218 = vadd.f32 0.0, %v2217
    %v2219 = vpop.f32.mrf.mxu0
    %2220 = vdwg.mxu0
    %v2221 = vadd.f32 %v1706, %v2213
    %v2222 = vadd.f32 %v1707, %v2218
    %v2223 = vadd.f32 %v102, %v2221
    %v2224 = vadd.f32 %v103, %v2222
    %v2225 = vlaneseq
    %v2226 = vshrl.u32 %v2225, 7
    %v2227 = vsub.s32 4, %v2226
    %v2228 = vrot.slane %v120, %v2227
    %v2229 = vadd.f32 %v2223, %v2228
    %v2230 = vadd.f32 %v2224, %v2228
    %v2231 = vsel %vm121, %v2229, 0.0
    %2232 = vadd.xlane.f32.xlu0 %v2231
    %v2233 = vpop.xlane.xlu0 %2232
    %v2234 = vsel %vm121, %v2230, 0.0
    %2235 = vadd.xlane.f32.xlu0 %v2234
    %v2236 = vpop.xlane.xlu0 %2235
    %v2237 = vmul.f32 %v2233, %v128
    %v2238 = vmul.f32 %v2236, %v128
    %v2239 = vsub.f32 %v2229, %v2237
    %v2240 = vsub.f32 %v2230, %v2238
    %v2241 = vmul.f32 %v2239, %v2239
    %v2242 = vmul.f32 %v2240, %v2240
    %v2243 = vsel %vm121, %v2241, 0.0
    %2244 = vadd.xlane.f32.xlu0 %v2243
    %v2245 = vpop.xlane.xlu0 %2244
    %v2246 = vsel %vm121, %v2242, 0.0
    %2247 = vadd.xlane.f32.xlu0 %v2246
    %v2248 = vpop.xlane.xlu0 %2247
    %v2249 = vmul.f32 %v2245, %v128
    %v2250 = vmul.f32 %v2248, %v128
    %v2251 = vadd.f32 %v2249, 1e-05
    %v2252 = vadd.f32 %v2250, 1e-05
    %v2253 = vrsqrt.pop %v2251
    %v2254 = vrsqrt.pop %v2252
    %v2255 = vmul.f32 %v2239, %v2253
    %v2256 = vmul.f32 %v2240, %v2254
    %v2257 = vlaneseq
    %v2258 = vshrl.u32 %v2257, 7
    %v2259 = vsub.s32 2, %v2258
    %v2260 = vrot.slane %v120, %v2259
    %v2261 = vmul.f32 %v2255, %v2260
    %v2262 = vmul.f32 %v2256, %v2260
    %v2263 = vlaneseq
    %v2264 = vshrl.u32 %v2263, 7
    %v2265 = vsub.s32 3, %v2264
    %v2266 = vrot.slane %v120, %v2265
    %v2267 = vadd.f32 %v2261, %v2266
    %v2268 = vadd.f32 %v2262, %v2266
    %v2269 = vld [vmem:[#allocation7] sm:$0xff]
    %v2270 = vld [vmem:[#allocation7 + $0x8] sm:$0xff]
    %v2271 = vld [vmem:[#allocation7 + $0x10] sm:$0xff]
    %v2272 = vld [vmem:[#allocation7 + $0x18] sm:$0xff]
    %v2273 = vld [vmem:[#allocation8] sm:$0x1]
    %v2275 = vlaneseq
    %v2276 = vshrl.u32 %v2275, 7
    %v2277 = vsub.s32 0, %v2276
    %v2278 = vrot.slane %v2273, %v2277
    %v2281 = vsel %vm121, %v2267, 0
    %v2284 = vsel %vm121, %v2268, 0
    %2286 = vmatprep.subr.mxu0 0.0
    %2287 = vmatpush1.msra.mxu0 0.0
    %2288 = vmatprep.subr.mxu0 0.0
    %2289 = vmatpush1.msra.mxu0 0.0
    %2290 = vmatprep.subr.mxu0 0.0
    %2291 = vmatpush1.msra.mxu0 0.0
    %2292 = vmatprep.subr.mxu0 0.0
    %2293 = vmatpush1.msra.mxu0 0.0
    %2294 = vmatprep.subr.mxu0 0.0
    %2295 = vmatpush1.msra.mxu0 0.0
    %2296 = vmatprep.subr.mxu0 0.0
    %2297 = vmatpush1.msra.mxu0 0.0
    %2298 = vmatprep.subr.mxu0 0.0
    %2299 = vmatpush1.msra.mxu0 0.0
    %2300 = vmatprep.subr.mxu0 0.0
    %2301 = vmatpush1.msra.mxu0 0.0
    %2302 = vmatprep.subr.mxu0 0.0
    %2303 = vmatpush1.msra.mxu0 0.0
    %2304 = vmatprep.subr.mxu0 0.0
    %2305 = vmatpush1.msra.mxu0 0.0
    %2306 = vmatprep.subr.mxu0 0.0
    %2307 = vmatpush1.msra.mxu0 0.0
    %2308 = vmatprep.subr.mxu0 0.0
    %2309 = vmatpush1.msra.mxu0 0.0
    %2310 = vmatprep.subr.mxu0 0.0
    %2311 = vmatpush1.msra.mxu0 %v2272
    %2312 = vmatprep.subr.mxu0 0.0
    %2313 = vmatpush1.msra.mxu0 %v2271
    %2314 = vmatprep.subr.mxu0 0.0
    %2315 = vmatpush1.msra.mxu0 %v2270
    %2316 = vmatprep.subr.mxu0 0.0
    %2317 = vmatpush1.msra.mxu0 %v2269
    %2318 = vmatprep.subr.mxu0 0.0
    %2319 = vmatpush2.msra.mxu0 0.0
    %2320 = vmatprep.subr.mxu0 0.0
    %2321 = vmatpush2.msra.mxu0 0.0
    %2322 = vmatprep.subr.mxu0 0.0
    %2323 = vmatpush2.msra.mxu0 0.0
    %2324 = vmatprep.subr.mxu0 0.0
    %2325 = vmatpush2.msra.mxu0 0.0
    %2326 = vmatprep.subr.mxu0 0.0
    %2327 = vmatpush2.msra.mxu0 0.0
    %2328 = vmatprep.subr.mxu0 0.0
    %2329 = vmatpush2.msra.mxu0 0.0
    %2330 = vmatprep.subr.mxu0 0.0
    %2331 = vmatpush2.msra.mxu0 0.0
    %2332 = vmatprep.subr.mxu0 0.0
    %2333 = vmatpush2.msra.mxu0 0.0
    %2334 = vmatprep.subr.mxu0 0.0
    %2335 = vmatpush2.msra.mxu0 0.0
    %2336 = vmatprep.subr.mxu0 0.0
    %2337 = vmatpush2.msra.mxu0 0.0
    %2338 = vmatprep.subr.mxu0 0.0
    %2339 = vmatpush2.msra.mxu0 0.0
    %2340 = vmatprep.subr.mxu0 0.0
    %2341 = vmatpush2.msra.mxu0 0.0
    %2342 = vmatprep.subr.mxu0 0.0
    %2343 = vmatpush2.msra.mxu0 0.0
    %2344 = vmatprep.subr.mxu0 0.0
    %2345 = vmatpush2.msra.mxu0 0.0
    %2346 = vmatprep.subr.mxu0 0.0
    %2347 = vmatpush2.msra.mxu0 0.0
    %2348 = vmatprep.subr.mxu0 0.0
    %2349 = vmatpush2.msra.mxu0 0.0
    %2350 = vmatprep.mubr.f32.mxu0 0.0
    %2351 = vmatmul.mubr.f32.gmra.mxu0 %v2281
    %v2352 = vpop.f32.mrf.mxu0
    %v2353 = vadd.f32 %v2278, %v2352
    %v2354 = vpop.f32.mrf.mxu0
    %2355 = vmatprep.mubr.f32.mxu0 0.0
    %2356 = vmatmul.mubr.f32.gmra.mxu0 %v2284
    %v2357 = vpop.f32.mrf.mxu0
    %v2358 = vadd.f32 %v2278, %v2357
    %v2359 = vpop.f32.mrf.mxu0
    %2360 = vdwg.mxu0
    %v2361 = vmax.f32 %v2353, 0.0
    %v2362 = vmax.f32 %v2358, 0.0
    %v2363 = vld [vmem:[%s6] sm:$0xff]
    %v2364 = vld [vmem:[%s6 + $0x8] sm:$0xff]
    %v2365 = vld [vmem:[%s6 + $0x10] sm:$0xff]
    %v2366 = vld [vmem:[%s6 + $0x18] sm:$0xff]
    %v2367 = vld [vmem:[%s6 + $0x20] sm:$0xff]
    %v2368 = vld [vmem:[%s6 + $0x28] sm:$0xff]
    %v2369 = vld [vmem:[%s6 + $0x30] sm:$0xff]
    %v2370 = vld [vmem:[%s6 + $0x38] sm:$0xff]
    %v2371 = vlaneseq
    %v2372 = vshrl.u32 %v2371, 7
    %v2373 = vsub.s32 5, %v2372
    %v2374 = vrot.slane %v120, %v2373
    %vm2375 = vcmask 523264
    %v2377 = vsel %vm2375, %v2361, 0
    %v2380 = vsel %vm2375, %v2362, 0
    %2382 = vmatprep.subr.mxu0 0.0
    %2383 = vmatpush1.msra.mxu0 0.0
    %2384 = vmatprep.subr.mxu0 0.0
    %2385 = vmatpush1.msra.mxu0 0.0
    %2386 = vmatprep.subr.mxu0 0.0
    %2387 = vmatpush1.msra.mxu0 0.0
    %2388 = vmatprep.subr.mxu0 0.0
    %2389 = vmatpush1.msra.mxu0 0.0
    %2390 = vmatprep.subr.mxu0 0.0
    %2391 = vmatpush1.msra.mxu0 0.0
    %2392 = vmatprep.subr.mxu0 0.0
    %2393 = vmatpush1.msra.mxu0 0.0
    %2394 = vmatprep.subr.mxu0 0.0
    %2395 = vmatpush1.msra.mxu0 0.0
    %2396 = vmatprep.subr.mxu0 0.0
    %2397 = vmatpush1.msra.mxu0 0.0
    %2398 = vmatprep.subr.mxu0 0.0
    %2399 = vmatpush1.msra.mxu0 %v2370
    %2400 = vmatprep.subr.mxu0 0.0
    %2401 = vmatpush1.msra.mxu0 %v2369
    %2402 = vmatprep.subr.mxu0 0.0
    %2403 = vmatpush1.msra.mxu0 %v2368
    %2404 = vmatprep.subr.mxu0 0.0
    %2405 = vmatpush1.msra.mxu0 %v2367
    %2406 = vmatprep.subr.mxu0 0.0
    %2407 = vmatpush1.msra.mxu0 %v2366
    %2408 = vmatprep.subr.mxu0 0.0
    %2409 = vmatpush1.msra.mxu0 %v2365
    %2410 = vmatprep.subr.mxu0 0.0
    %2411 = vmatpush1.msra.mxu0 %v2364
    %2412 = vmatprep.subr.mxu0 0.0
    %2413 = vmatpush1.msra.mxu0 %v2363
    %2414 = vmatprep.subr.mxu0 0.0
    %2415 = vmatpush2.msra.mxu0 0.0
    %2416 = vmatprep.subr.mxu0 0.0
    %2417 = vmatpush2.msra.mxu0 0.0
    %2418 = vmatprep.subr.mxu0 0.0
    %2419 = vmatpush2.msra.mxu0 0.0
    %2420 = vmatprep.subr.mxu0 0.0
    %2421 = vmatpush2.msra.mxu0 0.0
    %2422 = vmatprep.subr.mxu0 0.0
    %2423 = vmatpush2.msra.mxu0 0.0
    %2424 = vmatprep.subr.mxu0 0.0
    %2425 = vmatpush2.msra.mxu0 0.0
    %2426 = vmatprep.subr.mxu0 0.0
    %2427 = vmatpush2.msra.mxu0 0.0
    %2428 = vmatprep.subr.mxu0 0.0
    %2429 = vmatpush2.msra.mxu0 0.0
    %2430 = vmatprep.subr.mxu0 0.0
    %2431 = vmatpush2.msra.mxu0 0.0
    %2432 = vmatprep.subr.mxu0 0.0
    %2433 = vmatpush2.msra.mxu0 0.0
    %2434 = vmatprep.subr.mxu0 0.0
    %2435 = vmatpush2.msra.mxu0 0.0
    %2436 = vmatprep.subr.mxu0 0.0
    %2437 = vmatpush2.msra.mxu0 0.0
    %2438 = vmatprep.subr.mxu0 0.0
    %2439 = vmatpush2.msra.mxu0 0.0
    %2440 = vmatprep.subr.mxu0 0.0
    %2441 = vmatpush2.msra.mxu0 0.0
    %2442 = vmatprep.subr.mxu0 0.0
    %2443 = vmatpush2.msra.mxu0 0.0
    %2444 = vmatprep.subr.mxu0 0.0
    %2445 = vmatpush2.msra.mxu0 0.0
    %2446 = vmatprep.mubr.f32.mxu0 0.0
    %2447 = vmatmul.mubr.f32.gmra.mxu0 %v2377
    %v2448 = vpop.f32.mrf.mxu0
    %v2449 = vadd.f32 %v2374, %v2448
    %v2450 = vpop.f32.mrf.mxu0
    %2451 = vmatprep.mubr.f32.mxu0 0.0
    %2452 = vmatmul.mubr.f32.gmra.mxu0 %v2380
    %v2453 = vpop.f32.mrf.mxu0
    %v2454 = vadd.f32 %v2374, %v2453
    %v2455 = vpop.f32.mrf.mxu0
    %2456 = vdwg.mxu0
    %v2457 = vadd.f32 %v2229, %v2449
    %v2458 = vadd.f32 %v2230, %v2454
    %s2459 = scalar_lea.vmem [#allocation10], 8
    %v2460 = vld [vmem:[%s2459] sm:$0xff]
    %v2461 = vsel %vm121, %v2457, 0.0
    %2462 = vadd.xlane.f32.xlu0 %v2461
    %v2463 = vpop.xlane.xlu0 %2462
    %v2464 = vsel %vm121, %v2458, 0.0
    %2465 = vadd.xlane.f32.xlu0 %v2464
    %v2466 = vpop.xlane.xlu0 %2465
    %v2467 = vmul.f32 %v2463, %v128
    %v2468 = vmul.f32 %v2466, %v128
    %v2469 = vsub.f32 %v2457, %v2467
    %v2470 = vsub.f32 %v2458, %v2468
    %v2471 = vmul.f32 %v2469, %v2469
    %v2472 = vmul.f32 %v2470, %v2470
    %v2473 = vsel %vm121, %v2471, 0.0
    %2474 = vadd.xlane.f32.xlu0 %v2473
    %v2475 = vpop.xlane.xlu0 %2474
    %v2476 = vsel %vm121, %v2472, 0.0
    %2477 = vadd.xlane.f32.xlu0 %v2476
    %v2478 = vpop.xlane.xlu0 %2477
    %v2479 = vmul.f32 %v2475, %v128
    %v2480 = vmul.f32 %v2478, %v128
    %v2481 = vadd.f32 %v2479, 1e-05
    %v2482 = vadd.f32 %v2480, 1e-05
    %v2483 = vrsqrt.pop %v2481
    %v2484 = vrsqrt.pop %v2482
    %v2485 = vmul.f32 %v2469, %v2483
    %v2486 = vmul.f32 %v2470, %v2484
    %v2487 = vlaneseq
    %v2488 = vshrl.u32 %v2487, 7
    %v2489 = vsub.s32 0, %v2488
    %v2490 = vrot.slane %v2460, %v2489
    %v2491 = vmul.f32 %v2485, %v2490
    %v2492 = vmul.f32 %v2486, %v2490
    %v2493 = vlaneseq
    %v2494 = vshrl.u32 %v2493, 7
    %v2495 = vsub.s32 1, %v2494
    %v2496 = vrot.slane %v2460, %v2495
    %v2497 = vadd.f32 %v2491, %v2496
    %v2498 = vadd.f32 %v2492, %v2496
    %s2499 = scalar_lea.vmem %s2, 384
    %v2500 = vld [vmem:[%s2499] sm:$0xff]
    %v2501 = vld [vmem:[%s2499 + $0x8] sm:$0xff]
    %v2502 = vld [vmem:[%s2499 + $0x10] sm:$0xff]
    %v2503 = vld [vmem:[%s2499 + $0x18] sm:$0xff]
    %s2504 = scalar_lea.vmem %s2, 512
    %v2505 = vld [vmem:[%s2504] sm:$0xff]
    %v2506 = vld [vmem:[%s2504 + $0x8] sm:$0xff]
    %v2507 = vld [vmem:[%s2504 + $0x10] sm:$0xff]
    %v2508 = vld [vmem:[%s2504 + $0x18] sm:$0xff]
    %s2509 = scalar_lea.vmem %s2, 640
    %v2510 = vld [vmem:[%s2509] sm:$0xff]
    %v2511 = vld [vmem:[%s2509 + $0x8] sm:$0xff]
    %v2512 = vld [vmem:[%s2509 + $0x10] sm:$0xff]
    %v2513 = vld [vmem:[%s2509 + $0x18] sm:$0xff]
    %v2515 = vsel %vm121, %v2497, 0
    %v2518 = vsel %vm121, %v2498, 0
    %2520 = vmatprep.subr.mxu0 0.0
    %2521 = vmatpush1.msra.mxu0 0.0
    %2522 = vmatprep.subr.mxu0 0.0
    %2523 = vmatpush1.msra.mxu0 0.0
    %2524 = vmatprep.subr.mxu0 0.0
    %2525 = vmatpush1.msra.mxu0 0.0
    %2526 = vmatprep.subr.mxu0 0.0
    %2527 = vmatpush1.msra.mxu0 0.0
    %2528 = vmatprep.subr.mxu0 0.0
    %2529 = vmatpush1.msra.mxu0 0.0
    %2530 = vmatprep.subr.mxu0 0.0
    %2531 = vmatpush1.msra.mxu0 0.0
    %2532 = vmatprep.subr.mxu0 0.0
    %2533 = vmatpush1.msra.mxu0 0.0
    %2534 = vmatprep.subr.mxu0 0.0
    %2535 = vmatpush1.msra.mxu0 0.0
    %2536 = vmatprep.subr.mxu0 0.0
    %2537 = vmatpush1.msra.mxu0 0.0
    %2538 = vmatprep.subr.mxu0 0.0
    %2539 = vmatpush1.msra.mxu0 0.0
    %2540 = vmatprep.subr.mxu0 0.0
    %2541 = vmatpush1.msra.mxu0 0.0
    %2542 = vmatprep.subr.mxu0 0.0
    %2543 = vmatpush1.msra.mxu0 0.0
    %2544 = vmatprep.subr.mxu0 0.0
    %2545 = vmatpush1.msra.mxu0 %v2503
    %2546 = vmatprep.subr.mxu0 0.0
    %2547 = vmatpush1.msra.mxu0 %v2502
    %2548 = vmatprep.subr.mxu0 0.0
    %2549 = vmatpush1.msra.mxu0 %v2501
    %2550 = vmatprep.subr.mxu0 0.0
    %2551 = vmatpush1.msra.mxu0 %v2500
    %2552 = vmatprep.subr.mxu0 0.0
    %2553 = vmatpush2.msra.mxu0 0.0
    %2554 = vmatprep.subr.mxu0 0.0
    %2555 = vmatpush2.msra.mxu0 0.0
    %2556 = vmatprep.subr.mxu0 0.0
    %2557 = vmatpush2.msra.mxu0 0.0
    %2558 = vmatprep.subr.mxu0 0.0
    %2559 = vmatpush2.msra.mxu0 0.0
    %2560 = vmatprep.subr.mxu0 0.0
    %2561 = vmatpush2.msra.mxu0 0.0
    %2562 = vmatprep.subr.mxu0 0.0
    %2563 = vmatpush2.msra.mxu0 0.0
    %2564 = vmatprep.subr.mxu0 0.0
    %2565 = vmatpush2.msra.mxu0 0.0
    %2566 = vmatprep.subr.mxu0 0.0
    %2567 = vmatpush2.msra.mxu0 0.0
    %2568 = vmatprep.subr.mxu0 0.0
    %2569 = vmatpush2.msra.mxu0 0.0
    %2570 = vmatprep.subr.mxu0 0.0
    %2571 = vmatpush2.msra.mxu0 0.0
    %2572 = vmatprep.subr.mxu0 0.0
    %2573 = vmatpush2.msra.mxu0 0.0
    %2574 = vmatprep.subr.mxu0 0.0
    %2575 = vmatpush2.msra.mxu0 0.0
    %2576 = vmatprep.subr.mxu0 0.0
    %2577 = vmatpush2.msra.mxu0 0.0
    %2578 = vmatprep.subr.mxu0 0.0
    %2579 = vmatpush2.msra.mxu0 0.0
    %2580 = vmatprep.subr.mxu0 0.0
    %2581 = vmatpush2.msra.mxu0 0.0
    %2582 = vmatprep.subr.mxu0 0.0
    %2583 = vmatpush2.msra.mxu0 0.0
    %2584 = vmatprep.mubr.f32.mxu0 0.0
    %2585 = vmatmul.mubr.f32.gmra.mxu0 %v2515
    %v2586 = vpop.f32.mrf.mxu0
    %v2587 = vadd.f32 0.0, %v2586
    %v2588 = vpop.f32.mrf.mxu0
    %2589 = vmatprep.mubr.f32.mxu0 0.0
    %2590 = vmatmul.mubr.f32.gmra.mxu0 %v2518
    %v2591 = vpop.f32.mrf.mxu0
    %v2592 = vadd.f32 0.0, %v2591
    %v2593 = vpop.f32.mrf.mxu0
    %2594 = vdwg.mxu0
    %2595 = vmatprep.subr.mxu0 0.0
    %2596 = vmatpush1.msra.mxu0 0.0
    %2597 = vmatprep.subr.mxu0 0.0
    %2598 = vmatpush1.msra.mxu0 0.0
    %2599 = vmatprep.subr.mxu0 0.0
    %2600 = vmatpush1.msra.mxu0 0.0
    %2601 = vmatprep.subr.mxu0 0.0
    %2602 = vmatpush1.msra.mxu0 0.0
    %2603 = vmatprep.subr.mxu0 0.0
    %2604 = vmatpush1.msra.mxu0 0.0
    %2605 = vmatprep.subr.mxu0 0.0
    %2606 = vmatpush1.msra.mxu0 0.0
    %2607 = vmatprep.subr.mxu0 0.0
    %2608 = vmatpush1.msra.mxu0 0.0
    %2609 = vmatprep.subr.mxu0 0.0
    %2610 = vmatpush1.msra.mxu0 0.0
    %2611 = vmatprep.subr.mxu0 0.0
    %2612 = vmatpush1.msra.mxu0 0.0
    %2613 = vmatprep.subr.mxu0 0.0
    %2614 = vmatpush1.msra.mxu0 0.0
    %2615 = vmatprep.subr.mxu0 0.0
    %2616 = vmatpush1.msra.mxu0 0.0
    %2617 = vmatprep.subr.mxu0 0.0
    %2618 = vmatpush1.msra.mxu0 0.0
    %2619 = vmatprep.subr.mxu0 0.0
    %2620 = vmatpush1.msra.mxu0 %v2508
    %2621 = vmatprep.subr.mxu0 0.0
    %2622 = vmatpush1.msra.mxu0 %v2507
    %2623 = vmatprep.subr.mxu0 0.0
    %2624 = vmatpush1.msra.mxu0 %v2506
    %2625 = vmatprep.subr.mxu0 0.0
    %2626 = vmatpush1.msra.mxu0 %v2505
    %2627 = vmatprep.subr.mxu0 0.0
    %2628 = vmatpush2.msra.mxu0 0.0
    %2629 = vmatprep.subr.mxu0 0.0
    %2630 = vmatpush2.msra.mxu0 0.0
    %2631 = vmatprep.subr.mxu0 0.0
    %2632 = vmatpush2.msra.mxu0 0.0
    %2633 = vmatprep.subr.mxu0 0.0
    %2634 = vmatpush2.msra.mxu0 0.0
    %2635 = vmatprep.subr.mxu0 0.0
    %2636 = vmatpush2.msra.mxu0 0.0
    %2637 = vmatprep.subr.mxu0 0.0
    %2638 = vmatpush2.msra.mxu0 0.0
    %2639 = vmatprep.subr.mxu0 0.0
    %2640 = vmatpush2.msra.mxu0 0.0
    %2641 = vmatprep.subr.mxu0 0.0
    %2642 = vmatpush2.msra.mxu0 0.0
    %2643 = vmatprep.subr.mxu0 0.0
    %2644 = vmatpush2.msra.mxu0 0.0
    %2645 = vmatprep.subr.mxu0 0.0
    %2646 = vmatpush2.msra.mxu0 0.0
    %2647 = vmatprep.subr.mxu0 0.0
    %2648 = vmatpush2.msra.mxu0 0.0
    %2649 = vmatprep.subr.mxu0 0.0
    %2650 = vmatpush2.msra.mxu0 0.0
    %2651 = vmatprep.subr.mxu0 0.0
    %2652 = vmatpush2.msra.mxu0 0.0
    %2653 = vmatprep.subr.mxu0 0.0
    %2654 = vmatpush2.msra.mxu0 0.0
    %2655 = vmatprep.subr.mxu0 0.0
    %2656 = vmatpush2.msra.mxu0 0.0
    %2657 = vmatprep.subr.mxu0 0.0
    %2658 = vmatpush2.msra.mxu0 0.0
    %2659 = vmatprep.mubr.f32.mxu0 0.0
    %2660 = vmatmul.mubr.f32.gmra.mxu0 %v2515
    %v2661 = vpop.f32.mrf.mxu0
    %v2662 = vadd.f32 0.0, %v2661
    %v2663 = vpop.f32.mrf.mxu0
    %2664 = vmatprep.mubr.f32.mxu0 0.0
    %2665 = vmatmul.mubr.f32.gmra.mxu0 %v2518
    %v2666 = vpop.f32.mrf.mxu0
    %v2667 = vadd.f32 0.0, %v2666
    %v2668 = vpop.f32.mrf.mxu0
    %2669 = vdwg.mxu0
    %2670 = vmatprep.subr.mxu0 0.0
    %2671 = vmatpush1.msra.mxu0 0.0
    %2672 = vmatprep.subr.mxu0 0.0
    %2673 = vmatpush1.msra.mxu0 0.0
    %2674 = vmatprep.subr.mxu0 0.0
    %2675 = vmatpush1.msra.mxu0 0.0
    %2676 = vmatprep.subr.mxu0 0.0
    %2677 = vmatpush1.msra.mxu0 0.0
    %2678 = vmatprep.subr.mxu0 0.0
    %2679 = vmatpush1.msra.mxu0 0.0
    %2680 = vmatprep.subr.mxu0 0.0
    %2681 = vmatpush1.msra.mxu0 0.0
    %2682 = vmatprep.subr.mxu0 0.0
    %2683 = vmatpush1.msra.mxu0 0.0
    %2684 = vmatprep.subr.mxu0 0.0
    %2685 = vmatpush1.msra.mxu0 0.0
    %2686 = vmatprep.subr.mxu0 0.0
    %2687 = vmatpush1.msra.mxu0 0.0
    %2688 = vmatprep.subr.mxu0 0.0
    %2689 = vmatpush1.msra.mxu0 0.0
    %2690 = vmatprep.subr.mxu0 0.0
    %2691 = vmatpush1.msra.mxu0 0.0
    %2692 = vmatprep.subr.mxu0 0.0
    %2693 = vmatpush1.msra.mxu0 0.0
    %2694 = vmatprep.subr.mxu0 0.0
    %2695 = vmatpush1.msra.mxu0 %v2513
    %2696 = vmatprep.subr.mxu0 0.0
    %2697 = vmatpush1.msra.mxu0 %v2512
    %2698 = vmatprep.subr.mxu0 0.0
    %2699 = vmatpush1.msra.mxu0 %v2511
    %2700 = vmatprep.subr.mxu0 0.0
    %2701 = vmatpush1.msra.mxu0 %v2510
    %2702 = vmatprep.subr.mxu0 0.0
    %2703 = vmatpush2.msra.mxu0 0.0
    %2704 = vmatprep.subr.mxu0 0.0
    %2705 = vmatpush2.msra.mxu0 0.0
    %2706 = vmatprep.subr.mxu0 0.0
    %2707 = vmatpush2.msra.mxu0 0.0
    %2708 = vmatprep.subr.mxu0 0.0
    %2709 = vmatpush2.msra.mxu0 0.0
    %2710 = vmatprep.subr.mxu0 0.0
    %2711 = vmatpush2.msra.mxu0 0.0
    %2712 = vmatprep.subr.mxu0 0.0
    %2713 = vmatpush2.msra.mxu0 0.0
    %2714 = vmatprep.subr.mxu0 0.0
    %2715 = vmatpush2.msra.mxu0 0.0
    %2716 = vmatprep.subr.mxu0 0.0
    %2717 = vmatpush2.msra.mxu0 0.0
    %2718 = vmatprep.subr.mxu0 0.0
    %2719 = vmatpush2.msra.mxu0 0.0
    %2720 = vmatprep.subr.mxu0 0.0
    %2721 = vmatpush2.msra.mxu0 0.0
    %2722 = vmatprep.subr.mxu0 0.0
    %2723 = vmatpush2.msra.mxu0 0.0
    %2724 = vmatprep.subr.mxu0 0.0
    %2725 = vmatpush2.msra.mxu0 0.0
    %2726 = vmatprep.subr.mxu0 0.0
    %2727 = vmatpush2.msra.mxu0 0.0
    %2728 = vmatprep.subr.mxu0 0.0
    %2729 = vmatpush2.msra.mxu0 0.0
    %2730 = vmatprep.subr.mxu0 0.0
    %2731 = vmatpush2.msra.mxu0 0.0
    %2732 = vmatprep.subr.mxu0 0.0
    %2733 = vmatpush2.msra.mxu0 0.0
    %2734 = vmatprep.mubr.f32.mxu0 0.0
    %2735 = vmatmul.mubr.f32.gmra.mxu0 %v2515
    %v2736 = vpop.f32.mrf.mxu0
    %v2737 = vadd.f32 0.0, %v2736
    %v2738 = vpop.f32.mrf.mxu0
    %2739 = vmatprep.mubr.f32.mxu0 0.0
    %2740 = vmatmul.mubr.f32.gmra.mxu0 %v2518
    %v2741 = vpop.f32.mrf.mxu0
    %v2742 = vadd.f32 0.0, %v2741
    %v2743 = vpop.f32.mrf.mxu0
    %2744 = vdwg.mxu0
    %v2746 = vsel %vm406, %v2587, 0
    %v2749 = vsel %vm406, %v2592, 0
    %v2752 = vsel %vm406, %v2662, 0
    %v2755 = vsel %vm406, %v2667, 0
    %2757 = vmatprep.subr.mxu0 0.0
    %2758 = vmatpush1.xpose.msra.mxu0 0.0
    %2759 = vmatprep.subr.mxu0 0.0
    %2760 = vmatpush1.xpose.msra.mxu0 0.0
    %2761 = vmatprep.subr.mxu0 0.0
    %2762 = vmatpush1.xpose.msra.mxu0 0.0
    %2763 = vmatprep.subr.mxu0 0.0
    %2764 = vmatpush1.xpose.msra.mxu0 0.0
    %2765 = vmatprep.subr.mxu0 0.0
    %2766 = vmatpush1.xpose.msra.mxu0 0.0
    %2767 = vmatprep.subr.mxu0 0.0
    %2768 = vmatpush1.xpose.msra.mxu0 0.0
    %2769 = vmatprep.subr.mxu0 0.0
    %2770 = vmatpush1.xpose.msra.mxu0 0.0
    %2771 = vmatprep.subr.mxu0 0.0
    %2772 = vmatpush1.xpose.msra.mxu0 0.0
    %2773 = vmatprep.subr.mxu0 0.0
    %2774 = vmatpush1.xpose.msra.mxu0 0.0
    %2775 = vmatprep.subr.mxu0 0.0
    %2776 = vmatpush1.xpose.msra.mxu0 0.0
    %2777 = vmatprep.subr.mxu0 0.0
    %2778 = vmatpush1.xpose.msra.mxu0 0.0
    %2779 = vmatprep.subr.mxu0 0.0
    %2780 = vmatpush1.xpose.msra.mxu0 0.0
    %2781 = vmatprep.subr.mxu0 0.0
    %2782 = vmatpush1.xpose.msra.mxu0 0.0
    %2783 = vmatprep.subr.mxu0 0.0
    %2784 = vmatpush1.xpose.msra.mxu0 0.0
    %2785 = vmatprep.subr.mxu0 0.0
    %2786 = vmatpush1.xpose.msra.mxu0 %v2755
    %2787 = vmatprep.subr.mxu0 0.0
    %2788 = vmatpush1.xpose.msra.mxu0 %v2752
    %2789 = vmatprep.subr.mxu0 0.0
    %2790 = vmatpush2.xpose.msra.mxu0 0.0
    %2791 = vmatprep.subr.mxu0 0.0
    %2792 = vmatpush2.xpose.msra.mxu0 0.0
    %2793 = vmatprep.subr.mxu0 0.0
    %2794 = vmatpush2.xpose.msra.mxu0 0.0
    %2795 = vmatprep.subr.mxu0 0.0
    %2796 = vmatpush2.xpose.msra.mxu0 0.0
    %2797 = vmatprep.subr.mxu0 0.0
    %2798 = vmatpush2.xpose.msra.mxu0 0.0
    %2799 = vmatprep.subr.mxu0 0.0
    %2800 = vmatpush2.xpose.msra.mxu0 0.0
    %2801 = vmatprep.subr.mxu0 0.0
    %2802 = vmatpush2.xpose.msra.mxu0 0.0
    %2803 = vmatprep.subr.mxu0 0.0
    %2804 = vmatpush2.xpose.msra.mxu0 0.0
    %2805 = vmatprep.subr.mxu0 0.0
    %2806 = vmatpush2.xpose.msra.mxu0 0.0
    %2807 = vmatprep.subr.mxu0 0.0
    %2808 = vmatpush2.xpose.msra.mxu0 0.0
    %2809 = vmatprep.subr.mxu0 0.0
    %2810 = vmatpush2.xpose.msra.mxu0 0.0
    %2811 = vmatprep.subr.mxu0 0.0
    %2812 = vmatpush2.xpose.msra.mxu0 0.0
    %2813 = vmatprep.subr.mxu0 0.0
    %2814 = vmatpush2.xpose.msra.mxu0 0.0
    %2815 = vmatprep.subr.mxu0 0.0
    %2816 = vmatpush2.xpose.msra.mxu0 0.0
    %2817 = vmatprep.subr.mxu0 0.0
    %2818 = vmatpush2.xpose.msra.mxu0 0.0
    %2819 = vmatprep.subr.mxu0 0.0
    %2820 = vmatpush2.xpose.msra.mxu0 0.0
    %2821 = vmatprep.mubr.f32.mxu0 0.0
    %2822 = vmatmul.mubr.f32.gmra.mxu0 %v2746
    %v2823 = vpop.f32.mrf.mxu0
    %v2824 = vadd.f32 %v118, %v2823
    %v2825 = vpop.f32.mrf.mxu0
    %2826 = vmatprep.mubr.f32.mxu0 0.0
    %2827 = vmatmul.mubr.f32.gmra.mxu0 %v2749
    %v2828 = vpop.f32.mrf.mxu0
    %v2829 = vadd.f32 %v119, %v2828
    %v2830 = vpop.f32.mrf.mxu0
    %2831 = vdwg.mxu0
    %v2832 = vsel %vm494, %v2824, -inf
    %2833 = vmax.xlane.f32.xlu0 %v2832
    %v2834 = vpop.xlane.xlu0 %2833
    %v2835 = vsel %vm494, %v2829, -inf
    %2836 = vmax.xlane.f32.xlu0 %v2835
    %v2837 = vpop.xlane.xlu0 %2836
    %v2838 = vsub.f32 %v2824, %v2834
    %v2839 = vsub.f32 %v2829, %v2837
    %v2840 = vmul.f32 %v2838, 1.442695
    %v2841 = vpow.pop %v2840
    %v2842 = vmul.f32 %v2839, 1.442695
    %v2843 = vpow.pop %v2842
    %v2844 = vsel %vm494, %v2841, 0.0
    %2845 = vadd.xlane.f32.xlu0 %v2844
    %v2846 = vpop.xlane.xlu0 %2845
    %v2847 = vsel %vm494, %v2843, 0.0
    %2848 = vadd.xlane.f32.xlu0 %v2847
    %v2849 = vpop.xlane.xlu0 %2848
    %v2850 = vrcp.pop %v2846
    %v2851 = vrcp.pop %v2849
    %v2852 = vmul.f32 %v2841, %v2850
    %v2853 = vmul.f32 %v2843, %v2851
    %v2855 = vsel %vm494, %v2852, 0
    %v2858 = vsel %vm494, %v2853, 0
    %2860 = vmatprep.subr.mxu0 0.0
    %2861 = vmatpush1.msra.mxu0 0.0
    %2862 = vmatprep.subr.mxu0 0.0
    %2863 = vmatpush1.msra.mxu0 0.0
    %2864 = vmatprep.subr.mxu0 0.0
    %2865 = vmatpush1.msra.mxu0 0.0
    %2866 = vmatprep.subr.mxu0 0.0
    %2867 = vmatpush1.msra.mxu0 0.0
    %2868 = vmatprep.subr.mxu0 0.0
    %2869 = vmatpush1.msra.mxu0 0.0
    %2870 = vmatprep.subr.mxu0 0.0
    %2871 = vmatpush1.msra.mxu0 0.0
    %2872 = vmatprep.subr.mxu0 0.0
    %2873 = vmatpush1.msra.mxu0 0.0
    %2874 = vmatprep.subr.mxu0 0.0
    %2875 = vmatpush1.msra.mxu0 0.0
    %2876 = vmatprep.subr.mxu0 0.0
    %2877 = vmatpush1.msra.mxu0 0.0
    %2878 = vmatprep.subr.mxu0 0.0
    %2879 = vmatpush1.msra.mxu0 0.0
    %2880 = vmatprep.subr.mxu0 0.0
    %2881 = vmatpush1.msra.mxu0 0.0
    %2882 = vmatprep.subr.mxu0 0.0
    %2883 = vmatpush1.msra.mxu0 0.0
    %2884 = vmatprep.subr.mxu0 0.0
    %2885 = vmatpush1.msra.mxu0 0.0
    %2886 = vmatprep.subr.mxu0 0.0
    %2887 = vmatpush1.msra.mxu0 0.0
    %2888 = vmatprep.subr.mxu0 0.0
    %2889 = vmatpush1.msra.mxu0 %v2742
    %2890 = vmatprep.subr.mxu0 0.0
    %2891 = vmatpush1.msra.mxu0 %v2737
    %2892 = vmatprep.subr.mxu0 0.0
    %2893 = vmatpush2.msra.mxu0 0.0
    %2894 = vmatprep.subr.mxu0 0.0
    %2895 = vmatpush2.msra.mxu0 0.0
    %2896 = vmatprep.subr.mxu0 0.0
    %2897 = vmatpush2.msra.mxu0 0.0
    %2898 = vmatprep.subr.mxu0 0.0
    %2899 = vmatpush2.msra.mxu0 0.0
    %2900 = vmatprep.subr.mxu0 0.0
    %2901 = vmatpush2.msra.mxu0 0.0
    %2902 = vmatprep.subr.mxu0 0.0
    %2903 = vmatpush2.msra.mxu0 0.0
    %2904 = vmatprep.subr.mxu0 0.0
    %2905 = vmatpush2.msra.mxu0 0.0
    %2906 = vmatprep.subr.mxu0 0.0
    %2907 = vmatpush2.msra.mxu0 0.0
    %2908 = vmatprep.subr.mxu0 0.0
    %2909 = vmatpush2.msra.mxu0 0.0
    %2910 = vmatprep.subr.mxu0 0.0
    %2911 = vmatpush2.msra.mxu0 0.0
    %2912 = vmatprep.subr.mxu0 0.0
    %2913 = vmatpush2.msra.mxu0 0.0
    %2914 = vmatprep.subr.mxu0 0.0
    %2915 = vmatpush2.msra.mxu0 0.0
    %2916 = vmatprep.subr.mxu0 0.0
    %2917 = vmatpush2.msra.mxu0 0.0
    %2918 = vmatprep.subr.mxu0 0.0
    %2919 = vmatpush2.msra.mxu0 0.0
    %2920 = vmatprep.subr.mxu0 0.0
    %2921 = vmatpush2.msra.mxu0 0.0
    %2922 = vmatprep.subr.mxu0 0.0
    %2923 = vmatpush2.msra.mxu0 0.0
    %2924 = vmatprep.mubr.f32.mxu0 0.0
    %2925 = vmatmul.mubr.f32.gmra.mxu0 %v2855
    %v2926 = vpop.f32.mrf.mxu0
    %v2927 = vadd.f32 0.0, %v2926
    %v2928 = vpop.f32.mrf.mxu0
    %2929 = vmatprep.mubr.f32.mxu0 0.0
    %2930 = vmatmul.mubr.f32.gmra.mxu0 %v2858
    %v2931 = vpop.f32.mrf.mxu0
    %v2932 = vadd.f32 0.0, %v2931
    %v2933 = vpop.f32.mrf.mxu0
    %2934 = vdwg.mxu0
    %s2935 = scalar_lea.vmem [#allocation5], 32
    %v2936 = vld [vmem:[%s2935] sm:$0xff]
    %s2937 = scalar_lea.vmem %s2, 416
    %v2938 = vld [vmem:[%s2937] sm:$0xff]
    %v2939 = vld [vmem:[%s2937 + $0x8] sm:$0xff]
    %v2940 = vld [vmem:[%s2937 + $0x10] sm:$0xff]
    %v2941 = vld [vmem:[%s2937 + $0x18] sm:$0xff]
    %s2942 = scalar_lea.vmem %s2, 544
    %v2943 = vld [vmem:[%s2942] sm:$0xff]
    %v2944 = vld [vmem:[%s2942 + $0x8] sm:$0xff]
    %v2945 = vld [vmem:[%s2942 + $0x10] sm:$0xff]
    %v2946 = vld [vmem:[%s2942 + $0x18] sm:$0xff]
    %s2947 = scalar_lea.vmem %s2, 672
    %v2948 = vld [vmem:[%s2947] sm:$0xff]
    %v2949 = vld [vmem:[%s2947 + $0x8] sm:$0xff]
    %v2950 = vld [vmem:[%s2947 + $0x10] sm:$0xff]
    %v2951 = vld [vmem:[%s2947 + $0x18] sm:$0xff]
    %2952 = vmatprep.subr.mxu0 0.0
    %2953 = vmatpush1.msra.mxu0 0.0
    %2954 = vmatprep.subr.mxu0 0.0
    %2955 = vmatpush1.msra.mxu0 0.0
    %2956 = vmatprep.subr.mxu0 0.0
    %2957 = vmatpush1.msra.mxu0 0.0
    %2958 = vmatprep.subr.mxu0 0.0
    %2959 = vmatpush1.msra.mxu0 0.0
    %2960 = vmatprep.subr.mxu0 0.0
    %2961 = vmatpush1.msra.mxu0 0.0
    %2962 = vmatprep.subr.mxu0 0.0
    %2963 = vmatpush1.msra.mxu0 0.0
    %2964 = vmatprep.subr.mxu0 0.0
    %2965 = vmatpush1.msra.mxu0 0.0
    %2966 = vmatprep.subr.mxu0 0.0
    %2967 = vmatpush1.msra.mxu0 0.0
    %2968 = vmatprep.subr.mxu0 0.0
    %2969 = vmatpush1.msra.mxu0 0.0
    %2970 = vmatprep.subr.mxu0 0.0
    %2971 = vmatpush1.msra.mxu0 0.0
    %2972 = vmatprep.subr.mxu0 0.0
    %2973 = vmatpush1.msra.mxu0 0.0
    %2974 = vmatprep.subr.mxu0 0.0
    %2975 = vmatpush1.msra.mxu0 0.0
    %2976 = vmatprep.subr.mxu0 0.0
    %2977 = vmatpush1.msra.mxu0 %v2941
    %2978 = vmatprep.subr.mxu0 0.0
    %2979 = vmatpush1.msra.mxu0 %v2940
    %2980 = vmatprep.subr.mxu0 0.0
    %2981 = vmatpush1.msra.mxu0 %v2939
    %2982 = vmatprep.subr.mxu0 0.0
    %2983 = vmatpush1.msra.mxu0 %v2938
    %2984 = vmatprep.subr.mxu0 0.0
    %2985 = vmatpush2.msra.mxu0 0.0
    %2986 = vmatprep.subr.mxu0 0.0
    %2987 = vmatpush2.msra.mxu0 0.0
    %2988 = vmatprep.subr.mxu0 0.0
    %2989 = vmatpush2.msra.mxu0 0.0
    %2990 = vmatprep.subr.mxu0 0.0
    %2991 = vmatpush2.msra.mxu0 0.0
    %2992 = vmatprep.subr.mxu0 0.0
    %2993 = vmatpush2.msra.mxu0 0.0
    %2994 = vmatprep.subr.mxu0 0.0
    %2995 = vmatpush2.msra.mxu0 0.0
    %2996 = vmatprep.subr.mxu0 0.0
    %2997 = vmatpush2.msra.mxu0 0.0
    %2998 = vmatprep.subr.mxu0 0.0
    %2999 = vmatpush2.msra.mxu0 0.0
    %3000 = vmatprep.subr.mxu0 0.0
    %3001 = vmatpush2.msra.mxu0 0.0
    %3002 = vmatprep.subr.mxu0 0.0
    %3003 = vmatpush2.msra.mxu0 0.0
    %3004 = vmatprep.subr.mxu0 0.0
    %3005 = vmatpush2.msra.mxu0 0.0
    %3006 = vmatprep.subr.mxu0 0.0
    %3007 = vmatpush2.msra.mxu0 0.0
    %3008 = vmatprep.subr.mxu0 0.0
    %3009 = vmatpush2.msra.mxu0 0.0
    %3010 = vmatprep.subr.mxu0 0.0
    %3011 = vmatpush2.msra.mxu0 0.0
    %3012 = vmatprep.subr.mxu0 0.0
    %3013 = vmatpush2.msra.mxu0 0.0
    %3014 = vmatprep.subr.mxu0 0.0
    %3015 = vmatpush2.msra.mxu0 0.0
    %3016 = vmatprep.mubr.f32.mxu0 0.0
    %3017 = vmatmul.mubr.f32.gmra.mxu0 %v2515
    %v3018 = vpop.f32.mrf.mxu0
    %v3019 = vadd.f32 0.0, %v3018
    %v3020 = vpop.f32.mrf.mxu0
    %3021 = vmatprep.mubr.f32.mxu0 0.0
    %3022 = vmatmul.mubr.f32.gmra.mxu0 %v2518
    %v3023 = vpop.f32.mrf.mxu0
    %v3024 = vadd.f32 0.0, %v3023
    %v3025 = vpop.f32.mrf.mxu0
    %3026 = vdwg.mxu0
    %3027 = vmatprep.subr.mxu0 0.0
    %3028 = vmatpush1.msra.mxu0 0.0
    %3029 = vmatprep.subr.mxu0 0.0
    %3030 = vmatpush1.msra.mxu0 0.0
    %3031 = vmatprep.subr.mxu0 0.0
    %3032 = vmatpush1.msra.mxu0 0.0
    %3033 = vmatprep.subr.mxu0 0.0
    %3034 = vmatpush1.msra.mxu0 0.0
    %3035 = vmatprep.subr.mxu0 0.0
    %3036 = vmatpush1.msra.mxu0 0.0
    %3037 = vmatprep.subr.mxu0 0.0
    %3038 = vmatpush1.msra.mxu0 0.0
    %3039 = vmatprep.subr.mxu0 0.0
    %3040 = vmatpush1.msra.mxu0 0.0
    %3041 = vmatprep.subr.mxu0 0.0
    %3042 = vmatpush1.msra.mxu0 0.0
    %3043 = vmatprep.subr.mxu0 0.0
    %3044 = vmatpush1.msra.mxu0 0.0
    %3045 = vmatprep.subr.mxu0 0.0
    %3046 = vmatpush1.msra.mxu0 0.0
    %3047 = vmatprep.subr.mxu0 0.0
    %3048 = vmatpush1.msra.mxu0 0.0
    %3049 = vmatprep.subr.mxu0 0.0
    %3050 = vmatpush1.msra.mxu0 0.0
    %3051 = vmatprep.subr.mxu0 0.0
    %3052 = vmatpush1.msra.mxu0 %v2946
    %3053 = vmatprep.subr.mxu0 0.0
    %3054 = vmatpush1.msra.mxu0 %v2945
    %3055 = vmatprep.subr.mxu0 0.0
    %3056 = vmatpush1.msra.mxu0 %v2944
    %3057 = vmatprep.subr.mxu0 0.0
    %3058 = vmatpush1.msra.mxu0 %v2943
    %3059 = vmatprep.subr.mxu0 0.0
    %3060 = vmatpush2.msra.mxu0 0.0
    %3061 = vmatprep.subr.mxu0 0.0
    %3062 = vmatpush2.msra.mxu0 0.0
    %3063 = vmatprep.subr.mxu0 0.0
    %3064 = vmatpush2.msra.mxu0 0.0
    %3065 = vmatprep.subr.mxu0 0.0
    %3066 = vmatpush2.msra.mxu0 0.0
    %3067 = vmatprep.subr.mxu0 0.0
    %3068 = vmatpush2.msra.mxu0 0.0
    %3069 = vmatprep.subr.mxu0 0.0
    %3070 = vmatpush2.msra.mxu0 0.0
    %3071 = vmatprep.subr.mxu0 0.0
    %3072 = vmatpush2.msra.mxu0 0.0
    %3073 = vmatprep.subr.mxu0 0.0
    %3074 = vmatpush2.msra.mxu0 0.0
    %3075 = vmatprep.subr.mxu0 0.0
    %3076 = vmatpush2.msra.mxu0 0.0
    %3077 = vmatprep.subr.mxu0 0.0
    %3078 = vmatpush2.msra.mxu0 0.0
    %3079 = vmatprep.subr.mxu0 0.0
    %3080 = vmatpush2.msra.mxu0 0.0
    %3081 = vmatprep.subr.mxu0 0.0
    %3082 = vmatpush2.msra.mxu0 0.0
    %3083 = vmatprep.subr.mxu0 0.0
    %3084 = vmatpush2.msra.mxu0 0.0
    %3085 = vmatprep.subr.mxu0 0.0
    %3086 = vmatpush2.msra.mxu0 0.0
    %3087 = vmatprep.subr.mxu0 0.0
    %3088 = vmatpush2.msra.mxu0 0.0
    %3089 = vmatprep.subr.mxu0 0.0
    %3090 = vmatpush2.msra.mxu0 0.0
    %3091 = vmatprep.mubr.f32.mxu0 0.0
    %3092 = vmatmul.mubr.f32.gmra.mxu0 %v2515
    %v3093 = vpop.f32.mrf.mxu0
    %v3094 = vadd.f32 0.0, %v3093
    %v3095 = vpop.f32.mrf.mxu0
    %3096 = vmatprep.mubr.f32.mxu0 0.0
    %3097 = vmatmul.mubr.f32.gmra.mxu0 %v2518
    %v3098 = vpop.f32.mrf.mxu0
    %v3099 = vadd.f32 0.0, %v3098
    %v3100 = vpop.f32.mrf.mxu0
    %3101 = vdwg.mxu0
    %3102 = vmatprep.subr.mxu0 0.0
    %3103 = vmatpush1.msra.mxu0 0.0
    %3104 = vmatprep.subr.mxu0 0.0
    %3105 = vmatpush1.msra.mxu0 0.0
    %3106 = vmatprep.subr.mxu0 0.0
    %3107 = vmatpush1.msra.mxu0 0.0
    %3108 = vmatprep.subr.mxu0 0.0
    %3109 = vmatpush1.msra.mxu0 0.0
    %3110 = vmatprep.subr.mxu0 0.0
    %3111 = vmatpush1.msra.mxu0 0.0
    %3112 = vmatprep.subr.mxu0 0.0
    %3113 = vmatpush1.msra.mxu0 0.0
    %3114 = vmatprep.subr.mxu0 0.0
    %3115 = vmatpush1.msra.mxu0 0.0
    %3116 = vmatprep.subr.mxu0 0.0
    %3117 = vmatpush1.msra.mxu0 0.0
    %3118 = vmatprep.subr.mxu0 0.0
    %3119 = vmatpush1.msra.mxu0 0.0
    %3120 = vmatprep.subr.mxu0 0.0
    %3121 = vmatpush1.msra.mxu0 0.0
    %3122 = vmatprep.subr.mxu0 0.0
    %3123 = vmatpush1.msra.mxu0 0.0
    %3124 = vmatprep.subr.mxu0 0.0
    %3125 = vmatpush1.msra.mxu0 0.0
    %3126 = vmatprep.subr.mxu0 0.0
    %3127 = vmatpush1.msra.mxu0 %v2951
    %3128 = vmatprep.subr.mxu0 0.0
    %3129 = vmatpush1.msra.mxu0 %v2950
    %3130 = vmatprep.subr.mxu0 0.0
    %3131 = vmatpush1.msra.mxu0 %v2949
    %3132 = vmatprep.subr.mxu0 0.0
    %3133 = vmatpush1.msra.mxu0 %v2948
    %3134 = vmatprep.subr.mxu0 0.0
    %3135 = vmatpush2.msra.mxu0 0.0
    %3136 = vmatprep.subr.mxu0 0.0
    %3137 = vmatpush2.msra.mxu0 0.0
    %3138 = vmatprep.subr.mxu0 0.0
    %3139 = vmatpush2.msra.mxu0 0.0
    %3140 = vmatprep.subr.mxu0 0.0
    %3141 = vmatpush2.msra.mxu0 0.0
    %3142 = vmatprep.subr.mxu0 0.0
    %3143 = vmatpush2.msra.mxu0 0.0
    %3144 = vmatprep.subr.mxu0 0.0
    %3145 = vmatpush2.msra.mxu0 0.0
    %3146 = vmatprep.subr.mxu0 0.0
    %3147 = vmatpush2.msra.mxu0 0.0
    %3148 = vmatprep.subr.mxu0 0.0
    %3149 = vmatpush2.msra.mxu0 0.0
    %3150 = vmatprep.subr.mxu0 0.0
    %3151 = vmatpush2.msra.mxu0 0.0
    %3152 = vmatprep.subr.mxu0 0.0
    %3153 = vmatpush2.msra.mxu0 0.0
    %3154 = vmatprep.subr.mxu0 0.0
    %3155 = vmatpush2.msra.mxu0 0.0
    %3156 = vmatprep.subr.mxu0 0.0
    %3157 = vmatpush2.msra.mxu0 0.0
    %3158 = vmatprep.subr.mxu0 0.0
    %3159 = vmatpush2.msra.mxu0 0.0
    %3160 = vmatprep.subr.mxu0 0.0
    %3161 = vmatpush2.msra.mxu0 0.0
    %3162 = vmatprep.subr.mxu0 0.0
    %3163 = vmatpush2.msra.mxu0 0.0
    %3164 = vmatprep.subr.mxu0 0.0
    %3165 = vmatpush2.msra.mxu0 0.0
    %3166 = vmatprep.mubr.f32.mxu0 0.0
    %3167 = vmatmul.mubr.f32.gmra.mxu0 %v2515
    %v3168 = vpop.f32.mrf.mxu0
    %v3169 = vadd.f32 0.0, %v3168
    %v3170 = vpop.f32.mrf.mxu0
    %3171 = vmatprep.mubr.f32.mxu0 0.0
    %3172 = vmatmul.mubr.f32.gmra.mxu0 %v2518
    %v3173 = vpop.f32.mrf.mxu0
    %v3174 = vadd.f32 0.0, %v3173
    %v3175 = vpop.f32.mrf.mxu0
    %3176 = vdwg.mxu0
    %v3178 = vsel %vm406, %v3019, 0
    %v3181 = vsel %vm406, %v3024, 0
    %v3184 = vsel %vm406, %v3094, 0
    %v3187 = vsel %vm406, %v3099, 0
    %3189 = vmatprep.subr.mxu0 0.0
    %3190 = vmatpush1.xpose.msra.mxu0 0.0
    %3191 = vmatprep.subr.mxu0 0.0
    %3192 = vmatpush1.xpose.msra.mxu0 0.0
    %3193 = vmatprep.subr.mxu0 0.0
    %3194 = vmatpush1.xpose.msra.mxu0 0.0
    %3195 = vmatprep.subr.mxu0 0.0
    %3196 = vmatpush1.xpose.msra.mxu0 0.0
    %3197 = vmatprep.subr.mxu0 0.0
    %3198 = vmatpush1.xpose.msra.mxu0 0.0
    %3199 = vmatprep.subr.mxu0 0.0
    %3200 = vmatpush1.xpose.msra.mxu0 0.0
    %3201 = vmatprep.subr.mxu0 0.0
    %3202 = vmatpush1.xpose.msra.mxu0 0.0
    %3203 = vmatprep.subr.mxu0 0.0
    %3204 = vmatpush1.xpose.msra.mxu0 0.0
    %3205 = vmatprep.subr.mxu0 0.0
    %3206 = vmatpush1.xpose.msra.mxu0 0.0
    %3207 = vmatprep.subr.mxu0 0.0
    %3208 = vmatpush1.xpose.msra.mxu0 0.0
    %3209 = vmatprep.subr.mxu0 0.0
    %3210 = vmatpush1.xpose.msra.mxu0 0.0
    %3211 = vmatprep.subr.mxu0 0.0
    %3212 = vmatpush1.xpose.msra.mxu0 0.0
    %3213 = vmatprep.subr.mxu0 0.0
    %3214 = vmatpush1.xpose.msra.mxu0 0.0
    %3215 = vmatprep.subr.mxu0 0.0
    %3216 = vmatpush1.xpose.msra.mxu0 0.0
    %3217 = vmatprep.subr.mxu0 0.0
    %3218 = vmatpush1.xpose.msra.mxu0 %v3187
    %3219 = vmatprep.subr.mxu0 0.0
    %3220 = vmatpush1.xpose.msra.mxu0 %v3184
    %3221 = vmatprep.subr.mxu0 0.0
    %3222 = vmatpush2.xpose.msra.mxu0 0.0
    %3223 = vmatprep.subr.mxu0 0.0
    %3224 = vmatpush2.xpose.msra.mxu0 0.0
    %3225 = vmatprep.subr.mxu0 0.0
    %3226 = vmatpush2.xpose.msra.mxu0 0.0
    %3227 = vmatprep.subr.mxu0 0.0
    %3228 = vmatpush2.xpose.msra.mxu0 0.0
    %3229 = vmatprep.subr.mxu0 0.0
    %3230 = vmatpush2.xpose.msra.mxu0 0.0
    %3231 = vmatprep.subr.mxu0 0.0
    %3232 = vmatpush2.xpose.msra.mxu0 0.0
    %3233 = vmatprep.subr.mxu0 0.0
    %3234 = vmatpush2.xpose.msra.mxu0 0.0
    %3235 = vmatprep.subr.mxu0 0.0
    %3236 = vmatpush2.xpose.msra.mxu0 0.0
    %3237 = vmatprep.subr.mxu0 0.0
    %3238 = vmatpush2.xpose.msra.mxu0 0.0
    %3239 = vmatprep.subr.mxu0 0.0
    %3240 = vmatpush2.xpose.msra.mxu0 0.0
    %3241 = vmatprep.subr.mxu0 0.0
    %3242 = vmatpush2.xpose.msra.mxu0 0.0
    %3243 = vmatprep.subr.mxu0 0.0
    %3244 = vmatpush2.xpose.msra.mxu0 0.0
    %3245 = vmatprep.subr.mxu0 0.0
    %3246 = vmatpush2.xpose.msra.mxu0 0.0
    %3247 = vmatprep.subr.mxu0 0.0
    %3248 = vmatpush2.xpose.msra.mxu0 0.0
    %3249 = vmatprep.subr.mxu0 0.0
    %3250 = vmatpush2.xpose.msra.mxu0 0.0
    %3251 = vmatprep.subr.mxu0 0.0
    %3252 = vmatpush2.xpose.msra.mxu0 0.0
    %3253 = vmatprep.mubr.f32.mxu0 0.0
    %3254 = vmatmul.mubr.f32.gmra.mxu0 %v3178
    %v3255 = vpop.f32.mrf.mxu0
    %v3256 = vadd.f32 %v118, %v3255
    %v3257 = vpop.f32.mrf.mxu0
    %3258 = vmatprep.mubr.f32.mxu0 0.0
    %3259 = vmatmul.mubr.f32.gmra.mxu0 %v3181
    %v3260 = vpop.f32.mrf.mxu0
    %v3261 = vadd.f32 %v119, %v3260
    %v3262 = vpop.f32.mrf.mxu0
    %3263 = vdwg.mxu0
    %v3264 = vsel %vm494, %v3256, -inf
    %3265 = vmax.xlane.f32.xlu0 %v3264
    %v3266 = vpop.xlane.xlu0 %3265
    %v3267 = vsel %vm494, %v3261, -inf
    %3268 = vmax.xlane.f32.xlu0 %v3267
    %v3269 = vpop.xlane.xlu0 %3268
    %v3270 = vsub.f32 %v3256, %v3266
    %v3271 = vsub.f32 %v3261, %v3269
    %v3272 = vmul.f32 %v3270, 1.442695
    %v3273 = vpow.pop %v3272
    %v3274 = vmul.f32 %v3271, 1.442695
    %v3275 = vpow.pop %v3274
    %v3276 = vsel %vm494, %v3273, 0.0
    %3277 = vadd.xlane.f32.xlu0 %v3276
    %v3278 = vpop.xlane.xlu0 %3277
    %v3279 = vsel %vm494, %v3275, 0.0
    %3280 = vadd.xlane.f32.xlu0 %v3279
    %v3281 = vpop.xlane.xlu0 %3280
    %v3282 = vrcp.pop %v3278
    %v3283 = vrcp.pop %v3281
    %v3284 = vmul.f32 %v3273, %v3282
    %v3285 = vmul.f32 %v3275, %v3283
    %v3287 = vsel %vm494, %v3284, 0
    %v3290 = vsel %vm494, %v3285, 0
    %3292 = vmatprep.subr.mxu0 0.0
    %3293 = vmatpush1.msra.mxu0 0.0
    %3294 = vmatprep.subr.mxu0 0.0
    %3295 = vmatpush1.msra.mxu0 0.0
    %3296 = vmatprep.subr.mxu0 0.0
    %3297 = vmatpush1.msra.mxu0 0.0
    %3298 = vmatprep.subr.mxu0 0.0
    %3299 = vmatpush1.msra.mxu0 0.0
    %3300 = vmatprep.subr.mxu0 0.0
    %3301 = vmatpush1.msra.mxu0 0.0
    %3302 = vmatprep.subr.mxu0 0.0
    %3303 = vmatpush1.msra.mxu0 0.0
    %3304 = vmatprep.subr.mxu0 0.0
    %3305 = vmatpush1.msra.mxu0 0.0
    %3306 = vmatprep.subr.mxu0 0.0
    %3307 = vmatpush1.msra.mxu0 0.0
    %3308 = vmatprep.subr.mxu0 0.0
    %3309 = vmatpush1.msra.mxu0 0.0
    %3310 = vmatprep.subr.mxu0 0.0
    %3311 = vmatpush1.msra.mxu0 0.0
    %3312 = vmatprep.subr.mxu0 0.0
    %3313 = vmatpush1.msra.mxu0 0.0
    %3314 = vmatprep.subr.mxu0 0.0
    %3315 = vmatpush1.msra.mxu0 0.0
    %3316 = vmatprep.subr.mxu0 0.0
    %3317 = vmatpush1.msra.mxu0 0.0
    %3318 = vmatprep.subr.mxu0 0.0
    %3319 = vmatpush1.msra.mxu0 0.0
    %3320 = vmatprep.subr.mxu0 0.0
    %3321 = vmatpush1.msra.mxu0 %v3174
    %3322 = vmatprep.subr.mxu0 0.0
    %3323 = vmatpush1.msra.mxu0 %v3169
    %3324 = vmatprep.subr.mxu0 0.0
    %3325 = vmatpush2.msra.mxu0 0.0
    %3326 = vmatprep.subr.mxu0 0.0
    %3327 = vmatpush2.msra.mxu0 0.0
    %3328 = vmatprep.subr.mxu0 0.0
    %3329 = vmatpush2.msra.mxu0 0.0
    %3330 = vmatprep.subr.mxu0 0.0
    %3331 = vmatpush2.msra.mxu0 0.0
    %3332 = vmatprep.subr.mxu0 0.0
    %3333 = vmatpush2.msra.mxu0 0.0
    %3334 = vmatprep.subr.mxu0 0.0
    %3335 = vmatpush2.msra.mxu0 0.0
    %3336 = vmatprep.subr.mxu0 0.0
    %3337 = vmatpush2.msra.mxu0 0.0
    %3338 = vmatprep.subr.mxu0 0.0
    %3339 = vmatpush2.msra.mxu0 0.0
    %3340 = vmatprep.subr.mxu0 0.0
    %3341 = vmatpush2.msra.mxu0 0.0
    %3342 = vmatprep.subr.mxu0 0.0
    %3343 = vmatpush2.msra.mxu0 0.0
    %3344 = vmatprep.subr.mxu0 0.0
    %3345 = vmatpush2.msra.mxu0 0.0
    %3346 = vmatprep.subr.mxu0 0.0
    %3347 = vmatpush2.msra.mxu0 0.0
    %3348 = vmatprep.subr.mxu0 0.0
    %3349 = vmatpush2.msra.mxu0 0.0
    %3350 = vmatprep.subr.mxu0 0.0
    %3351 = vmatpush2.msra.mxu0 0.0
    %3352 = vmatprep.subr.mxu0 0.0
    %3353 = vmatpush2.msra.mxu0 0.0
    %3354 = vmatprep.subr.mxu0 0.0
    %3355 = vmatpush2.msra.mxu0 0.0
    %3356 = vmatprep.mubr.f32.mxu0 0.0
    %3357 = vmatmul.mubr.f32.gmra.mxu0 %v3287
    %v3358 = vpop.f32.mrf.mxu0
    %v3359 = vadd.f32 0.0, %v3358
    %v3360 = vpop.f32.mrf.mxu0
    %3361 = vmatprep.mubr.f32.mxu0 0.0
    %3362 = vmatmul.mubr.f32.gmra.mxu0 %v3290
    %v3363 = vpop.f32.mrf.mxu0
    %v3364 = vadd.f32 0.0, %v3363
    %v3365 = vpop.f32.mrf.mxu0
    %3366 = vdwg.mxu0
    %s3367 = scalar_lea.vmem [#allocation5], 40
    %v3368 = vld [vmem:[%s3367] sm:$0xff]
    %v3370 = vsel %vm406, %v3359, 0
    %v3373 = vsel %vm406, %v3364, 0
    %3375 = vmatprep.subr.mxu0 0.0
    %3376 = vmatpush1.msra.mxu0 0.0
    %3377 = vmatprep.subr.mxu0 0.0
    %3378 = vmatpush1.msra.mxu0 0.0
    %3379 = vmatprep.subr.mxu0 0.0
    %3380 = vmatpush1.msra.mxu0 0.0
    %3381 = vmatprep.subr.mxu0 0.0
    %3382 = vmatpush1.msra.mxu0 0.0
    %3383 = vmatprep.subr.mxu0 0.0
    %3384 = vmatpush1.msra.mxu0 0.0
    %3385 = vmatprep.subr.mxu0 0.0
    %3386 = vmatpush1.msra.mxu0 0.0
    %3387 = vmatprep.subr.mxu0 0.0
    %3388 = vmatpush1.msra.mxu0 0.0
    %3389 = vmatprep.subr.mxu0 0.0
    %3390 = vmatpush1.msra.mxu0 0.0
    %3391 = vmatprep.subr.mxu0 0.0
    %3392 = vmatpush1.msra.mxu0 0.0
    %3393 = vmatprep.subr.mxu0 0.0
    %3394 = vmatpush1.msra.mxu0 0.0
    %3395 = vmatprep.subr.mxu0 0.0
    %3396 = vmatpush1.msra.mxu0 0.0
    %3397 = vmatprep.subr.mxu0 0.0
    %3398 = vmatpush1.msra.mxu0 0.0
    %3399 = vmatprep.subr.mxu0 0.0
    %3400 = vmatpush1.msra.mxu0 0.0
    %3401 = vmatprep.subr.mxu0 0.0
    %3402 = vmatpush1.msra.mxu0 0.0
    %3403 = vmatprep.subr.mxu0 0.0
    %3404 = vmatpush1.msra.mxu0 0.0
    %3405 = vmatprep.subr.mxu0 0.0
    %3406 = vmatpush1.msra.mxu0 %v3368
    %3407 = vmatprep.subr.mxu0 0.0
    %3408 = vmatpush2.msra.mxu0 0.0
    %3409 = vmatprep.subr.mxu0 0.0
    %3410 = vmatpush2.msra.mxu0 0.0
    %3411 = vmatprep.subr.mxu0 0.0
    %3412 = vmatpush2.msra.mxu0 0.0
    %3413 = vmatprep.subr.mxu0 0.0
    %3414 = vmatpush2.msra.mxu0 0.0
    %3415 = vmatprep.subr.mxu0 0.0
    %3416 = vmatpush2.msra.mxu0 0.0
    %3417 = vmatprep.subr.mxu0 0.0
    %3418 = vmatpush2.msra.mxu0 0.0
    %3419 = vmatprep.subr.mxu0 0.0
    %3420 = vmatpush2.msra.mxu0 0.0
    %3421 = vmatprep.subr.mxu0 0.0
    %3422 = vmatpush2.msra.mxu0 0.0
    %3423 = vmatprep.subr.mxu0 0.0
    %3424 = vmatpush2.msra.mxu0 0.0
    %3425 = vmatprep.subr.mxu0 0.0
    %3426 = vmatpush2.msra.mxu0 0.0
    %3427 = vmatprep.subr.mxu0 0.0
    %3428 = vmatpush2.msra.mxu0 0.0
    %3429 = vmatprep.subr.mxu0 0.0
    %3430 = vmatpush2.msra.mxu0 0.0
    %3431 = vmatprep.subr.mxu0 0.0
    %3432 = vmatpush2.msra.mxu0 0.0
    %3433 = vmatprep.subr.mxu0 0.0
    %3434 = vmatpush2.msra.mxu0 0.0
    %3435 = vmatprep.subr.mxu0 0.0
    %3436 = vmatpush2.msra.mxu0 0.0
    %3437 = vmatprep.subr.mxu0 0.0
    %3438 = vmatpush2.msra.mxu0 0.0
    %3439 = vmatprep.mubr.f32.mxu0 0.0
    %3440 = vmatmul.mubr.f32.gmra.mxu0 %v3370
    %v3441 = vpop.f32.mrf.mxu0
    %v3442 = vadd.f32 0.0, %v3441
    %v3443 = vpop.f32.mrf.mxu0
    %3444 = vmatprep.mubr.f32.mxu0 0.0
    %3445 = vmatmul.mubr.f32.gmra.mxu0 %v3373
    %v3446 = vpop.f32.mrf.mxu0
    %v3447 = vadd.f32 0.0, %v3446
    %v3448 = vpop.f32.mrf.mxu0
    %3449 = vdwg.mxu0
    %v3451 = vsel %vm406, %v2927, 0
    %v3454 = vsel %vm406, %v2932, 0
    %3456 = vmatprep.subr.mxu0 0.0
    %3457 = vmatpush1.msra.mxu0 0.0
    %3458 = vmatprep.subr.mxu0 0.0
    %3459 = vmatpush1.msra.mxu0 0.0
    %3460 = vmatprep.subr.mxu0 0.0
    %3461 = vmatpush1.msra.mxu0 0.0
    %3462 = vmatprep.subr.mxu0 0.0
    %3463 = vmatpush1.msra.mxu0 0.0
    %3464 = vmatprep.subr.mxu0 0.0
    %3465 = vmatpush1.msra.mxu0 0.0
    %3466 = vmatprep.subr.mxu0 0.0
    %3467 = vmatpush1.msra.mxu0 0.0
    %3468 = vmatprep.subr.mxu0 0.0
    %3469 = vmatpush1.msra.mxu0 0.0
    %3470 = vmatprep.subr.mxu0 0.0
    %3471 = vmatpush1.msra.mxu0 0.0
    %3472 = vmatprep.subr.mxu0 0.0
    %3473 = vmatpush1.msra.mxu0 0.0
    %3474 = vmatprep.subr.mxu0 0.0
    %3475 = vmatpush1.msra.mxu0 0.0
    %3476 = vmatprep.subr.mxu0 0.0
    %3477 = vmatpush1.msra.mxu0 0.0
    %3478 = vmatprep.subr.mxu0 0.0
    %3479 = vmatpush1.msra.mxu0 0.0
    %3480 = vmatprep.subr.mxu0 0.0
    %3481 = vmatpush1.msra.mxu0 0.0
    %3482 = vmatprep.subr.mxu0 0.0
    %3483 = vmatpush1.msra.mxu0 0.0
    %3484 = vmatprep.subr.mxu0 0.0
    %3485 = vmatpush1.msra.mxu0 0.0
    %3486 = vmatprep.subr.mxu0 0.0
    %3487 = vmatpush1.msra.mxu0 %v2936
    %3488 = vmatprep.subr.mxu0 0.0
    %3489 = vmatpush2.msra.mxu0 0.0
    %3490 = vmatprep.subr.mxu0 0.0
    %3491 = vmatpush2.msra.mxu0 0.0
    %3492 = vmatprep.subr.mxu0 0.0
    %3493 = vmatpush2.msra.mxu0 0.0
    %3494 = vmatprep.subr.mxu0 0.0
    %3495 = vmatpush2.msra.mxu0 0.0
    %3496 = vmatprep.subr.mxu0 0.0
    %3497 = vmatpush2.msra.mxu0 0.0
    %3498 = vmatprep.subr.mxu0 0.0
    %3499 = vmatpush2.msra.mxu0 0.0
    %3500 = vmatprep.subr.mxu0 0.0
    %3501 = vmatpush2.msra.mxu0 0.0
    %3502 = vmatprep.subr.mxu0 0.0
    %3503 = vmatpush2.msra.mxu0 0.0
    %3504 = vmatprep.subr.mxu0 0.0
    %3505 = vmatpush2.msra.mxu0 0.0
    %3506 = vmatprep.subr.mxu0 0.0
    %3507 = vmatpush2.msra.mxu0 0.0
    %3508 = vmatprep.subr.mxu0 0.0
    %3509 = vmatpush2.msra.mxu0 0.0
    %3510 = vmatprep.subr.mxu0 0.0
    %3511 = vmatpush2.msra.mxu0 0.0
    %3512 = vmatprep.subr.mxu0 0.0
    %3513 = vmatpush2.msra.mxu0 0.0
    %3514 = vmatprep.subr.mxu0 0.0
    %3515 = vmatpush2.msra.mxu0 0.0
    %3516 = vmatprep.subr.mxu0 0.0
    %3517 = vmatpush2.msra.mxu0 0.0
    %3518 = vmatprep.subr.mxu0 0.0
    %3519 = vmatpush2.msra.mxu0 0.0
    %3520 = vmatprep.mubr.f32.mxu0 0.0
    %3521 = vmatmul.mubr.f32.gmra.mxu0 %v3451
    %v3522 = vpop.f32.mrf.mxu0
    %v3523 = vadd.f32 %v3442, %v3522
    %v3524 = vpop.f32.mrf.mxu0
    %3525 = vmatprep.mubr.f32.mxu0 0.0
    %3526 = vmatmul.mubr.f32.gmra.mxu0 %v3454
    %v3527 = vpop.f32.mrf.mxu0
    %v3528 = vadd.f32 %v3447, %v3527
    %v3529 = vpop.f32.mrf.mxu0
    %3530 = vdwg.mxu0
    %s3531 = scalar_lea.vmem %s2, 448
    %v3532 = vld [vmem:[%s3531] sm:$0xff]
    %v3533 = vld [vmem:[%s3531 + $0x8] sm:$0xff]
    %v3534 = vld [vmem:[%s3531 + $0x10] sm:$0xff]
    %v3535 = vld [vmem:[%s3531 + $0x18] sm:$0xff]
    %s3536 = scalar_lea.vmem %s2, 576
    %v3537 = vld [vmem:[%s3536] sm:$0xff]
    %v3538 = vld [vmem:[%s3536 + $0x8] sm:$0xff]
    %v3539 = vld [vmem:[%s3536 + $0x10] sm:$0xff]
    %v3540 = vld [vmem:[%s3536 + $0x18] sm:$0xff]
    %s3541 = scalar_lea.vmem %s2, 704
    %v3542 = vld [vmem:[%s3541] sm:$0xff]
    %v3543 = vld [vmem:[%s3541 + $0x8] sm:$0xff]
    %v3544 = vld [vmem:[%s3541 + $0x10] sm:$0xff]
    %v3545 = vld [vmem:[%s3541 + $0x18] sm:$0xff]
    %3546 = vmatprep.subr.mxu0 0.0
    %3547 = vmatpush1.msra.mxu0 0.0
    %3548 = vmatprep.subr.mxu0 0.0
    %3549 = vmatpush1.msra.mxu0 0.0
    %3550 = vmatprep.subr.mxu0 0.0
    %3551 = vmatpush1.msra.mxu0 0.0
    %3552 = vmatprep.subr.mxu0 0.0
    %3553 = vmatpush1.msra.mxu0 0.0
    %3554 = vmatprep.subr.mxu0 0.0
    %3555 = vmatpush1.msra.mxu0 0.0
    %3556 = vmatprep.subr.mxu0 0.0
    %3557 = vmatpush1.msra.mxu0 0.0
    %3558 = vmatprep.subr.mxu0 0.0
    %3559 = vmatpush1.msra.mxu0 0.0
    %3560 = vmatprep.subr.mxu0 0.0
    %3561 = vmatpush1.msra.mxu0 0.0
    %3562 = vmatprep.subr.mxu0 0.0
    %3563 = vmatpush1.msra.mxu0 0.0
    %3564 = vmatprep.subr.mxu0 0.0
    %3565 = vmatpush1.msra.mxu0 0.0
    %3566 = vmatprep.subr.mxu0 0.0
    %3567 = vmatpush1.msra.mxu0 0.0
    %3568 = vmatprep.subr.mxu0 0.0
    %3569 = vmatpush1.msra.mxu0 0.0
    %3570 = vmatprep.subr.mxu0 0.0
    %3571 = vmatpush1.msra.mxu0 %v3535
    %3572 = vmatprep.subr.mxu0 0.0
    %3573 = vmatpush1.msra.mxu0 %v3534
    %3574 = vmatprep.subr.mxu0 0.0
    %3575 = vmatpush1.msra.mxu0 %v3533
    %3576 = vmatprep.subr.mxu0 0.0
    %3577 = vmatpush1.msra.mxu0 %v3532
    %3578 = vmatprep.subr.mxu0 0.0
    %3579 = vmatpush2.msra.mxu0 0.0
    %3580 = vmatprep.subr.mxu0 0.0
    %3581 = vmatpush2.msra.mxu0 0.0
    %3582 = vmatprep.subr.mxu0 0.0
    %3583 = vmatpush2.msra.mxu0 0.0
    %3584 = vmatprep.subr.mxu0 0.0
    %3585 = vmatpush2.msra.mxu0 0.0
    %3586 = vmatprep.subr.mxu0 0.0
    %3587 = vmatpush2.msra.mxu0 0.0
    %3588 = vmatprep.subr.mxu0 0.0
    %3589 = vmatpush2.msra.mxu0 0.0
    %3590 = vmatprep.subr.mxu0 0.0
    %3591 = vmatpush2.msra.mxu0 0.0
    %3592 = vmatprep.subr.mxu0 0.0
    %3593 = vmatpush2.msra.mxu0 0.0
    %3594 = vmatprep.subr.mxu0 0.0
    %3595 = vmatpush2.msra.mxu0 0.0
    %3596 = vmatprep.subr.mxu0 0.0
    %3597 = vmatpush2.msra.mxu0 0.0
    %3598 = vmatprep.subr.mxu0 0.0
    %3599 = vmatpush2.msra.mxu0 0.0
    %3600 = vmatprep.subr.mxu0 0.0
    %3601 = vmatpush2.msra.mxu0 0.0
    %3602 = vmatprep.subr.mxu0 0.0
    %3603 = vmatpush2.msra.mxu0 0.0
    %3604 = vmatprep.subr.mxu0 0.0
    %3605 = vmatpush2.msra.mxu0 0.0
    %3606 = vmatprep.subr.mxu0 0.0
    %3607 = vmatpush2.msra.mxu0 0.0
    %3608 = vmatprep.subr.mxu0 0.0
    %3609 = vmatpush2.msra.mxu0 0.0
    %3610 = vmatprep.mubr.f32.mxu0 0.0
    %3611 = vmatmul.mubr.f32.gmra.mxu0 %v2515
    %v3612 = vpop.f32.mrf.mxu0
    %v3613 = vadd.f32 0.0, %v3612
    %v3614 = vpop.f32.mrf.mxu0
    %3615 = vmatprep.mubr.f32.mxu0 0.0
    %3616 = vmatmul.mubr.f32.gmra.mxu0 %v2518
    %v3617 = vpop.f32.mrf.mxu0
    %v3618 = vadd.f32 0.0, %v3617
    %v3619 = vpop.f32.mrf.mxu0
    %3620 = vdwg.mxu0
    %3621 = vmatprep.subr.mxu0 0.0
    %3622 = vmatpush1.msra.mxu0 0.0
    %3623 = vmatprep.subr.mxu0 0.0
    %3624 = vmatpush1.msra.mxu0 0.0
    %3625 = vmatprep.subr.mxu0 0.0
    %3626 = vmatpush1.msra.mxu0 0.0
    %3627 = vmatprep.subr.mxu0 0.0
    %3628 = vmatpush1.msra.mxu0 0.0
    %3629 = vmatprep.subr.mxu0 0.0
    %3630 = vmatpush1.msra.mxu0 0.0
    %3631 = vmatprep.subr.mxu0 0.0
    %3632 = vmatpush1.msra.mxu0 0.0
    %3633 = vmatprep.subr.mxu0 0.0
    %3634 = vmatpush1.msra.mxu0 0.0
    %3635 = vmatprep.subr.mxu0 0.0
    %3636 = vmatpush1.msra.mxu0 0.0
    %3637 = vmatprep.subr.mxu0 0.0
    %3638 = vmatpush1.msra.mxu0 0.0
    %3639 = vmatprep.subr.mxu0 0.0
    %3640 = vmatpush1.msra.mxu0 0.0
    %3641 = vmatprep.subr.mxu0 0.0
    %3642 = vmatpush1.msra.mxu0 0.0
    %3643 = vmatprep.subr.mxu0 0.0
    %3644 = vmatpush1.msra.mxu0 0.0
    %3645 = vmatprep.subr.mxu0 0.0
    %3646 = vmatpush1.msra.mxu0 %v3540
    %3647 = vmatprep.subr.mxu0 0.0
    %3648 = vmatpush1.msra.mxu0 %v3539
    %3649 = vmatprep.subr.mxu0 0.0
    %3650 = vmatpush1.msra.mxu0 %v3538
    %3651 = vmatprep.subr.mxu0 0.0
    %3652 = vmatpush1.msra.mxu0 %v3537
    %3653 = vmatprep.subr.mxu0 0.0
    %3654 = vmatpush2.msra.mxu0 0.0
    %3655 = vmatprep.subr.mxu0 0.0
    %3656 = vmatpush2.msra.mxu0 0.0
    %3657 = vmatprep.subr.mxu0 0.0
    %3658 = vmatpush2.msra.mxu0 0.0
    %3659 = vmatprep.subr.mxu0 0.0
    %3660 = vmatpush2.msra.mxu0 0.0
    %3661 = vmatprep.subr.mxu0 0.0
    %3662 = vmatpush2.msra.mxu0 0.0
    %3663 = vmatprep.subr.mxu0 0.0
    %3664 = vmatpush2.msra.mxu0 0.0
    %3665 = vmatprep.subr.mxu0 0.0
    %3666 = vmatpush2.msra.mxu0 0.0
    %3667 = vmatprep.subr.mxu0 0.0
    %3668 = vmatpush2.msra.mxu0 0.0
    %3669 = vmatprep.subr.mxu0 0.0
    %3670 = vmatpush2.msra.mxu0 0.0
    %3671 = vmatprep.subr.mxu0 0.0
    %3672 = vmatpush2.msra.mxu0 0.0
    %3673 = vmatprep.subr.mxu0 0.0
    %3674 = vmatpush2.msra.mxu0 0.0
    %3675 = vmatprep.subr.mxu0 0.0
    %3676 = vmatpush2.msra.mxu0 0.0
    %3677 = vmatprep.subr.mxu0 0.0
    %3678 = vmatpush2.msra.mxu0 0.0
    %3679 = vmatprep.subr.mxu0 0.0
    %3680 = vmatpush2.msra.mxu0 0.0
    %3681 = vmatprep.subr.mxu0 0.0
    %3682 = vmatpush2.msra.mxu0 0.0
    %3683 = vmatprep.subr.mxu0 0.0
    %3684 = vmatpush2.msra.mxu0 0.0
    %3685 = vmatprep.mubr.f32.mxu0 0.0
    %3686 = vmatmul.mubr.f32.gmra.mxu0 %v2515
    %v3687 = vpop.f32.mrf.mxu0
    %v3688 = vadd.f32 0.0, %v3687
    %v3689 = vpop.f32.mrf.mxu0
    %3690 = vmatprep.mubr.f32.mxu0 0.0
    %3691 = vmatmul.mubr.f32.gmra.mxu0 %v2518
    %v3692 = vpop.f32.mrf.mxu0
    %v3693 = vadd.f32 0.0, %v3692
    %v3694 = vpop.f32.mrf.mxu0
    %3695 = vdwg.mxu0
    %3696 = vmatprep.subr.mxu0 0.0
    %3697 = vmatpush1.msra.mxu0 0.0
    %3698 = vmatprep.subr.mxu0 0.0
    %3699 = vmatpush1.msra.mxu0 0.0
    %3700 = vmatprep.subr.mxu0 0.0
    %3701 = vmatpush1.msra.mxu0 0.0
    %3702 = vmatprep.subr.mxu0 0.0
    %3703 = vmatpush1.msra.mxu0 0.0
    %3704 = vmatprep.subr.mxu0 0.0
    %3705 = vmatpush1.msra.mxu0 0.0
    %3706 = vmatprep.subr.mxu0 0.0
    %3707 = vmatpush1.msra.mxu0 0.0
    %3708 = vmatprep.subr.mxu0 0.0
    %3709 = vmatpush1.msra.mxu0 0.0
    %3710 = vmatprep.subr.mxu0 0.0
    %3711 = vmatpush1.msra.mxu0 0.0
    %3712 = vmatprep.subr.mxu0 0.0
    %3713 = vmatpush1.msra.mxu0 0.0
    %3714 = vmatprep.subr.mxu0 0.0
    %3715 = vmatpush1.msra.mxu0 0.0
    %3716 = vmatprep.subr.mxu0 0.0
    %3717 = vmatpush1.msra.mxu0 0.0
    %3718 = vmatprep.subr.mxu0 0.0
    %3719 = vmatpush1.msra.mxu0 0.0
    %3720 = vmatprep.subr.mxu0 0.0
    %3721 = vmatpush1.msra.mxu0 %v3545
    %3722 = vmatprep.subr.mxu0 0.0
    %3723 = vmatpush1.msra.mxu0 %v3544
    %3724 = vmatprep.subr.mxu0 0.0
    %3725 = vmatpush1.msra.mxu0 %v3543
    %3726 = vmatprep.subr.mxu0 0.0
    %3727 = vmatpush1.msra.mxu0 %v3542
    %3728 = vmatprep.subr.mxu0 0.0
    %3729 = vmatpush2.msra.mxu0 0.0
    %3730 = vmatprep.subr.mxu0 0.0
    %3731 = vmatpush2.msra.mxu0 0.0
    %3732 = vmatprep.subr.mxu0 0.0
    %3733 = vmatpush2.msra.mxu0 0.0
    %3734 = vmatprep.subr.mxu0 0.0
    %3735 = vmatpush2.msra.mxu0 0.0
    %3736 = vmatprep.subr.mxu0 0.0
    %3737 = vmatpush2.msra.mxu0 0.0
    %3738 = vmatprep.subr.mxu0 0.0
    %3739 = vmatpush2.msra.mxu0 0.0
    %3740 = vmatprep.subr.mxu0 0.0
    %3741 = vmatpush2.msra.mxu0 0.0
    %3742 = vmatprep.subr.mxu0 0.0
    %3743 = vmatpush2.msra.mxu0 0.0
    %3744 = vmatprep.subr.mxu0 0.0
    %3745 = vmatpush2.msra.mxu0 0.0
    %3746 = vmatprep.subr.mxu0 0.0
    %3747 = vmatpush2.msra.mxu0 0.0
    %3748 = vmatprep.subr.mxu0 0.0
    %3749 = vmatpush2.msra.mxu0 0.0
    %3750 = vmatprep.subr.mxu0 0.0
    %3751 = vmatpush2.msra.mxu0 0.0
    %3752 = vmatprep.subr.mxu0 0.0
    %3753 = vmatpush2.msra.mxu0 0.0
    %3754 = vmatprep.subr.mxu0 0.0
    %3755 = vmatpush2.msra.mxu0 0.0
    %3756 = vmatprep.subr.mxu0 0.0
    %3757 = vmatpush2.msra.mxu0 0.0
    %3758 = vmatprep.subr.mxu0 0.0
    %3759 = vmatpush2.msra.mxu0 0.0
    %3760 = vmatprep.mubr.f32.mxu0 0.0
    %3761 = vmatmul.mubr.f32.gmra.mxu0 %v2515
    %v3762 = vpop.f32.mrf.mxu0
    %v3763 = vadd.f32 0.0, %v3762
    %v3764 = vpop.f32.mrf.mxu0
    %3765 = vmatprep.mubr.f32.mxu0 0.0
    %3766 = vmatmul.mubr.f32.gmra.mxu0 %v2518
    %v3767 = vpop.f32.mrf.mxu0
    %v3768 = vadd.f32 0.0, %v3767
    %v3769 = vpop.f32.mrf.mxu0
    %3770 = vdwg.mxu0
    %v3772 = vsel %vm406, %v3613, 0
    %v3775 = vsel %vm406, %v3618, 0
    %v3778 = vsel %vm406, %v3688, 0
    %v3781 = vsel %vm406, %v3693, 0
    %3783 = vmatprep.subr.mxu0 0.0
    %3784 = vmatpush1.xpose.msra.mxu0 0.0
    %3785 = vmatprep.subr.mxu0 0.0
    %3786 = vmatpush1.xpose.msra.mxu0 0.0
    %3787 = vmatprep.subr.mxu0 0.0
    %3788 = vmatpush1.xpose.msra.mxu0 0.0
    %3789 = vmatprep.subr.mxu0 0.0
    %3790 = vmatpush1.xpose.msra.mxu0 0.0
    %3791 = vmatprep.subr.mxu0 0.0
    %3792 = vmatpush1.xpose.msra.mxu0 0.0
    %3793 = vmatprep.subr.mxu0 0.0
    %3794 = vmatpush1.xpose.msra.mxu0 0.0
    %3795 = vmatprep.subr.mxu0 0.0
    %3796 = vmatpush1.xpose.msra.mxu0 0.0
    %3797 = vmatprep.subr.mxu0 0.0
    %3798 = vmatpush1.xpose.msra.mxu0 0.0
    %3799 = vmatprep.subr.mxu0 0.0
    %3800 = vmatpush1.xpose.msra.mxu0 0.0
    %3801 = vmatprep.subr.mxu0 0.0
    %3802 = vmatpush1.xpose.msra.mxu0 0.0
    %3803 = vmatprep.subr.mxu0 0.0
    %3804 = vmatpush1.xpose.msra.mxu0 0.0
    %3805 = vmatprep.subr.mxu0 0.0
    %3806 = vmatpush1.xpose.msra.mxu0 0.0
    %3807 = vmatprep.subr.mxu0 0.0
    %3808 = vmatpush1.xpose.msra.mxu0 0.0
    %3809 = vmatprep.subr.mxu0 0.0
    %3810 = vmatpush1.xpose.msra.mxu0 0.0
    %3811 = vmatprep.subr.mxu0 0.0
    %3812 = vmatpush1.xpose.msra.mxu0 %v3781
    %3813 = vmatprep.subr.mxu0 0.0
    %3814 = vmatpush1.xpose.msra.mxu0 %v3778
    %3815 = vmatprep.subr.mxu0 0.0
    %3816 = vmatpush2.xpose.msra.mxu0 0.0
    %3817 = vmatprep.subr.mxu0 0.0
    %3818 = vmatpush2.xpose.msra.mxu0 0.0
    %3819 = vmatprep.subr.mxu0 0.0
    %3820 = vmatpush2.xpose.msra.mxu0 0.0
    %3821 = vmatprep.subr.mxu0 0.0
    %3822 = vmatpush2.xpose.msra.mxu0 0.0
    %3823 = vmatprep.subr.mxu0 0.0
    %3824 = vmatpush2.xpose.msra.mxu0 0.0
    %3825 = vmatprep.subr.mxu0 0.0
    %3826 = vmatpush2.xpose.msra.mxu0 0.0
    %3827 = vmatprep.subr.mxu0 0.0
    %3828 = vmatpush2.xpose.msra.mxu0 0.0
    %3829 = vmatprep.subr.mxu0 0.0
    %3830 = vmatpush2.xpose.msra.mxu0 0.0
    %3831 = vmatprep.subr.mxu0 0.0
    %3832 = vmatpush2.xpose.msra.mxu0 0.0
    %3833 = vmatprep.subr.mxu0 0.0
    %3834 = vmatpush2.xpose.msra.mxu0 0.0
    %3835 = vmatprep.subr.mxu0 0.0
    %3836 = vmatpush2.xpose.msra.mxu0 0.0
    %3837 = vmatprep.subr.mxu0 0.0
    %3838 = vmatpush2.xpose.msra.mxu0 0.0
    %3839 = vmatprep.subr.mxu0 0.0
    %3840 = vmatpush2.xpose.msra.mxu0 0.0
    %3841 = vmatprep.subr.mxu0 0.0
    %3842 = vmatpush2.xpose.msra.mxu0 0.0
    %3843 = vmatprep.subr.mxu0 0.0
    %3844 = vmatpush2.xpose.msra.mxu0 0.0
    %3845 = vmatprep.subr.mxu0 0.0
    %3846 = vmatpush2.xpose.msra.mxu0 0.0
    %3847 = vmatprep.mubr.f32.mxu0 0.0
    %3848 = vmatmul.mubr.f32.gmra.mxu0 %v3772
    %v3849 = vpop.f32.mrf.mxu0
    %v3850 = vadd.f32 %v118, %v3849
    %v3851 = vpop.f32.mrf.mxu0
    %3852 = vmatprep.mubr.f32.mxu0 0.0
    %3853 = vmatmul.mubr.f32.gmra.mxu0 %v3775
    %v3854 = vpop.f32.mrf.mxu0
    %v3855 = vadd.f32 %v119, %v3854
    %v3856 = vpop.f32.mrf.mxu0
    %3857 = vdwg.mxu0
    %v3858 = vsel %vm494, %v3850, -inf
    %3859 = vmax.xlane.f32.xlu0 %v3858
    %v3860 = vpop.xlane.xlu0 %3859
    %v3861 = vsel %vm494, %v3855, -inf
    %3862 = vmax.xlane.f32.xlu0 %v3861
    %v3863 = vpop.xlane.xlu0 %3862
    %v3864 = vsub.f32 %v3850, %v3860
    %v3865 = vsub.f32 %v3855, %v3863
    %v3866 = vmul.f32 %v3864, 1.442695
    %v3867 = vpow.pop %v3866
    %v3868 = vmul.f32 %v3865, 1.442695
    %v3869 = vpow.pop %v3868
    %v3870 = vsel %vm494, %v3867, 0.0
    %3871 = vadd.xlane.f32.xlu0 %v3870
    %v3872 = vpop.xlane.xlu0 %3871
    %v3873 = vsel %vm494, %v3869, 0.0
    %3874 = vadd.xlane.f32.xlu0 %v3873
    %v3875 = vpop.xlane.xlu0 %3874
    %v3876 = vrcp.pop %v3872
    %v3877 = vrcp.pop %v3875
    %v3878 = vmul.f32 %v3867, %v3876
    %v3879 = vmul.f32 %v3869, %v3877
    %v3881 = vsel %vm494, %v3878, 0
    %v3884 = vsel %vm494, %v3879, 0
    %3886 = vmatprep.subr.mxu0 0.0
    %3887 = vmatpush1.msra.mxu0 0.0
    %3888 = vmatprep.subr.mxu0 0.0
    %3889 = vmatpush1.msra.mxu0 0.0
    %3890 = vmatprep.subr.mxu0 0.0
    %3891 = vmatpush1.msra.mxu0 0.0
    %3892 = vmatprep.subr.mxu0 0.0
    %3893 = vmatpush1.msra.mxu0 0.0
    %3894 = vmatprep.subr.mxu0 0.0
    %3895 = vmatpush1.msra.mxu0 0.0
    %3896 = vmatprep.subr.mxu0 0.0
    %3897 = vmatpush1.msra.mxu0 0.0
    %3898 = vmatprep.subr.mxu0 0.0
    %3899 = vmatpush1.msra.mxu0 0.0
    %3900 = vmatprep.subr.mxu0 0.0
    %3901 = vmatpush1.msra.mxu0 0.0
    %3902 = vmatprep.subr.mxu0 0.0
    %3903 = vmatpush1.msra.mxu0 0.0
    %3904 = vmatprep.subr.mxu0 0.0
    %3905 = vmatpush1.msra.mxu0 0.0
    %3906 = vmatprep.subr.mxu0 0.0
    %3907 = vmatpush1.msra.mxu0 0.0
    %3908 = vmatprep.subr.mxu0 0.0
    %3909 = vmatpush1.msra.mxu0 0.0
    %3910 = vmatprep.subr.mxu0 0.0
    %3911 = vmatpush1.msra.mxu0 0.0
    %3912 = vmatprep.subr.mxu0 0.0
    %3913 = vmatpush1.msra.mxu0 0.0
    %3914 = vmatprep.subr.mxu0 0.0
    %3915 = vmatpush1.msra.mxu0 %v3768
    %3916 = vmatprep.subr.mxu0 0.0
    %3917 = vmatpush1.msra.mxu0 %v3763
    %3918 = vmatprep.subr.mxu0 0.0
    %3919 = vmatpush2.msra.mxu0 0.0
    %3920 = vmatprep.subr.mxu0 0.0
    %3921 = vmatpush2.msra.mxu0 0.0
    %3922 = vmatprep.subr.mxu0 0.0
    %3923 = vmatpush2.msra.mxu0 0.0
    %3924 = vmatprep.subr.mxu0 0.0
    %3925 = vmatpush2.msra.mxu0 0.0
    %3926 = vmatprep.subr.mxu0 0.0
    %3927 = vmatpush2.msra.mxu0 0.0
    %3928 = vmatprep.subr.mxu0 0.0
    %3929 = vmatpush2.msra.mxu0 0.0
    %3930 = vmatprep.subr.mxu0 0.0
    %3931 = vmatpush2.msra.mxu0 0.0
    %3932 = vmatprep.subr.mxu0 0.0
    %3933 = vmatpush2.msra.mxu0 0.0
    %3934 = vmatprep.subr.mxu0 0.0
    %3935 = vmatpush2.msra.mxu0 0.0
    %3936 = vmatprep.subr.mxu0 0.0
    %3937 = vmatpush2.msra.mxu0 0.0
    %3938 = vmatprep.subr.mxu0 0.0
    %3939 = vmatpush2.msra.mxu0 0.0
    %3940 = vmatprep.subr.mxu0 0.0
    %3941 = vmatpush2.msra.mxu0 0.0
    %3942 = vmatprep.subr.mxu0 0.0
    %3943 = vmatpush2.msra.mxu0 0.0
    %3944 = vmatprep.subr.mxu0 0.0
    %3945 = vmatpush2.msra.mxu0 0.0
    %3946 = vmatprep.subr.mxu0 0.0
    %3947 = vmatpush2.msra.mxu0 0.0
    %3948 = vmatprep.subr.mxu0 0.0
    %3949 = vmatpush2.msra.mxu0 0.0
    %3950 = vmatprep.mubr.f32.mxu0 0.0
    %3951 = vmatmul.mubr.f32.gmra.mxu0 %v3881
    %v3952 = vpop.f32.mrf.mxu0
    %v3953 = vadd.f32 0.0, %v3952
    %v3954 = vpop.f32.mrf.mxu0
    %3955 = vmatprep.mubr.f32.mxu0 0.0
    %3956 = vmatmul.mubr.f32.gmra.mxu0 %v3884
    %v3957 = vpop.f32.mrf.mxu0
    %v3958 = vadd.f32 0.0, %v3957
    %v3959 = vpop.f32.mrf.mxu0
    %3960 = vdwg.mxu0
    %s3961 = scalar_lea.vmem [#allocation5], 48
    %v3962 = vld [vmem:[%s3961] sm:$0xff]
    %v3964 = vsel %vm406, %v3953, 0
    %v3967 = vsel %vm406, %v3958, 0
    %3969 = vmatprep.subr.mxu0 0.0
    %3970 = vmatpush1.msra.mxu0 0.0
    %3971 = vmatprep.subr.mxu0 0.0
    %3972 = vmatpush1.msra.mxu0 0.0
    %3973 = vmatprep.subr.mxu0 0.0
    %3974 = vmatpush1.msra.mxu0 0.0
    %3975 = vmatprep.subr.mxu0 0.0
    %3976 = vmatpush1.msra.mxu0 0.0
    %3977 = vmatprep.subr.mxu0 0.0
    %3978 = vmatpush1.msra.mxu0 0.0
    %3979 = vmatprep.subr.mxu0 0.0
    %3980 = vmatpush1.msra.mxu0 0.0
    %3981 = vmatprep.subr.mxu0 0.0
    %3982 = vmatpush1.msra.mxu0 0.0
    %3983 = vmatprep.subr.mxu0 0.0
    %3984 = vmatpush1.msra.mxu0 0.0
    %3985 = vmatprep.subr.mxu0 0.0
    %3986 = vmatpush1.msra.mxu0 0.0
    %3987 = vmatprep.subr.mxu0 0.0
    %3988 = vmatpush1.msra.mxu0 0.0
    %3989 = vmatprep.subr.mxu0 0.0
    %3990 = vmatpush1.msra.mxu0 0.0
    %3991 = vmatprep.subr.mxu0 0.0
    %3992 = vmatpush1.msra.mxu0 0.0
    %3993 = vmatprep.subr.mxu0 0.0
    %3994 = vmatpush1.msra.mxu0 0.0
    %3995 = vmatprep.subr.mxu0 0.0
    %3996 = vmatpush1.msra.mxu0 0.0
    %3997 = vmatprep.subr.mxu0 0.0
    %3998 = vmatpush1.msra.mxu0 0.0
    %3999 = vmatprep.subr.mxu0 0.0
    %4000 = vmatpush1.msra.mxu0 %v3962
    %4001 = vmatprep.subr.mxu0 0.0
    %4002 = vmatpush2.msra.mxu0 0.0
    %4003 = vmatprep.subr.mxu0 0.0
    %4004 = vmatpush2.msra.mxu0 0.0
    %4005 = vmatprep.subr.mxu0 0.0
    %4006 = vmatpush2.msra.mxu0 0.0
    %4007 = vmatprep.subr.mxu0 0.0
    %4008 = vmatpush2.msra.mxu0 0.0
    %4009 = vmatprep.subr.mxu0 0.0
    %4010 = vmatpush2.msra.mxu0 0.0
    %4011 = vmatprep.subr.mxu0 0.0
    %4012 = vmatpush2.msra.mxu0 0.0
    %4013 = vmatprep.subr.mxu0 0.0
    %4014 = vmatpush2.msra.mxu0 0.0
    %4015 = vmatprep.subr.mxu0 0.0
    %4016 = vmatpush2.msra.mxu0 0.0
    %4017 = vmatprep.subr.mxu0 0.0
    %4018 = vmatpush2.msra.mxu0 0.0
    %4019 = vmatprep.subr.mxu0 0.0
    %4020 = vmatpush2.msra.mxu0 0.0
    %4021 = vmatprep.subr.mxu0 0.0
    %4022 = vmatpush2.msra.mxu0 0.0
    %4023 = vmatprep.subr.mxu0 0.0
    %4024 = vmatpush2.msra.mxu0 0.0
    %4025 = vmatprep.subr.mxu0 0.0
    %4026 = vmatpush2.msra.mxu0 0.0
    %4027 = vmatprep.subr.mxu0 0.0
    %4028 = vmatpush2.msra.mxu0 0.0
    %4029 = vmatprep.subr.mxu0 0.0
    %4030 = vmatpush2.msra.mxu0 0.0
    %4031 = vmatprep.subr.mxu0 0.0
    %4032 = vmatpush2.msra.mxu0 0.0
    %4033 = vmatprep.mubr.f32.mxu0 0.0
    %4034 = vmatmul.mubr.f32.gmra.mxu0 %v3964
    %v4035 = vpop.f32.mrf.mxu0
    %v4036 = vadd.f32 0.0, %v4035
    %v4037 = vpop.f32.mrf.mxu0
    %4038 = vmatprep.mubr.f32.mxu0 0.0
    %4039 = vmatmul.mubr.f32.gmra.mxu0 %v3967
    %v4040 = vpop.f32.mrf.mxu0
    %v4041 = vadd.f32 0.0, %v4040
    %v4042 = vpop.f32.mrf.mxu0
    %4043 = vdwg.mxu0
    %v4044 = vadd.f32 %v3523, %v4036
    %v4045 = vadd.f32 %v3528, %v4041
    %s4046 = scalar_lea.vmem %s2, 480
    %v4047 = vld [vmem:[%s4046] sm:$0xff]
    %v4048 = vld [vmem:[%s4046 + $0x8] sm:$0xff]
    %v4049 = vld [vmem:[%s4046 + $0x10] sm:$0xff]
    %v4050 = vld [vmem:[%s4046 + $0x18] sm:$0xff]
    %s4051 = scalar_lea.vmem %s2, 608
    %v4052 = vld [vmem:[%s4051] sm:$0xff]
    %v4053 = vld [vmem:[%s4051 + $0x8] sm:$0xff]
    %v4054 = vld [vmem:[%s4051 + $0x10] sm:$0xff]
    %v4055 = vld [vmem:[%s4051 + $0x18] sm:$0xff]
    %s4056 = scalar_lea.vmem %s2, 736
    %v4057 = vld [vmem:[%s4056] sm:$0xff]
    %v4058 = vld [vmem:[%s4056 + $0x8] sm:$0xff]
    %v4059 = vld [vmem:[%s4056 + $0x10] sm:$0xff]
    %v4060 = vld [vmem:[%s4056 + $0x18] sm:$0xff]
    %4061 = vmatprep.subr.mxu0 0.0
    %4062 = vmatpush1.msra.mxu0 0.0
    %4063 = vmatprep.subr.mxu0 0.0
    %4064 = vmatpush1.msra.mxu0 0.0
    %4065 = vmatprep.subr.mxu0 0.0
    %4066 = vmatpush1.msra.mxu0 0.0
    %4067 = vmatprep.subr.mxu0 0.0
    %4068 = vmatpush1.msra.mxu0 0.0
    %4069 = vmatprep.subr.mxu0 0.0
    %4070 = vmatpush1.msra.mxu0 0.0
    %4071 = vmatprep.subr.mxu0 0.0
    %4072 = vmatpush1.msra.mxu0 0.0
    %4073 = vmatprep.subr.mxu0 0.0
    %4074 = vmatpush1.msra.mxu0 0.0
    %4075 = vmatprep.subr.mxu0 0.0
    %4076 = vmatpush1.msra.mxu0 0.0
    %4077 = vmatprep.subr.mxu0 0.0
    %4078 = vmatpush1.msra.mxu0 0.0
    %4079 = vmatprep.subr.mxu0 0.0
    %4080 = vmatpush1.msra.mxu0 0.0
    %4081 = vmatprep.subr.mxu0 0.0
    %4082 = vmatpush1.msra.mxu0 0.0
    %4083 = vmatprep.subr.mxu0 0.0
    %4084 = vmatpush1.msra.mxu0 0.0
    %4085 = vmatprep.subr.mxu0 0.0
    %4086 = vmatpush1.msra.mxu0 %v4050
    %4087 = vmatprep.subr.mxu0 0.0
    %4088 = vmatpush1.msra.mxu0 %v4049
    %4089 = vmatprep.subr.mxu0 0.0
    %4090 = vmatpush1.msra.mxu0 %v4048
    %4091 = vmatprep.subr.mxu0 0.0
    %4092 = vmatpush1.msra.mxu0 %v4047
    %4093 = vmatprep.subr.mxu0 0.0
    %4094 = vmatpush2.msra.mxu0 0.0
    %4095 = vmatprep.subr.mxu0 0.0
    %4096 = vmatpush2.msra.mxu0 0.0
    %4097 = vmatprep.subr.mxu0 0.0
    %4098 = vmatpush2.msra.mxu0 0.0
    %4099 = vmatprep.subr.mxu0 0.0
    %4100 = vmatpush2.msra.mxu0 0.0
    %4101 = vmatprep.subr.mxu0 0.0
    %4102 = vmatpush2.msra.mxu0 0.0
    %4103 = vmatprep.subr.mxu0 0.0
    %4104 = vmatpush2.msra.mxu0 0.0
    %4105 = vmatprep.subr.mxu0 0.0
    %4106 = vmatpush2.msra.mxu0 0.0
    %4107 = vmatprep.subr.mxu0 0.0
    %4108 = vmatpush2.msra.mxu0 0.0
    %4109 = vmatprep.subr.mxu0 0.0
    %4110 = vmatpush2.msra.mxu0 0.0
    %4111 = vmatprep.subr.mxu0 0.0
    %4112 = vmatpush2.msra.mxu0 0.0
    %4113 = vmatprep.subr.mxu0 0.0
    %4114 = vmatpush2.msra.mxu0 0.0
    %4115 = vmatprep.subr.mxu0 0.0
    %4116 = vmatpush2.msra.mxu0 0.0
    %4117 = vmatprep.subr.mxu0 0.0
    %4118 = vmatpush2.msra.mxu0 0.0
    %4119 = vmatprep.subr.mxu0 0.0
    %4120 = vmatpush2.msra.mxu0 0.0
    %4121 = vmatprep.subr.mxu0 0.0
    %4122 = vmatpush2.msra.mxu0 0.0
    %4123 = vmatprep.subr.mxu0 0.0
    %4124 = vmatpush2.msra.mxu0 0.0
    %4125 = vmatprep.mubr.f32.mxu0 0.0
    %4126 = vmatmul.mubr.f32.gmra.mxu0 %v2515
    %v4127 = vpop.f32.mrf.mxu0
    %v4128 = vadd.f32 0.0, %v4127
    %v4129 = vpop.f32.mrf.mxu0
    %4130 = vmatprep.mubr.f32.mxu0 0.0
    %4131 = vmatmul.mubr.f32.gmra.mxu0 %v2518
    %v4132 = vpop.f32.mrf.mxu0
    %v4133 = vadd.f32 0.0, %v4132
    %v4134 = vpop.f32.mrf.mxu0
    %4135 = vdwg.mxu0
    %4136 = vmatprep.subr.mxu0 0.0
    %4137 = vmatpush1.msra.mxu0 0.0
    %4138 = vmatprep.subr.mxu0 0.0
    %4139 = vmatpush1.msra.mxu0 0.0
    %4140 = vmatprep.subr.mxu0 0.0
    %4141 = vmatpush1.msra.mxu0 0.0
    %4142 = vmatprep.subr.mxu0 0.0
    %4143 = vmatpush1.msra.mxu0 0.0
    %4144 = vmatprep.subr.mxu0 0.0
    %4145 = vmatpush1.msra.mxu0 0.0
    %4146 = vmatprep.subr.mxu0 0.0
    %4147 = vmatpush1.msra.mxu0 0.0
    %4148 = vmatprep.subr.mxu0 0.0
    %4149 = vmatpush1.msra.mxu0 0.0
    %4150 = vmatprep.subr.mxu0 0.0
    %4151 = vmatpush1.msra.mxu0 0.0
    %4152 = vmatprep.subr.mxu0 0.0
    %4153 = vmatpush1.msra.mxu0 0.0
    %4154 = vmatprep.subr.mxu0 0.0
    %4155 = vmatpush1.msra.mxu0 0.0
    %4156 = vmatprep.subr.mxu0 0.0
    %4157 = vmatpush1.msra.mxu0 0.0
    %4158 = vmatprep.subr.mxu0 0.0
    %4159 = vmatpush1.msra.mxu0 0.0
    %4160 = vmatprep.subr.mxu0 0.0
    %4161 = vmatpush1.msra.mxu0 %v4055
    %4162 = vmatprep.subr.mxu0 0.0
    %4163 = vmatpush1.msra.mxu0 %v4054
    %4164 = vmatprep.subr.mxu0 0.0
    %4165 = vmatpush1.msra.mxu0 %v4053
    %4166 = vmatprep.subr.mxu0 0.0
    %4167 = vmatpush1.msra.mxu0 %v4052
    %4168 = vmatprep.subr.mxu0 0.0
    %4169 = vmatpush2.msra.mxu0 0.0
    %4170 = vmatprep.subr.mxu0 0.0
    %4171 = vmatpush2.msra.mxu0 0.0
    %4172 = vmatprep.subr.mxu0 0.0
    %4173 = vmatpush2.msra.mxu0 0.0
    %4174 = vmatprep.subr.mxu0 0.0
    %4175 = vmatpush2.msra.mxu0 0.0
    %4176 = vmatprep.subr.mxu0 0.0
    %4177 = vmatpush2.msra.mxu0 0.0
    %4178 = vmatprep.subr.mxu0 0.0
    %4179 = vmatpush2.msra.mxu0 0.0
    %4180 = vmatprep.subr.mxu0 0.0
    %4181 = vmatpush2.msra.mxu0 0.0
    %4182 = vmatprep.subr.mxu0 0.0
    %4183 = vmatpush2.msra.mxu0 0.0
    %4184 = vmatprep.subr.mxu0 0.0
    %4185 = vmatpush2.msra.mxu0 0.0
    %4186 = vmatprep.subr.mxu0 0.0
    %4187 = vmatpush2.msra.mxu0 0.0
    %4188 = vmatprep.subr.mxu0 0.0
    %4189 = vmatpush2.msra.mxu0 0.0
    %4190 = vmatprep.subr.mxu0 0.0
    %4191 = vmatpush2.msra.mxu0 0.0
    %4192 = vmatprep.subr.mxu0 0.0
    %4193 = vmatpush2.msra.mxu0 0.0
    %4194 = vmatprep.subr.mxu0 0.0
    %4195 = vmatpush2.msra.mxu0 0.0
    %4196 = vmatprep.subr.mxu0 0.0
    %4197 = vmatpush2.msra.mxu0 0.0
    %4198 = vmatprep.subr.mxu0 0.0
    %4199 = vmatpush2.msra.mxu0 0.0
    %4200 = vmatprep.mubr.f32.mxu0 0.0
    %4201 = vmatmul.mubr.f32.gmra.mxu0 %v2515
    %v4202 = vpop.f32.mrf.mxu0
    %v4203 = vadd.f32 0.0, %v4202
    %v4204 = vpop.f32.mrf.mxu0
    %4205 = vmatprep.mubr.f32.mxu0 0.0
    %4206 = vmatmul.mubr.f32.gmra.mxu0 %v2518
    %v4207 = vpop.f32.mrf.mxu0
    %v4208 = vadd.f32 0.0, %v4207
    %v4209 = vpop.f32.mrf.mxu0
    %4210 = vdwg.mxu0
    %4211 = vmatprep.subr.mxu0 0.0
    %4212 = vmatpush1.msra.mxu0 0.0
    %4213 = vmatprep.subr.mxu0 0.0
    %4214 = vmatpush1.msra.mxu0 0.0
    %4215 = vmatprep.subr.mxu0 0.0
    %4216 = vmatpush1.msra.mxu0 0.0
    %4217 = vmatprep.subr.mxu0 0.0
    %4218 = vmatpush1.msra.mxu0 0.0
    %4219 = vmatprep.subr.mxu0 0.0
    %4220 = vmatpush1.msra.mxu0 0.0
    %4221 = vmatprep.subr.mxu0 0.0
    %4222 = vmatpush1.msra.mxu0 0.0
    %4223 = vmatprep.subr.mxu0 0.0
    %4224 = vmatpush1.msra.mxu0 0.0
    %4225 = vmatprep.subr.mxu0 0.0
    %4226 = vmatpush1.msra.mxu0 0.0
    %4227 = vmatprep.subr.mxu0 0.0
    %4228 = vmatpush1.msra.mxu0 0.0
    %4229 = vmatprep.subr.mxu0 0.0
    %4230 = vmatpush1.msra.mxu0 0.0
    %4231 = vmatprep.subr.mxu0 0.0
    %4232 = vmatpush1.msra.mxu0 0.0
    %4233 = vmatprep.subr.mxu0 0.0
    %4234 = vmatpush1.msra.mxu0 0.0
    %4235 = vmatprep.subr.mxu0 0.0
    %4236 = vmatpush1.msra.mxu0 %v4060
    %4237 = vmatprep.subr.mxu0 0.0
    %4238 = vmatpush1.msra.mxu0 %v4059
    %4239 = vmatprep.subr.mxu0 0.0
    %4240 = vmatpush1.msra.mxu0 %v4058
    %4241 = vmatprep.subr.mxu0 0.0
    %4242 = vmatpush1.msra.mxu0 %v4057
    %4243 = vmatprep.subr.mxu0 0.0
    %4244 = vmatpush2.msra.mxu0 0.0
    %4245 = vmatprep.subr.mxu0 0.0
    %4246 = vmatpush2.msra.mxu0 0.0
    %4247 = vmatprep.subr.mxu0 0.0
    %4248 = vmatpush2.msra.mxu0 0.0
    %4249 = vmatprep.subr.mxu0 0.0
    %4250 = vmatpush2.msra.mxu0 0.0
    %4251 = vmatprep.subr.mxu0 0.0
    %4252 = vmatpush2.msra.mxu0 0.0
    %4253 = vmatprep.subr.mxu0 0.0
    %4254 = vmatpush2.msra.mxu0 0.0
    %4255 = vmatprep.subr.mxu0 0.0
    %4256 = vmatpush2.msra.mxu0 0.0
    %4257 = vmatprep.subr.mxu0 0.0
    %4258 = vmatpush2.msra.mxu0 0.0
    %4259 = vmatprep.subr.mxu0 0.0
    %4260 = vmatpush2.msra.mxu0 0.0
    %4261 = vmatprep.subr.mxu0 0.0
    %4262 = vmatpush2.msra.mxu0 0.0
    %4263 = vmatprep.subr.mxu0 0.0
    %4264 = vmatpush2.msra.mxu0 0.0
    %4265 = vmatprep.subr.mxu0 0.0
    %4266 = vmatpush2.msra.mxu0 0.0
    %4267 = vmatprep.subr.mxu0 0.0
    %4268 = vmatpush2.msra.mxu0 0.0
    %4269 = vmatprep.subr.mxu0 0.0
    %4270 = vmatpush2.msra.mxu0 0.0
    %4271 = vmatprep.subr.mxu0 0.0
    %4272 = vmatpush2.msra.mxu0 0.0
    %4273 = vmatprep.subr.mxu0 0.0
    %4274 = vmatpush2.msra.mxu0 0.0
    %4275 = vmatprep.mubr.f32.mxu0 0.0
    %4276 = vmatmul.mubr.f32.gmra.mxu0 %v2515
    %v4277 = vpop.f32.mrf.mxu0
    %v4278 = vadd.f32 0.0, %v4277
    %v4279 = vpop.f32.mrf.mxu0
    %4280 = vmatprep.mubr.f32.mxu0 0.0
    %4281 = vmatmul.mubr.f32.gmra.mxu0 %v2518
    %v4282 = vpop.f32.mrf.mxu0
    %v4283 = vadd.f32 0.0, %v4282
    %v4284 = vpop.f32.mrf.mxu0
    %4285 = vdwg.mxu0
    %v4287 = vsel %vm406, %v4128, 0
    %v4290 = vsel %vm406, %v4133, 0
    %v4293 = vsel %vm406, %v4203, 0
    %v4296 = vsel %vm406, %v4208, 0
    %4298 = vmatprep.subr.mxu0 0.0
    %4299 = vmatpush1.xpose.msra.mxu0 0.0
    %4300 = vmatprep.subr.mxu0 0.0
    %4301 = vmatpush1.xpose.msra.mxu0 0.0
    %4302 = vmatprep.subr.mxu0 0.0
    %4303 = vmatpush1.xpose.msra.mxu0 0.0
    %4304 = vmatprep.subr.mxu0 0.0
    %4305 = vmatpush1.xpose.msra.mxu0 0.0
    %4306 = vmatprep.subr.mxu0 0.0
    %4307 = vmatpush1.xpose.msra.mxu0 0.0
    %4308 = vmatprep.subr.mxu0 0.0
    %4309 = vmatpush1.xpose.msra.mxu0 0.0
    %4310 = vmatprep.subr.mxu0 0.0
    %4311 = vmatpush1.xpose.msra.mxu0 0.0
    %4312 = vmatprep.subr.mxu0 0.0
    %4313 = vmatpush1.xpose.msra.mxu0 0.0
    %4314 = vmatprep.subr.mxu0 0.0
    %4315 = vmatpush1.xpose.msra.mxu0 0.0
    %4316 = vmatprep.subr.mxu0 0.0
    %4317 = vmatpush1.xpose.msra.mxu0 0.0
    %4318 = vmatprep.subr.mxu0 0.0
    %4319 = vmatpush1.xpose.msra.mxu0 0.0
    %4320 = vmatprep.subr.mxu0 0.0
    %4321 = vmatpush1.xpose.msra.mxu0 0.0
    %4322 = vmatprep.subr.mxu0 0.0
    %4323 = vmatpush1.xpose.msra.mxu0 0.0
    %4324 = vmatprep.subr.mxu0 0.0
    %4325 = vmatpush1.xpose.msra.mxu0 0.0
    %4326 = vmatprep.subr.mxu0 0.0
    %4327 = vmatpush1.xpose.msra.mxu0 %v4296
    %4328 = vmatprep.subr.mxu0 0.0
    %4329 = vmatpush1.xpose.msra.mxu0 %v4293
    %4330 = vmatprep.subr.mxu0 0.0
    %4331 = vmatpush2.xpose.msra.mxu0 0.0
    %4332 = vmatprep.subr.mxu0 0.0
    %4333 = vmatpush2.xpose.msra.mxu0 0.0
    %4334 = vmatprep.subr.mxu0 0.0
    %4335 = vmatpush2.xpose.msra.mxu0 0.0
    %4336 = vmatprep.subr.mxu0 0.0
    %4337 = vmatpush2.xpose.msra.mxu0 0.0
    %4338 = vmatprep.subr.mxu0 0.0
    %4339 = vmatpush2.xpose.msra.mxu0 0.0
    %4340 = vmatprep.subr.mxu0 0.0
    %4341 = vmatpush2.xpose.msra.mxu0 0.0
    %4342 = vmatprep.subr.mxu0 0.0
    %4343 = vmatpush2.xpose.msra.mxu0 0.0
    %4344 = vmatprep.subr.mxu0 0.0
    %4345 = vmatpush2.xpose.msra.mxu0 0.0
    %4346 = vmatprep.subr.mxu0 0.0
    %4347 = vmatpush2.xpose.msra.mxu0 0.0
    %4348 = vmatprep.subr.mxu0 0.0
    %4349 = vmatpush2.xpose.msra.mxu0 0.0
    %4350 = vmatprep.subr.mxu0 0.0
    %4351 = vmatpush2.xpose.msra.mxu0 0.0
    %4352 = vmatprep.subr.mxu0 0.0
    %4353 = vmatpush2.xpose.msra.mxu0 0.0
    %4354 = vmatprep.subr.mxu0 0.0
    %4355 = vmatpush2.xpose.msra.mxu0 0.0
    %4356 = vmatprep.subr.mxu0 0.0
    %4357 = vmatpush2.xpose.msra.mxu0 0.0
    %4358 = vmatprep.subr.mxu0 0.0
    %4359 = vmatpush2.xpose.msra.mxu0 0.0
    %4360 = vmatprep.subr.mxu0 0.0
    %4361 = vmatpush2.xpose.msra.mxu0 0.0
    %4362 = vmatprep.mubr.f32.mxu0 0.0
    %4363 = vmatmul.mubr.f32.gmra.mxu0 %v4287
    %v4364 = vpop.f32.mrf.mxu0
    %v4365 = vadd.f32 %v118, %v4364
    %v4366 = vpop.f32.mrf.mxu0
    %4367 = vmatprep.mubr.f32.mxu0 0.0
    %4368 = vmatmul.mubr.f32.gmra.mxu0 %v4290
    %v4369 = vpop.f32.mrf.mxu0
    %v4370 = vadd.f32 %v119, %v4369
    %v4371 = vpop.f32.mrf.mxu0
    %4372 = vdwg.mxu0
    %v4373 = vsel %vm494, %v4365, -inf
    %4374 = vmax.xlane.f32.xlu0 %v4373
    %v4375 = vpop.xlane.xlu0 %4374
    %v4376 = vsel %vm494, %v4370, -inf
    %4377 = vmax.xlane.f32.xlu0 %v4376
    %v4378 = vpop.xlane.xlu0 %4377
    %v4379 = vsub.f32 %v4365, %v4375
    %v4380 = vsub.f32 %v4370, %v4378
    %v4381 = vmul.f32 %v4379, 1.442695
    %v4382 = vpow.pop %v4381
    %v4383 = vmul.f32 %v4380, 1.442695
    %v4384 = vpow.pop %v4383
    %v4385 = vsel %vm494, %v4382, 0.0
    %4386 = vadd.xlane.f32.xlu0 %v4385
    %v4387 = vpop.xlane.xlu0 %4386
    %v4388 = vsel %vm494, %v4384, 0.0
    %4389 = vadd.xlane.f32.xlu0 %v4388
    %v4390 = vpop.xlane.xlu0 %4389
    %v4391 = vrcp.pop %v4387
    %v4392 = vrcp.pop %v4390
    %v4393 = vmul.f32 %v4382, %v4391
    %v4394 = vmul.f32 %v4384, %v4392
    %v4396 = vsel %vm494, %v4393, 0
    %v4399 = vsel %vm494, %v4394, 0
    %4401 = vmatprep.subr.mxu0 0.0
    %4402 = vmatpush1.msra.mxu0 0.0
    %4403 = vmatprep.subr.mxu0 0.0
    %4404 = vmatpush1.msra.mxu0 0.0
    %4405 = vmatprep.subr.mxu0 0.0
    %4406 = vmatpush1.msra.mxu0 0.0
    %4407 = vmatprep.subr.mxu0 0.0
    %4408 = vmatpush1.msra.mxu0 0.0
    %4409 = vmatprep.subr.mxu0 0.0
    %4410 = vmatpush1.msra.mxu0 0.0
    %4411 = vmatprep.subr.mxu0 0.0
    %4412 = vmatpush1.msra.mxu0 0.0
    %4413 = vmatprep.subr.mxu0 0.0
    %4414 = vmatpush1.msra.mxu0 0.0
    %4415 = vmatprep.subr.mxu0 0.0
    %4416 = vmatpush1.msra.mxu0 0.0
    %4417 = vmatprep.subr.mxu0 0.0
    %4418 = vmatpush1.msra.mxu0 0.0
    %4419 = vmatprep.subr.mxu0 0.0
    %4420 = vmatpush1.msra.mxu0 0.0
    %4421 = vmatprep.subr.mxu0 0.0
    %4422 = vmatpush1.msra.mxu0 0.0
    %4423 = vmatprep.subr.mxu0 0.0
    %4424 = vmatpush1.msra.mxu0 0.0
    %4425 = vmatprep.subr.mxu0 0.0
    %4426 = vmatpush1.msra.mxu0 0.0
    %4427 = vmatprep.subr.mxu0 0.0
    %4428 = vmatpush1.msra.mxu0 0.0
    %4429 = vmatprep.subr.mxu0 0.0
    %4430 = vmatpush1.msra.mxu0 %v4283
    %4431 = vmatprep.subr.mxu0 0.0
    %4432 = vmatpush1.msra.mxu0 %v4278
    %4433 = vmatprep.subr.mxu0 0.0
    %4434 = vmatpush2.msra.mxu0 0.0
    %4435 = vmatprep.subr.mxu0 0.0
    %4436 = vmatpush2.msra.mxu0 0.0
    %4437 = vmatprep.subr.mxu0 0.0
    %4438 = vmatpush2.msra.mxu0 0.0
    %4439 = vmatprep.subr.mxu0 0.0
    %4440 = vmatpush2.msra.mxu0 0.0
    %4441 = vmatprep.subr.mxu0 0.0
    %4442 = vmatpush2.msra.mxu0 0.0
    %4443 = vmatprep.subr.mxu0 0.0
    %4444 = vmatpush2.msra.mxu0 0.0
    %4445 = vmatprep.subr.mxu0 0.0
    %4446 = vmatpush2.msra.mxu0 0.0
    %4447 = vmatprep.subr.mxu0 0.0
    %4448 = vmatpush2.msra.mxu0 0.0
    %4449 = vmatprep.subr.mxu0 0.0
    %4450 = vmatpush2.msra.mxu0 0.0
    %4451 = vmatprep.subr.mxu0 0.0
    %4452 = vmatpush2.msra.mxu0 0.0
    %4453 = vmatprep.subr.mxu0 0.0
    %4454 = vmatpush2.msra.mxu0 0.0
    %4455 = vmatprep.subr.mxu0 0.0
    %4456 = vmatpush2.msra.mxu0 0.0
    %4457 = vmatprep.subr.mxu0 0.0
    %4458 = vmatpush2.msra.mxu0 0.0
    %4459 = vmatprep.subr.mxu0 0.0
    %4460 = vmatpush2.msra.mxu0 0.0
    %4461 = vmatprep.subr.mxu0 0.0
    %4462 = vmatpush2.msra.mxu0 0.0
    %4463 = vmatprep.subr.mxu0 0.0
    %4464 = vmatpush2.msra.mxu0 0.0
    %4465 = vmatprep.mubr.f32.mxu0 0.0
    %4466 = vmatmul.mubr.f32.gmra.mxu0 %v4396
    %v4467 = vpop.f32.mrf.mxu0
    %v4468 = vadd.f32 0.0, %v4467
    %v4469 = vpop.f32.mrf.mxu0
    %4470 = vmatprep.mubr.f32.mxu0 0.0
    %4471 = vmatmul.mubr.f32.gmra.mxu0 %v4399
    %v4472 = vpop.f32.mrf.mxu0
    %v4473 = vadd.f32 0.0, %v4472
    %v4474 = vpop.f32.mrf.mxu0
    %4475 = vdwg.mxu0
    %s4476 = scalar_lea.vmem [#allocation5], 56
    %v4477 = vld [vmem:[%s4476] sm:$0xff]
    %v4479 = vsel %vm406, %v4468, 0
    %v4482 = vsel %vm406, %v4473, 0
    %4484 = vmatprep.subr.mxu0 0.0
    %4485 = vmatpush1.msra.mxu0 0.0
    %4486 = vmatprep.subr.mxu0 0.0
    %4487 = vmatpush1.msra.mxu0 0.0
    %4488 = vmatprep.subr.mxu0 0.0
    %4489 = vmatpush1.msra.mxu0 0.0
    %4490 = vmatprep.subr.mxu0 0.0
    %4491 = vmatpush1.msra.mxu0 0.0
    %4492 = vmatprep.subr.mxu0 0.0
    %4493 = vmatpush1.msra.mxu0 0.0
    %4494 = vmatprep.subr.mxu0 0.0
    %4495 = vmatpush1.msra.mxu0 0.0
    %4496 = vmatprep.subr.mxu0 0.0
    %4497 = vmatpush1.msra.mxu0 0.0
    %4498 = vmatprep.subr.mxu0 0.0
    %4499 = vmatpush1.msra.mxu0 0.0
    %4500 = vmatprep.subr.mxu0 0.0
    %4501 = vmatpush1.msra.mxu0 0.0
    %4502 = vmatprep.subr.mxu0 0.0
    %4503 = vmatpush1.msra.mxu0 0.0
    %4504 = vmatprep.subr.mxu0 0.0
    %4505 = vmatpush1.msra.mxu0 0.0
    %4506 = vmatprep.subr.mxu0 0.0
    %4507 = vmatpush1.msra.mxu0 0.0
    %4508 = vmatprep.subr.mxu0 0.0
    %4509 = vmatpush1.msra.mxu0 0.0
    %4510 = vmatprep.subr.mxu0 0.0
    %4511 = vmatpush1.msra.mxu0 0.0
    %4512 = vmatprep.subr.mxu0 0.0
    %4513 = vmatpush1.msra.mxu0 0.0
    %4514 = vmatprep.subr.mxu0 0.0
    %4515 = vmatpush1.msra.mxu0 %v4477
    %4516 = vmatprep.subr.mxu0 0.0
    %4517 = vmatpush2.msra.mxu0 0.0
    %4518 = vmatprep.subr.mxu0 0.0
    %4519 = vmatpush2.msra.mxu0 0.0
    %4520 = vmatprep.subr.mxu0 0.0
    %4521 = vmatpush2.msra.mxu0 0.0
    %4522 = vmatprep.subr.mxu0 0.0
    %4523 = vmatpush2.msra.mxu0 0.0
    %4524 = vmatprep.subr.mxu0 0.0
    %4525 = vmatpush2.msra.mxu0 0.0
    %4526 = vmatprep.subr.mxu0 0.0
    %4527 = vmatpush2.msra.mxu0 0.0
    %4528 = vmatprep.subr.mxu0 0.0
    %4529 = vmatpush2.msra.mxu0 0.0
    %4530 = vmatprep.subr.mxu0 0.0
    %4531 = vmatpush2.msra.mxu0 0.0
    %4532 = vmatprep.subr.mxu0 0.0
    %4533 = vmatpush2.msra.mxu0 0.0
    %4534 = vmatprep.subr.mxu0 0.0
    %4535 = vmatpush2.msra.mxu0 0.0
    %4536 = vmatprep.subr.mxu0 0.0
    %4537 = vmatpush2.msra.mxu0 0.0
    %4538 = vmatprep.subr.mxu0 0.0
    %4539 = vmatpush2.msra.mxu0 0.0
    %4540 = vmatprep.subr.mxu0 0.0
    %4541 = vmatpush2.msra.mxu0 0.0
    %4542 = vmatprep.subr.mxu0 0.0
    %4543 = vmatpush2.msra.mxu0 0.0
    %4544 = vmatprep.subr.mxu0 0.0
    %4545 = vmatpush2.msra.mxu0 0.0
    %4546 = vmatprep.subr.mxu0 0.0
    %4547 = vmatpush2.msra.mxu0 0.0
    %4548 = vmatprep.mubr.f32.mxu0 0.0
    %4549 = vmatmul.mubr.f32.gmra.mxu0 %v4479
    %v4550 = vpop.f32.mrf.mxu0
    %v4551 = vadd.f32 0.0, %v4550
    %v4552 = vpop.f32.mrf.mxu0
    %4553 = vmatprep.mubr.f32.mxu0 0.0
    %4554 = vmatmul.mubr.f32.gmra.mxu0 %v4482
    %v4555 = vpop.f32.mrf.mxu0
    %v4556 = vadd.f32 0.0, %v4555
    %v4557 = vpop.f32.mrf.mxu0
    %4558 = vdwg.mxu0
    %v4559 = vadd.f32 %v4044, %v4551
    %v4560 = vadd.f32 %v4045, %v4556
    %v4561 = vadd.f32 %v2457, %v4559
    %v4562 = vadd.f32 %v2458, %v4560
    %v4563 = vlaneseq
    %v4564 = vshrl.u32 %v4563, 7
    %v4565 = vsub.s32 4, %v4564
    %v4566 = vrot.slane %v2460, %v4565
    %v4567 = vadd.f32 %v4561, %v4566
    %v4568 = vadd.f32 %v4562, %v4566
    %v4569 = vsel %vm121, %v4567, 0.0
    %4570 = vadd.xlane.f32.xlu0 %v4569
    %v4571 = vpop.xlane.xlu0 %4570
    %v4572 = vsel %vm121, %v4568, 0.0
    %4573 = vadd.xlane.f32.xlu0 %v4572
    %v4574 = vpop.xlane.xlu0 %4573
    %v4575 = vmul.f32 %v4571, %v128
    %v4576 = vmul.f32 %v4574, %v128
    %v4577 = vsub.f32 %v4567, %v4575
    %v4578 = vsub.f32 %v4568, %v4576
    %v4579 = vmul.f32 %v4577, %v4577
    %v4580 = vmul.f32 %v4578, %v4578
    %v4581 = vsel %vm121, %v4579, 0.0
    %4582 = vadd.xlane.f32.xlu0 %v4581
    %v4583 = vpop.xlane.xlu0 %4582
    %v4584 = vsel %vm121, %v4580, 0.0
    %4585 = vadd.xlane.f32.xlu0 %v4584
    %v4586 = vpop.xlane.xlu0 %4585
    %v4587 = vmul.f32 %v4583, %v128
    %v4588 = vmul.f32 %v4586, %v128
    %v4589 = vadd.f32 %v4587, 1e-05
    %v4590 = vadd.f32 %v4588, 1e-05
    %v4591 = vrsqrt.pop %v4589
    %v4592 = vrsqrt.pop %v4590
    %v4593 = vmul.f32 %v4577, %v4591
    %v4594 = vmul.f32 %v4578, %v4592
    %v4595 = vlaneseq
    %v4596 = vshrl.u32 %v4595, 7
    %v4597 = vsub.s32 2, %v4596
    %v4598 = vrot.slane %v2460, %v4597
    %v4599 = vmul.f32 %v4593, %v4598
    %v4600 = vmul.f32 %v4594, %v4598
    %v4601 = vlaneseq
    %v4602 = vshrl.u32 %v4601, 7
    %v4603 = vsub.s32 3, %v4602
    %v4604 = vrot.slane %v2460, %v4603
    %v4605 = vadd.f32 %v4599, %v4604
    %v4606 = vadd.f32 %v4600, %v4604
    %s4607 = scalar_lea.vmem [#allocation7], 32
    %v4608 = vld [vmem:[%s4607] sm:$0xff]
    %v4609 = vld [vmem:[%s4607 + $0x8] sm:$0xff]
    %v4610 = vld [vmem:[%s4607 + $0x10] sm:$0xff]
    %v4611 = vld [vmem:[%s4607 + $0x18] sm:$0xff]
    %s4612 = scalar_lea.vmem [#allocation8], 1
    %v4613 = vld [vmem:[%s4612] sm:$0x1]
    %v4615 = vlaneseq
    %v4616 = vshrl.u32 %v4615, 7
    %v4617 = vsub.s32 0, %v4616
    %v4618 = vrot.slane %v4613, %v4617
    %v4621 = vsel %vm121, %v4605, 0
    %v4624 = vsel %vm121, %v4606, 0
    %4626 = vmatprep.subr.mxu0 0.0
    %4627 = vmatpush1.msra.mxu0 0.0
    %4628 = vmatprep.subr.mxu0 0.0
    %4629 = vmatpush1.msra.mxu0 0.0
    %4630 = vmatprep.subr.mxu0 0.0
    %4631 = vmatpush1.msra.mxu0 0.0
    %4632 = vmatprep.subr.mxu0 0.0
    %4633 = vmatpush1.msra.mxu0 0.0
    %4634 = vmatprep.subr.mxu0 0.0
    %4635 = vmatpush1.msra.mxu0 0.0
    %4636 = vmatprep.subr.mxu0 0.0
    %4637 = vmatpush1.msra.mxu0 0.0
    %4638 = vmatprep.subr.mxu0 0.0
    %4639 = vmatpush1.msra.mxu0 0.0
    %4640 = vmatprep.subr.mxu0 0.0
    %4641 = vmatpush1.msra.mxu0 0.0
    %4642 = vmatprep.subr.mxu0 0.0
    %4643 = vmatpush1.msra.mxu0 0.0
    %4644 = vmatprep.subr.mxu0 0.0
    %4645 = vmatpush1.msra.mxu0 0.0
    %4646 = vmatprep.subr.mxu0 0.0
    %4647 = vmatpush1.msra.mxu0 0.0
    %4648 = vmatprep.subr.mxu0 0.0
    %4649 = vmatpush1.msra.mxu0 0.0
    %4650 = vmatprep.subr.mxu0 0.0
    %4651 = vmatpush1.msra.mxu0 %v4611
    %4652 = vmatprep.subr.mxu0 0.0
    %4653 = vmatpush1.msra.mxu0 %v4610
    %4654 = vmatprep.subr.mxu0 0.0
    %4655 = vmatpush1.msra.mxu0 %v4609
    %4656 = vmatprep.subr.mxu0 0.0
    %4657 = vmatpush1.msra.mxu0 %v4608
    %4658 = vmatprep.subr.mxu0 0.0
    %4659 = vmatpush2.msra.mxu0 0.0
    %4660 = vmatprep.subr.mxu0 0.0
    %4661 = vmatpush2.msra.mxu0 0.0
    %4662 = vmatprep.subr.mxu0 0.0
    %4663 = vmatpush2.msra.mxu0 0.0
    %4664 = vmatprep.subr.mxu0 0.0
    %4665 = vmatpush2.msra.mxu0 0.0
    %4666 = vmatprep.subr.mxu0 0.0
    %4667 = vmatpush2.msra.mxu0 0.0
    %4668 = vmatprep.subr.mxu0 0.0
    %4669 = vmatpush2.msra.mxu0 0.0
    %4670 = vmatprep.subr.mxu0 0.0
    %4671 = vmatpush2.msra.mxu0 0.0
    %4672 = vmatprep.subr.mxu0 0.0
    %4673 = vmatpush2.msra.mxu0 0.0
    %4674 = vmatprep.subr.mxu0 0.0
    %4675 = vmatpush2.msra.mxu0 0.0
    %4676 = vmatprep.subr.mxu0 0.0
    %4677 = vmatpush2.msra.mxu0 0.0
    %4678 = vmatprep.subr.mxu0 0.0
    %4679 = vmatpush2.msra.mxu0 0.0
    %4680 = vmatprep.subr.mxu0 0.0
    %4681 = vmatpush2.msra.mxu0 0.0
    %4682 = vmatprep.subr.mxu0 0.0
    %4683 = vmatpush2.msra.mxu0 0.0
    %4684 = vmatprep.subr.mxu0 0.0
    %4685 = vmatpush2.msra.mxu0 0.0
    %4686 = vmatprep.subr.mxu0 0.0
    %4687 = vmatpush2.msra.mxu0 0.0
    %4688 = vmatprep.subr.mxu0 0.0
    %4689 = vmatpush2.msra.mxu0 0.0
    %4690 = vmatprep.mubr.f32.mxu0 0.0
    %4691 = vmatmul.mubr.f32.gmra.mxu0 %v4621
    %v4692 = vpop.f32.mrf.mxu0
    %v4693 = vadd.f32 %v4618, %v4692
    %v4694 = vpop.f32.mrf.mxu0
    %4695 = vmatprep.mubr.f32.mxu0 0.0
    %4696 = vmatmul.mubr.f32.gmra.mxu0 %v4624
    %v4697 = vpop.f32.mrf.mxu0
    %v4698 = vadd.f32 %v4618, %v4697
    %v4699 = vpop.f32.mrf.mxu0
    %4700 = vdwg.mxu0
    %v4701 = vmax.f32 %v4693, 0.0
    %v4702 = vmax.f32 %v4698, 0.0
    %s4703 = scalar_lea.vmem %s6, 64
    %v4704 = vld [vmem:[%s4703] sm:$0xff]
    %v4705 = vld [vmem:[%s4703 + $0x8] sm:$0xff]
    %v4706 = vld [vmem:[%s4703 + $0x10] sm:$0xff]
    %v4707 = vld [vmem:[%s4703 + $0x18] sm:$0xff]
    %v4708 = vld [vmem:[%s4703 + $0x20] sm:$0xff]
    %v4709 = vld [vmem:[%s4703 + $0x28] sm:$0xff]
    %v4710 = vld [vmem:[%s4703 + $0x30] sm:$0xff]
    %v4711 = vld [vmem:[%s4703 + $0x38] sm:$0xff]
    %v4712 = vlaneseq
    %v4713 = vshrl.u32 %v4712, 7
    %v4714 = vsub.s32 5, %v4713
    %v4715 = vrot.slane %v2460, %v4714
    %v4717 = vsel %vm2375, %v4701, 0
    %v4720 = vsel %vm2375, %v4702, 0
    %4722 = vmatprep.subr.mxu0 0.0
    %4723 = vmatpush1.msra.mxu0 0.0
    %4724 = vmatprep.subr.mxu0 0.0
    %4725 = vmatpush1.msra.mxu0 0.0
    %4726 = vmatprep.subr.mxu0 0.0
    %4727 = vmatpush1.msra.mxu0 0.0
    %4728 = vmatprep.subr.mxu0 0.0
    %4729 = vmatpush1.msra.mxu0 0.0
    %4730 = vmatprep.subr.mxu0 0.0
    %4731 = vmatpush1.msra.mxu0 0.0
    %4732 = vmatprep.subr.mxu0 0.0
    %4733 = vmatpush1.msra.mxu0 0.0
    %4734 = vmatprep.subr.mxu0 0.0
    %4735 = vmatpush1.msra.mxu0 0.0
    %4736 = vmatprep.subr.mxu0 0.0
    %4737 = vmatpush1.msra.mxu0 0.0
    %4738 = vmatprep.subr.mxu0 0.0
    %4739 = vmatpush1.msra.mxu0 %v4711
    %4740 = vmatprep.subr.mxu0 0.0
    %4741 = vmatpush1.msra.mxu0 %v4710
    %4742 = vmatprep.subr.mxu0 0.0
    %4743 = vmatpush1.msra.mxu0 %v4709
    %4744 = vmatprep.subr.mxu0 0.0
    %4745 = vmatpush1.msra.mxu0 %v4708
    %4746 = vmatprep.subr.mxu0 0.0
    %4747 = vmatpush1.msra.mxu0 %v4707
    %4748 = vmatprep.subr.mxu0 0.0
    %4749 = vmatpush1.msra.mxu0 %v4706
    %4750 = vmatprep.subr.mxu0 0.0
    %4751 = vmatpush1.msra.mxu0 %v4705
    %4752 = vmatprep.subr.mxu0 0.0
    %4753 = vmatpush1.msra.mxu0 %v4704
    %4754 = vmatprep.subr.mxu0 0.0
    %4755 = vmatpush2.msra.mxu0 0.0
    %4756 = vmatprep.subr.mxu0 0.0
    %4757 = vmatpush2.msra.mxu0 0.0
    %4758 = vmatprep.subr.mxu0 0.0
    %4759 = vmatpush2.msra.mxu0 0.0
    %4760 = vmatprep.subr.mxu0 0.0
    %4761 = vmatpush2.msra.mxu0 0.0
    %4762 = vmatprep.subr.mxu0 0.0
    %4763 = vmatpush2.msra.mxu0 0.0
    %4764 = vmatprep.subr.mxu0 0.0
    %4765 = vmatpush2.msra.mxu0 0.0
    %4766 = vmatprep.subr.mxu0 0.0
    %4767 = vmatpush2.msra.mxu0 0.0
    %4768 = vmatprep.subr.mxu0 0.0
    %4769 = vmatpush2.msra.mxu0 0.0
    %4770 = vmatprep.subr.mxu0 0.0
    %4771 = vmatpush2.msra.mxu0 0.0
    %4772 = vmatprep.subr.mxu0 0.0
    %4773 = vmatpush2.msra.mxu0 0.0
    %4774 = vmatprep.subr.mxu0 0.0
    %4775 = vmatpush2.msra.mxu0 0.0
    %4776 = vmatprep.subr.mxu0 0.0
    %4777 = vmatpush2.msra.mxu0 0.0
    %4778 = vmatprep.subr.mxu0 0.0
    %4779 = vmatpush2.msra.mxu0 0.0
    %4780 = vmatprep.subr.mxu0 0.0
    %4781 = vmatpush2.msra.mxu0 0.0
    %4782 = vmatprep.subr.mxu0 0.0
    %4783 = vmatpush2.msra.mxu0 0.0
    %4784 = vmatprep.subr.mxu0 0.0
    %4785 = vmatpush2.msra.mxu0 0.0
    %4786 = vmatprep.mubr.f32.mxu0 0.0
    %4787 = vmatmul.mubr.f32.gmra.mxu0 %v4717
    %v4788 = vpop.f32.mrf.mxu0
    %v4789 = vadd.f32 %v4715, %v4788
    %v4790 = vpop.f32.mrf.mxu0
    %4791 = vmatprep.mubr.f32.mxu0 0.0
    %4792 = vmatmul.mubr.f32.gmra.mxu0 %v4720
    %v4793 = vpop.f32.mrf.mxu0
    %v4794 = vadd.f32 %v4715, %v4793
    %v4795 = vpop.f32.mrf.mxu0
    %4796 = vdwg.mxu0
    %v4797 = vadd.f32 %v4567, %v4789
    %v4798 = vadd.f32 %v4568, %v4794
    %4799 = vst.msk [vmem:[#allocation11] sm:$0xff] %vm121, %v4797
    %4800 = vst.msk [vmem:[#allocation11 + $0x8] sm:$0xff] %vm121, %v4798
    // Predicated region
    $region54: #{transformer_forward.1} parent=1 // pred_check
      _
    $region55: #{transformer_forward.1} parent=1 // pred_check_branch
      %4802 = sbr.rel (0) target = $region57
    $region56: #{transformer_forward.1} parent=1 // pred_region
      %s4804 = ssub.s32 256, 256
      %4805 = vsyncadd [#allocation4], %s4804
      %s4806 = sshll.u32 [#allocation11], 4
      %s4807 = int_to_ptr.vmem [resolvable:$true] %s4806
      %4812 = dma.vmem_to_hbm [thread:$0]  %s4807, 256, %s8, [#allocation4], 128, 128, 8
    $region57: #{transformer_forward.1} parent=1 // pred_fallthru
      _
    // Predicated region
    $region58: #{transformer_forward.1} parent=1 // pred_check
      _
    $region59: #{transformer_forward.1} parent=1 // pred_check_branch
      %4814 = sbr.rel (0) target = $region61
    $region60: #{transformer_forward.1} parent=1 // pred_region
      %4815 = dma.done [#allocation4], 256
    $region61: #{transformer_forward.1} parent=1 // pred_fallthru
      _
    %4816 = vsyncpa [#allocation3], 1
    %4817 = vsyncpa [#allocation6], 1
    %4818 = vsyncpa [#allocation9], 1
    %4819 = vsyncpa [#allocation4], 1

</llo_original>
